<compile_context>
chip_gen: v6e
topology: v6e:2x2x1
jax: 0.10.0
libtpu: 0.0.40
codegen_flags: <defaults>
</compile_context>

<pallas_src>
import functools

import jax
import jax.numpy as jnp
from jax.experimental import pallas as pl
from jax.experimental.pallas import tpu as pltpu


def _compressed_linear_kernel(x_ref, codes_t_ref, cb_t_ref, bias_ref, out_ref,
                              wt_ref, *, compute_dtype):
    """One grid step = (one OUT tile, one batch tile).

    Ref shapes:
      x_ref:       (B_TILE, IN)        f32
      codes_t_ref: (NSUB, OUT_TILE)    int8  (bit-identical to the uint8 codes)
      cb_t_ref:    (D, K)              f32   (codebook transposed)
      bias_ref:    (1, OUT_TILE)       f32
      out_ref:     (B_TILE, OUT_TILE)  f32
      wt_ref:      (IN, OUT_TILE)      f32   VMEM scratch: W.T for this OUT tile
    """
    nsub, out_tile = codes_t_ref.shape
    d, k = cb_t_ref.shape

    # ------------------------------------------------------------------
    # Decode this OUT tile's weights ONCE (first batch step only); the
    # scratch persists across the inner batch-tile grid steps.
    # ------------------------------------------------------------------
    @pl.when(pl.program_id(1) == 0)
    def _decode_w_tile():
        # 8-bit codes -> i32 values 0..255 (the int8 reinterpretation done in
        # the wrapper is undone by the & 0xFF mask).
        codes = codes_t_ref[...].astype(jnp.int32) & 0xFF          # (NSUB, OUT_TILE)
        cb_t = cb_t_ref[...]                                        # (D, K)
        # Hoisted: one iota reused for every subvector.
        kio = jax.lax.broadcasted_iota(jnp.int32, (k, out_tile), 0)
        for s in range(nsub):  # static unroll; NSUB is small
            # Lane-dense one-hot: onehot[kk, o] = (codes[s, o] == kk).
            onehot = (kio == codes[s:s + 1, :]).astype(jnp.float32)  # (K, OUT_TILE)
            # Exact gather on the MXU: (D, K) @ (K, OUT_TILE) -> (D, OUT_TILE).
            slab = jnp.dot(cb_t, onehot, preferred_element_type=jnp.float32)
            # D == 8 -> sublane-aligned slab store; no tile-crossing reshape.
            wt_ref[s * d:(s + 1) * d, :] = slab

    # ------------------------------------------------------------------
    # Main matmul: y = x @ W.T (+ bias). Contraction on dim1/dim0 -- no
    # explicit transpose; optional bf16 operands for the MXU-native path.
    # ------------------------------------------------------------------
    xb = x_ref[...].astype(compute_dtype)
    wt = wt_ref[...].astype(compute_dtype)
    y = jnp.dot(xb, wt, preferred_element_type=jnp.float32)
    out_ref[...] = (y + bias_ref[...]).astype(out_ref.dtype)


def compressed_linear_forward(x, codes_matrix_u8, codebook, bias, *,
                              out_tile=256, batch_tile=8, use_bf16=False):
    """y = x @ (codebook[codes].reshape(OUT, IN)).T + bias   (F.linear semantics).

    x:               (B, IN)     float32
    codes_matrix_u8: (OUT, NSUB) uint8
    codebook:        (K, D)      float32 with NSUB * D == IN
    bias:            (OUT,)      float32
    """
    b, in_f = x.shape
    out_f, nsub = codes_matrix_u8.shape
    k, d = codebook.shape
    assert nsub * d == in_f, "codes/codebook inconsistent with in_features"

    out_tile = min(out_tile, out_f)
    batch_tile = min(batch_tile, b)
    # TODO(synk): shapes not aligned to (8, 128) tiles would need padding or
    # masked stores; typical pqf layer sizes (and the demo) are aligned.
    assert out_f % out_tile == 0 and out_tile % 128 == 0
    assert b % batch_tile == 0 and (batch_tile % 8 == 0 or batch_tile == b)

    # Layout plumbing in the wrapper (uint8-sized / tiny, done once per call):
    #  * codes go over the wire as 8 bits (4x less DMA than int32), transposed
    #    to (NSUB, OUT) so the kernel gets lane-dense code rows; int8 is a
    #    bit-identical reinterpretation of the uint8 codes (best-supported
    #    8-bit path) -- the kernel recovers the unsigned value with & 0xFF.
    #  * codebook is passed as (D, K) so the decode is a plain (D,K)@(K,N) dot.
    codes_t_i8 = jax.lax.bitcast_convert_type(codes_matrix_u8.T, jnp.int8)
    cb_t = codebook.T
    bias2d = bias.reshape(1, out_f)

    compute_dtype = jnp.bfloat16 if use_bf16 else jnp.float32

    # Raise the scoped-VMEM limit so large tiles fit; stays below every chip's
    # physical VMEM (128 MiB v5e/v6e, 64 MiB v7x).
    est = (
        in_f * out_tile * 4                  # W.T scratch (f32)
        + 2 * batch_tile * in_f * 4          # x (double-buffered)
        + 2 * batch_tile * out_tile * 4      # out (double-buffered)
        + 2 * nsub * out_tile                # codes (8-bit, double-buffered)
        + 2 * d * k * 4 + 2 * out_tile * 4   # codebook + bias
        + 3 * k * out_tile * 4               # one-hot / iota / temporaries
    )
    vmem_limit = int(min(max(2 * est, 32 * 1024 * 1024), 56 * 1024 * 1024))

    # Batch innermost => weights decoded once per OUT tile, not per batch tile.
    grid = (out_f // out_tile, b // batch_tile)

    kernel = functools.partial(_compressed_linear_kernel,
                               compute_dtype=compute_dtype)

    return pl.pallas_call(
        kernel,
        out_shape=jax.ShapeDtypeStruct((b, out_f), jnp.float32),
        grid_spec=pltpu.PrefetchScalarGridSpec(
            num_scalar_prefetch=0,
            grid=grid,
            in_specs=[
                pl.BlockSpec((batch_tile, in_f), lambda o, bt: (bt, 0)),   # x
                pl.BlockSpec((nsub, out_tile), lambda o, bt: (0, o)),      # codes.T (8-bit)
                pl.BlockSpec((d, k), lambda o, bt: (0, 0)),                # codebook.T (resident)
                pl.BlockSpec((1, out_tile), lambda o, bt: (0, o)),         # bias
            ],
            out_specs=pl.BlockSpec((batch_tile, out_tile), lambda o, bt: (bt, o)),
            scratch_shapes=[pltpu.VMEM((in_f, out_tile), jnp.float32)],    # W.T tile
        ),
        compiler_params=pltpu.CompilerParams(
            dimension_semantics=("parallel", "arbitrary"),  # OUT tiles across v7x's 2 TCs
            vmem_limit_bytes=vmem_limit,
        ),
    )(x, codes_t_i8, cb_t, bias2d)


if __name__ == "__main__":
    key = jax.random.PRNGKey(0)
    k_x, k_cb, k_codes, k_b = jax.random.split(key, 4)

    # Small shapes consistent with a product-quantized Linear layer.
    B = 16            # batch (2 batch tiles of 8 -> exercises decode-once path)
    D = 8             # subvector size
    NSUB = 16         # subvectors per output row
    IN = NSUB * D     # in_features  = 128
    OUT = 512         # out_features (2 OUT tiles of 256)
    K = 256           # codebook entries (codes stored as uint8)

    x = jax.random.normal(k_x, (B, IN), dtype=jnp.float32)
    codebook = jax.random.normal(k_cb, (K, D), dtype=jnp.float32)
    codes_matrix = jax.random.randint(k_codes, (OUT, NSUB), 0, K).astype(jnp.uint8)
    bias = jax.random.normal(k_b, (OUT,), dtype=jnp.float32)

    # Pure-JAX reference: _get_uncompressed_weight() + F.linear.
    w_ref = codebook[codes_matrix.astype(jnp.int32)].reshape(OUT, IN)
    y_ref = x @ w_ref.T + bias[None, :]

    # f32 path (numerically matches the reference).
    y = jax.block_until_ready(
        compressed_linear_forward(x, codes_matrix, codebook, bias))
    assert y.shape == (B, OUT)
    assert jnp.allclose(y, y_ref, atol=1e-3, rtol=1e-3), "f32 mismatch vs reference"

    # bf16 main-matmul path (MXU-native on v6e/v7x); decode stays exact f32, so
    # only the final matmul is in mixed precision -> looser tolerance.
    y_bf = jax.block_until_ready(
        compressed_linear_forward(x, codes_matrix, codebook, bias, use_bf16=True))
    assert jnp.allclose(y_bf, y_ref, atol=0.5, rtol=5e-2), "bf16 mismatch vs reference"

    print("KERNEL_OK")
</pallas_src>

<mosaic_0001>
module attributes {stable_mosaic.version = 11 : i64} {
  func.func @_compressed_linear_kernel(%arg0: i32, %arg1: i32, %arg2: memref<8x128xf32, #tpu.memory_space<vmem>>, %arg3: memref<16x256xi8, #tpu.memory_space<vmem>>, %arg4: memref<8x256xf32, #tpu.memory_space<vmem>>, %arg5: memref<1x256xf32, #tpu.memory_space<vmem>>, %arg6: memref<8x256xf32, #tpu.memory_space<vmem>>, %arg7: memref<128x256xf32, #tpu.memory_space<vmem>>) attributes {dimension_semantics = [#tpu.dimension_semantics<parallel>, #tpu.dimension_semantics<arbitrary>], iteration_bounds = array<i64: 2, 2>, scalar_prefetch = 0 : i64, scratch_operands = 1 : i64, tpu.core_type = #tpu.core_type<tc>, window_params = [{transform_indices = @transform_0, window_bounds = array<i64: 8, 128>}, {transform_indices = @transform_1, window_bounds = array<i64: 16, 256>}, {pipeline_mode = #tpu.pipeline_mode<synchronous>, transform_indices = @transform_2, window_bounds = array<i64: 8, 256>}, {transform_indices = @transform_3, window_bounds = array<i64: 1, 256>}, {transform_indices = @transform_4, window_bounds = array<i64: 8, 256>}]} {
    %c0_i32 = arith.constant 0 : i32
    %0 = arith.cmpi eq, %arg1, %c0_i32 : i32
    %1 = arith.extui %0 : i1 to i32
    %c0_i32_0 = arith.constant 0 : i32
    %2 = arith.cmpi ne, %1, %c0_i32_0 : i32
    scf.if %2 {
      %c0_8 = arith.constant 0 : index
      %c0_9 = arith.constant 0 : index
      %10 = vector.load %arg3[%c0_8, %c0_9] : memref<16x256xi8, #tpu.memory_space<vmem>>, vector<16x256xi8>
      %11 = arith.extsi %10 : vector<16x256xi8> to vector<16x256xi32>
      %c255_i32 = arith.constant 255 : i32
      %12 = vector.broadcast %c255_i32 : i32 to vector<16x256xi32>
      %13 = arith.andi %11, %12 : vector<16x256xi32>
      %c0_10 = arith.constant 0 : index
      %c0_11 = arith.constant 0 : index
      %14 = vector.load %arg4[%c0_10, %c0_11] : memref<8x256xf32, #tpu.memory_space<vmem>>, vector<8x256xf32>
      %15 = tpu.iota {dimensions = array<i32: 0>} : vector<256x256xi32>
      %16 = vector.extract_strided_slice %13 {offsets = [0, 0], sizes = [1, 256], strides = [1, 1]} : vector<16x256xi32> to vector<1x256xi32>
      %17 = vector.broadcast %16 : vector<1x256xi32> to vector<256x256xi32>
      %18 = arith.cmpi eq, %15, %17 : vector<256x256xi32>
      %19 = arith.extui %18 : vector<256x256xi1> to vector<256x256xi32>
      %20 = arith.sitofp %19 : vector<256x256xi32> to vector<256x256xf32>
      %cst_12 = arith.constant dense<0.000000e+00> : vector<8x256xf32>
      %21 = tpu.matmul %14, %20, %cst_12 {dimension_numbers = #tpu.dot_dimension_numbers<[1], [0], [0], [1], [0, 0, 1, 1], [], []>} : vector<8x256xf32>, vector<256x256xf32>, vector<8x256xf32> -> vector<8x256xf32>
      %c0_13 = arith.constant 0 : index
      %c0_14 = arith.constant 0 : index
      %22 = vector.load %arg7[%c0_13, %c0_14] : memref<128x256xf32, #tpu.memory_space<vmem>>, vector<8x256xf32>
      tpu.vector_store %arg7[%c0_13, %c0_14], %21 {strides = array<i32>} : memref<128x256xf32, #tpu.memory_space<vmem>>, vector<8x256xf32>,
      %23 = vector.extract_strided_slice %13 {offsets = [1, 0], sizes = [1, 256], strides = [1, 1]} : vector<16x256xi32> to vector<1x256xi32>
      %24 = vector.broadcast %23 : vector<1x256xi32> to vector<256x256xi32>
      %25 = arith.cmpi eq, %15, %24 : vector<256x256xi32>
      %26 = arith.extui %25 : vector<256x256xi1> to vector<256x256xi32>
      %27 = arith.sitofp %26 : vector<256x256xi32> to vector<256x256xf32>
      %cst_15 = arith.constant dense<0.000000e+00> : vector<8x256xf32>
      %28 = tpu.matmul %14, %27, %cst_15 {dimension_numbers = #tpu.dot_dimension_numbers<[1], [0], [0], [1], [0, 0, 1, 1], [], []>} : vector<8x256xf32>, vector<256x256xf32>, vector<8x256xf32> -> vector<8x256xf32>
      %c8 = arith.constant 8 : index
      %c0_16 = arith.constant 0 : index
      %29 = vector.load %arg7[%c8, %c0_16] : memref<128x256xf32, #tpu.memory_space<vmem>>, vector<8x256xf32>
      tpu.vector_store %arg7[%c8, %c0_16], %28 {strides = array<i32>} : memref<128x256xf32, #tpu.memory_space<vmem>>, vector<8x256xf32>,
      %30 = vector.extract_strided_slice %13 {offsets = [2, 0], sizes = [1, 256], strides = [1, 1]} : vector<16x256xi32> to vector<1x256xi32>
      %31 = vector.broadcast %30 : vector<1x256xi32> to vector<256x256xi32>
      %32 = arith.cmpi eq, %15, %31 : vector<256x256xi32>
      %33 = arith.extui %32 : vector<256x256xi1> to vector<256x256xi32>
      %34 = arith.sitofp %33 : vector<256x256xi32> to vector<256x256xf32>
      %cst_17 = arith.constant dense<0.000000e+00> : vector<8x256xf32>
      %35 = tpu.matmul %14, %34, %cst_17 {dimension_numbers = #tpu.dot_dimension_numbers<[1], [0], [0], [1], [0, 0, 1, 1], [], []>} : vector<8x256xf32>, vector<256x256xf32>, vector<8x256xf32> -> vector<8x256xf32>
      %c16 = arith.constant 16 : index
      %c0_18 = arith.constant 0 : index
      %36 = vector.load %arg7[%c16, %c0_18] : memref<128x256xf32, #tpu.memory_space<vmem>>, vector<8x256xf32>
      tpu.vector_store %arg7[%c16, %c0_18], %35 {strides = array<i32>} : memref<128x256xf32, #tpu.memory_space<vmem>>, vector<8x256xf32>,
      %37 = vector.extract_strided_slice %13 {offsets = [3, 0], sizes = [1, 256], strides = [1, 1]} : vector<16x256xi32> to vector<1x256xi32>
      %38 = vector.broadcast %37 : vector<1x256xi32> to vector<256x256xi32>
      %39 = arith.cmpi eq, %15, %38 : vector<256x256xi32>
      %40 = arith.extui %39 : vector<256x256xi1> to vector<256x256xi32>
      %41 = arith.sitofp %40 : vector<256x256xi32> to vector<256x256xf32>
      %cst_19 = arith.constant dense<0.000000e+00> : vector<8x256xf32>
      %42 = tpu.matmul %14, %41, %cst_19 {dimension_numbers = #tpu.dot_dimension_numbers<[1], [0], [0], [1], [0, 0, 1, 1], [], []>} : vector<8x256xf32>, vector<256x256xf32>, vector<8x256xf32> -> vector<8x256xf32>
      %c24 = arith.constant 24 : index
      %c0_20 = arith.constant 0 : index
      %43 = vector.load %arg7[%c24, %c0_20] : memref<128x256xf32, #tpu.memory_space<vmem>>, vector<8x256xf32>
      tpu.vector_store %arg7[%c24, %c0_20], %42 {strides = array<i32>} : memref<128x256xf32, #tpu.memory_space<vmem>>, vector<8x256xf32>,
      %44 = vector.extract_strided_slice %13 {offsets = [4, 0], sizes = [1, 256], strides = [1, 1]} : vector<16x256xi32> to vector<1x256xi32>
      %45 = vector.broadcast %44 : vector<1x256xi32> to vector<256x256xi32>
      %46 = arith.cmpi eq, %15, %45 : vector<256x256xi32>
      %47 = arith.extui %46 : vector<256x256xi1> to vector<256x256xi32>
      %48 = arith.sitofp %47 : vector<256x256xi32> to vector<256x256xf32>
      %cst_21 = arith.constant dense<0.000000e+00> : vector<8x256xf32>
      %49 = tpu.matmul %14, %48, %cst_21 {dimension_numbers = #tpu.dot_dimension_numbers<[1], [0], [0], [1], [0, 0, 1, 1], [], []>} : vector<8x256xf32>, vector<256x256xf32>, vector<8x256xf32> -> vector<8x256xf32>
      %c32 = arith.constant 32 : index
      %c0_22 = arith.constant 0 : index
      %50 = vector.load %arg7[%c32, %c0_22] : memref<128x256xf32, #tpu.memory_space<vmem>>, vector<8x256xf32>
      tpu.vector_store %arg7[%c32, %c0_22], %49 {strides = array<i32>} : memref<128x256xf32, #tpu.memory_space<vmem>>, vector<8x256xf32>,
      %51 = vector.extract_strided_slice %13 {offsets = [5, 0], sizes = [1, 256], strides = [1, 1]} : vector<16x256xi32> to vector<1x256xi32>
      %52 = vector.broadcast %51 : vector<1x256xi32> to vector<256x256xi32>
      %53 = arith.cmpi eq, %15, %52 : vector<256x256xi32>
      %54 = arith.extui %53 : vector<256x256xi1> to vector<256x256xi32>
      %55 = arith.sitofp %54 : vector<256x256xi32> to vector<256x256xf32>
      %cst_23 = arith.constant dense<0.000000e+00> : vector<8x256xf32>
      %56 = tpu.matmul %14, %55, %cst_23 {dimension_numbers = #tpu.dot_dimension_numbers<[1], [0], [0], [1], [0, 0, 1, 1], [], []>} : vector<8x256xf32>, vector<256x256xf32>, vector<8x256xf32> -> vector<8x256xf32>
      %c40 = arith.constant 40 : index
      %c0_24 = arith.constant 0 : index
      %57 = vector.load %arg7[%c40, %c0_24] : memref<128x256xf32, #tpu.memory_space<vmem>>, vector<8x256xf32>
      tpu.vector_store %arg7[%c40, %c0_24], %56 {strides = array<i32>} : memref<128x256xf32, #tpu.memory_space<vmem>>, vector<8x256xf32>,
      %58 = vector.extract_strided_slice %13 {offsets = [6, 0], sizes = [1, 256], strides = [1, 1]} : vector<16x256xi32> to vector<1x256xi32>
      %59 = vector.broadcast %58 : vector<1x256xi32> to vector<256x256xi32>
      %60 = arith.cmpi eq, %15, %59 : vector<256x256xi32>
      %61 = arith.extui %60 : vector<256x256xi1> to vector<256x256xi32>
      %62 = arith.sitofp %61 : vector<256x256xi32> to vector<256x256xf32>
      %cst_25 = arith.constant dense<0.000000e+00> : vector<8x256xf32>
      %63 = tpu.matmul %14, %62, %cst_25 {dimension_numbers = #tpu.dot_dimension_numbers<[1], [0], [0], [1], [0, 0, 1, 1], [], []>} : vector<8x256xf32>, vector<256x256xf32>, vector<8x256xf32> -> vector<8x256xf32>
      %c48 = arith.constant 48 : index
      %c0_26 = arith.constant 0 : index
      %64 = vector.load %arg7[%c48, %c0_26] : memref<128x256xf32, #tpu.memory_space<vmem>>, vector<8x256xf32>
      tpu.vector_store %arg7[%c48, %c0_26], %63 {strides = array<i32>} : memref<128x256xf32, #tpu.memory_space<vmem>>, vector<8x256xf32>,
      %65 = vector.extract_strided_slice %13 {offsets = [7, 0], sizes = [1, 256], strides = [1, 1]} : vector<16x256xi32> to vector<1x256xi32>
      %66 = vector.broadcast %65 : vector<1x256xi32> to vector<256x256xi32>
      %67 = arith.cmpi eq, %15, %66 : vector<256x256xi32>
      %68 = arith.extui %67 : vector<256x256xi1> to vector<256x256xi32>
      %69 = arith.sitofp %68 : vector<256x256xi32> to vector<256x256xf32>
      %cst_27 = arith.constant dense<0.000000e+00> : vector<8x256xf32>
      %70 = tpu.matmul %14, %69, %cst_27 {dimension_numbers = #tpu.dot_dimension_numbers<[1], [0], [0], [1], [0, 0, 1, 1], [], []>} : vector<8x256xf32>, vector<256x256xf32>, vector<8x256xf32> -> vector<8x256xf32>
      %c56 = arith.constant 56 : index
      %c0_28 = arith.constant 0 : index
      %71 = vector.load %arg7[%c56, %c0_28] : memref<128x256xf32, #tpu.memory_space<vmem>>, vector<8x256xf32>
      tpu.vector_store %arg7[%c56, %c0_28], %70 {strides = array<i32>} : memref<128x256xf32, #tpu.memory_space<vmem>>, vector<8x256xf32>,
      %72 = vector.extract_strided_slice %13 {offsets = [8, 0], sizes = [1, 256], strides = [1, 1]} : vector<16x256xi32> to vector<1x256xi32>
      %73 = vector.broadcast %72 : vector<1x256xi32> to vector<256x256xi32>
      %74 = arith.cmpi eq, %15, %73 : vector<256x256xi32>
      %75 = arith.extui %74 : vector<256x256xi1> to vector<256x256xi32>
      %76 = arith.sitofp %75 : vector<256x256xi32> to vector<256x256xf32>
      %cst_29 = arith.constant dense<0.000000e+00> : vector<8x256xf32>
      %77 = tpu.matmul %14, %76, %cst_29 {dimension_numbers = #tpu.dot_dimension_numbers<[1], [0], [0], [1], [0, 0, 1, 1], [], []>} : vector<8x256xf32>, vector<256x256xf32>, vector<8x256xf32> -> vector<8x256xf32>
      %c64 = arith.constant 64 : index
      %c0_30 = arith.constant 0 : index
      %78 = vector.load %arg7[%c64, %c0_30] : memref<128x256xf32, #tpu.memory_space<vmem>>, vector<8x256xf32>
      tpu.vector_store %arg7[%c64, %c0_30], %77 {strides = array<i32>} : memref<128x256xf32, #tpu.memory_space<vmem>>, vector<8x256xf32>,
      %79 = vector.extract_strided_slice %13 {offsets = [9, 0], sizes = [1, 256], strides = [1, 1]} : vector<16x256xi32> to vector<1x256xi32>
      %80 = vector.broadcast %79 : vector<1x256xi32> to vector<256x256xi32>
      %81 = arith.cmpi eq, %15, %80 : vector<256x256xi32>
      %82 = arith.extui %81 : vector<256x256xi1> to vector<256x256xi32>
      %83 = arith.sitofp %82 : vector<256x256xi32> to vector<256x256xf32>
      %cst_31 = arith.constant dense<0.000000e+00> : vector<8x256xf32>
      %84 = tpu.matmul %14, %83, %cst_31 {dimension_numbers = #tpu.dot_dimension_numbers<[1], [0], [0], [1], [0, 0, 1, 1], [], []>} : vector<8x256xf32>, vector<256x256xf32>, vector<8x256xf32> -> vector<8x256xf32>
      %c72 = arith.constant 72 : index
      %c0_32 = arith.constant 0 : index
      %85 = vector.load %arg7[%c72, %c0_32] : memref<128x256xf32, #tpu.memory_space<vmem>>, vector<8x256xf32>
      tpu.vector_store %arg7[%c72, %c0_32], %84 {strides = array<i32>} : memref<128x256xf32, #tpu.memory_space<vmem>>, vector<8x256xf32>,
      %86 = vector.extract_strided_slice %13 {offsets = [10, 0], sizes = [1, 256], strides = [1, 1]} : vector<16x256xi32> to vector<1x256xi32>
      %87 = vector.broadcast %86 : vector<1x256xi32> to vector<256x256xi32>
      %88 = arith.cmpi eq, %15, %87 : vector<256x256xi32>
      %89 = arith.extui %88 : vector<256x256xi1> to vector<256x256xi32>
      %90 = arith.sitofp %89 : vector<256x256xi32> to vector<256x256xf32>
      %cst_33 = arith.constant dense<0.000000e+00> : vector<8x256xf32>
      %91 = tpu.matmul %14, %90, %cst_33 {dimension_numbers = #tpu.dot_dimension_numbers<[1], [0], [0], [1], [0, 0, 1, 1], [], []>} : vector<8x256xf32>, vector<256x256xf32>, vector<8x256xf32> -> vector<8x256xf32>
      %c80 = arith.constant 80 : index
      %c0_34 = arith.constant 0 : index
      %92 = vector.load %arg7[%c80, %c0_34] : memref<128x256xf32, #tpu.memory_space<vmem>>, vector<8x256xf32>
      tpu.vector_store %arg7[%c80, %c0_34], %91 {strides = array<i32>} : memref<128x256xf32, #tpu.memory_space<vmem>>, vector<8x256xf32>,
      %93 = vector.extract_strided_slice %13 {offsets = [11, 0], sizes = [1, 256], strides = [1, 1]} : vector<16x256xi32> to vector<1x256xi32>
      %94 = vector.broadcast %93 : vector<1x256xi32> to vector<256x256xi32>
      %95 = arith.cmpi eq, %15, %94 : vector<256x256xi32>
      %96 = arith.extui %95 : vector<256x256xi1> to vector<256x256xi32>
      %97 = arith.sitofp %96 : vector<256x256xi32> to vector<256x256xf32>
      %cst_35 = arith.constant dense<0.000000e+00> : vector<8x256xf32>
      %98 = tpu.matmul %14, %97, %cst_35 {dimension_numbers = #tpu.dot_dimension_numbers<[1], [0], [0], [1], [0, 0, 1, 1], [], []>} : vector<8x256xf32>, vector<256x256xf32>, vector<8x256xf32> -> vector<8x256xf32>
      %c88 = arith.constant 88 : index
      %c0_36 = arith.constant 0 : index
      %99 = vector.load %arg7[%c88, %c0_36] : memref<128x256xf32, #tpu.memory_space<vmem>>, vector<8x256xf32>
      tpu.vector_store %arg7[%c88, %c0_36], %98 {strides = array<i32>} : memref<128x256xf32, #tpu.memory_space<vmem>>, vector<8x256xf32>,
      %100 = vector.extract_strided_slice %13 {offsets = [12, 0], sizes = [1, 256], strides = [1, 1]} : vector<16x256xi32> to vector<1x256xi32>
      %101 = vector.broadcast %100 : vector<1x256xi32> to vector<256x256xi32>
      %102 = arith.cmpi eq, %15, %101 : vector<256x256xi32>
      %103 = arith.extui %102 : vector<256x256xi1> to vector<256x256xi32>
      %104 = arith.sitofp %103 : vector<256x256xi32> to vector<256x256xf32>
      %cst_37 = arith.constant dense<0.000000e+00> : vector<8x256xf32>
      %105 = tpu.matmul %14, %104, %cst_37 {dimension_numbers = #tpu.dot_dimension_numbers<[1], [0], [0], [1], [0, 0, 1, 1], [], []>} : vector<8x256xf32>, vector<256x256xf32>, vector<8x256xf32> -> vector<8x256xf32>
      %c96 = arith.constant 96 : index
      %c0_38 = arith.constant 0 : index
      %106 = vector.load %arg7[%c96, %c0_38] : memref<128x256xf32, #tpu.memory_space<vmem>>, vector<8x256xf32>
      tpu.vector_store %arg7[%c96, %c0_38], %105 {strides = array<i32>} : memref<128x256xf32, #tpu.memory_space<vmem>>, vector<8x256xf32>,
      %107 = vector.extract_strided_slice %13 {offsets = [13, 0], sizes = [1, 256], strides = [1, 1]} : vector<16x256xi32> to vector<1x256xi32>
      %108 = vector.broadcast %107 : vector<1x256xi32> to vector<256x256xi32>
      %109 = arith.cmpi eq, %15, %108 : vector<256x256xi32>
      %110 = arith.extui %109 : vector<256x256xi1> to vector<256x256xi32>
      %111 = arith.sitofp %110 : vector<256x256xi32> to vector<256x256xf32>
      %cst_39 = arith.constant dense<0.000000e+00> : vector<8x256xf32>
      %112 = tpu.matmul %14, %111, %cst_39 {dimension_numbers = #tpu.dot_dimension_numbers<[1], [0], [0], [1], [0, 0, 1, 1], [], []>} : vector<8x256xf32>, vector<256x256xf32>, vector<8x256xf32> -> vector<8x256xf32>
      %c104 = arith.constant 104 : index
      %c0_40 = arith.constant 0 : index
      %113 = vector.load %arg7[%c104, %c0_40] : memref<128x256xf32, #tpu.memory_space<vmem>>, vector<8x256xf32>
      tpu.vector_store %arg7[%c104, %c0_40], %112 {strides = array<i32>} : memref<128x256xf32, #tpu.memory_space<vmem>>, vector<8x256xf32>,
      %114 = vector.extract_strided_slice %13 {offsets = [14, 0], sizes = [1, 256], strides = [1, 1]} : vector<16x256xi32> to vector<1x256xi32>
      %115 = vector.broadcast %114 : vector<1x256xi32> to vector<256x256xi32>
      %116 = arith.cmpi eq, %15, %115 : vector<256x256xi32>
      %117 = arith.extui %116 : vector<256x256xi1> to vector<256x256xi32>
      %118 = arith.sitofp %117 : vector<256x256xi32> to vector<256x256xf32>
      %cst_41 = arith.constant dense<0.000000e+00> : vector<8x256xf32>
      %119 = tpu.matmul %14, %118, %cst_41 {dimension_numbers = #tpu.dot_dimension_numbers<[1], [0], [0], [1], [0, 0, 1, 1], [], []>} : vector<8x256xf32>, vector<256x256xf32>, vector<8x256xf32> -> vector<8x256xf32>
      %c112 = arith.constant 112 : index
      %c0_42 = arith.constant 0 : index
      %120 = vector.load %arg7[%c112, %c0_42] : memref<128x256xf32, #tpu.memory_space<vmem>>, vector<8x256xf32>
      tpu.vector_store %arg7[%c112, %c0_42], %119 {strides = array<i32>} : memref<128x256xf32, #tpu.memory_space<vmem>>, vector<8x256xf32>,
      %121 = vector.extract_strided_slice %13 {offsets = [15, 0], sizes = [1, 256], strides = [1, 1]} : vector<16x256xi32> to vector<1x256xi32>
      %122 = vector.broadcast %121 : vector<1x256xi32> to vector<256x256xi32>
      %123 = arith.cmpi eq, %15, %122 : vector<256x256xi32>
      %124 = arith.extui %123 : vector<256x256xi1> to vector<256x256xi32>
      %125 = arith.sitofp %124 : vector<256x256xi32> to vector<256x256xf32>
      %cst_43 = arith.constant dense<0.000000e+00> : vector<8x256xf32>
      %126 = tpu.matmul %14, %125, %cst_43 {dimension_numbers = #tpu.dot_dimension_numbers<[1], [0], [0], [1], [0, 0, 1, 1], [], []>} : vector<8x256xf32>, vector<256x256xf32>, vector<8x256xf32> -> vector<8x256xf32>
      %c120 = arith.constant 120 : index
      %c0_44 = arith.constant 0 : index
      %127 = vector.load %arg7[%c120, %c0_44] : memref<128x256xf32, #tpu.memory_space<vmem>>, vector<8x256xf32>
      tpu.vector_store %arg7[%c120, %c0_44], %126 {strides = array<i32>} : memref<128x256xf32, #tpu.memory_space<vmem>>, vector<8x256xf32>,
    } else {
    }
    %c0 = arith.constant 0 : index
    %c0_1 = arith.constant 0 : index
    %3 = vector.load %arg2[%c0, %c0_1] : memref<8x128xf32, #tpu.memory_space<vmem>>, vector<8x128xf32>
    %c0_2 = arith.constant 0 : index
    %c0_3 = arith.constant 0 : index
    %4 = vector.load %arg7[%c0_2, %c0_3] : memref<128x256xf32, #tpu.memory_space<vmem>>, vector<128x256xf32>
    %cst = arith.constant dense<0.000000e+00> : vector<8x256xf32>
    %5 = tpu.matmul %3, %4, %cst {dimension_numbers = #tpu.dot_dimension_numbers<[1], [0], [0], [1], [0, 0, 1, 1], [], []>} : vector<8x128xf32>, vector<128x256xf32>, vector<8x256xf32> -> vector<8x256xf32>
    %c0_4 = arith.constant 0 : index
    %c0_5 = arith.constant 0 : index
    %6 = vector.load %arg5[%c0_4, %c0_5] : memref<1x256xf32, #tpu.memory_space<vmem>>, vector<1x256xf32>
    %7 = vector.broadcast %6 : vector<1x256xf32> to vector<8x256xf32>
    %8 = arith.addf %5, %7 : vector<8x256xf32>
    %c0_6 = arith.constant 0 : index
    %c0_7 = arith.constant 0 : index
    %9 = vector.load %arg6[%c0_6, %c0_7] : memref<8x256xf32, #tpu.memory_space<vmem>>, vector<8x256xf32>
    tpu.vector_store %arg6[%c0_6, %c0_7], %8 {strides = array<i32>} : memref<8x256xf32, #tpu.memory_space<vmem>>, vector<8x256xf32>,
    return
  }
  func.func @transform_0(%arg0: i32, %arg1: i32) -> (i32, i32) {
    %c0_i32 = arith.constant 0 : i32
    %c0_i32_0 = arith.constant 0 : i32
    return %arg1, %c0_i32 : i32, i32
  }
  func.func @transform_1(%arg0: i32, %arg1: i32) -> (i32, i32) {
    %c0_i32 = arith.constant 0 : i32
    %c0_i32_0 = arith.constant 0 : i32
    return %c0_i32, %arg0 : i32, i32
  }
  func.func @transform_2(%arg0: i32, %arg1: i32) -> (i32, i32) {
    %c0_i32 = arith.constant 0 : i32
    %c0_i32_0 = arith.constant 0 : i32
    %c0_i32_1 = arith.constant 0 : i32
    return %c0_i32, %c0_i32_0 : i32, i32
  }
  func.func @transform_3(%arg0: i32, %arg1: i32) -> (i32, i32) {
    %c0_i32 = arith.constant 0 : i32
    %c0_i32_0 = arith.constant 0 : i32
    return %c0_i32, %arg0 : i32, i32
  }
  func.func @transform_4(%arg0: i32, %arg1: i32) -> (i32, i32) {
    %c0_i32 = arith.constant 0 : i32
    return %arg1, %arg0 : i32, i32
  }
}

</mosaic_0001>

<llo_original>
// kernel: tpu_custom_call.1
$region0: #{tpu_custom_call.1}
  #allocation0 [shape = 'u32[]', space=smem, size = 0x4, offset = 0x4, fixed_abs, tag = 'smem constant byte address 0x4 - core index']
  #allocation1 [shape = 'u32[144,128]{1,0:T(1,128)}', space=vmem, size = 0x12000, scoped, tag = 'internal scratch']
  #allocation2 [shape = 'f32[128,256]{1,0:T(8,128)}', space=vmem, size = 0x20000, scoped, tag = 'scratch operand']
  %s0 = inlined_call_operand.hbm [shape: f32[16,128], index: 0, kind: input, shape index: {}]
  %s1 = inlined_call_operand.hbm [shape: s8[16,512], index: 1, kind: input, shape index: {}]
  %s2 = inlined_call_operand.hbm [shape: f32[8,256], index: 2, kind: input, shape index: {}]
  %s3 = inlined_call_operand.vmem [shape: f32[1,512], index: 3, kind: input, shape index: {}]
  %s4 = inlined_call_operand.hbm [shape: f32[16,512], index: 4, kind: output, shape index: {}]
  %s5 = sld [smem:[#allocation0]]
  $region65: #{tpu_custom_call.1} parent=0
    _
  %s7 = ssub.s32 1, %s5
  %s8 = scalar_select 0, %s7, %s5
  $region1: #{tpu_custom_call.1} parent=0
    #allocation3 [shape = 'u8[8192]{0}', space=vmem, size = 0x2000, scoped, tag = 'input window, operand 0']
    #allocation4 [shape = 's32[2]{0}', space=sflag, size = 0x8, scoped, tag = 'scoped memory for tpu_custom_call.1']
    #allocation5 [shape = 's32[2]{0}', space=sflag, size = 0x8, scoped, tag = 'scoped memory for tpu_custom_call.1']
    #allocation6 [shape = 'u8[8192]{0}', space=vmem, size = 0x2000, scoped, tag = 'input window, operand 1']
    #allocation7 [shape = 's32[2]{0}', space=sflag, size = 0x8, scoped, tag = 'scoped memory for tpu_custom_call.1']
    #allocation8 [shape = 'u8[8192]{0}', space=vmem, size = 0x2000, scoped, tag = 'input window, operand 2, single buffered']
    #allocation9 [shape = 'u8[16384]{0}', space=vmem, size = 0x4000, scoped, tag = 'output window, operand 0']
    %9 = vsyncpa [#allocation4], 0
    %s10 = scalar_lea.sflag [#allocation4], 1
    %11 = vsyncpa %s10, 0
    %12 = vsyncpa [#allocation7], 0
    %s13 = scalar_lea.sflag [#allocation7], 1
    %14 = vsyncpa %s13, 0
    %15 = vsyncpa [#allocation5], 0
    %s16 = scalar_lea.sflag [#allocation5], 1
    %17 = vsyncpa %s16, 0
    loop: start=0, step=1, limit=6
    $region2: #{tpu_custom_call.1} parent=1 // loop_pre_header
      _
    $region3: #{tpu_custom_call.1} parent=1 // loop_header
      %s19 = sphi 0, %s23
      %p20 = scmp.ge.s32.totalorder %s19, 6
      %s26 = sphi 0, %s38
      %s27 = sphi 0, %s34
      %s28 = sphi 0, %s26
      %s29 = sphi 0, %s27
      %s30 = sphi 0, %s28
      %s31 = sphi 0, %s29
      %s41 = sphi 0, %s43
      %s44 = sphi 0, %s41
      %s45 = sphi 0, %s44
      %s61 = sphi 0, %s45
      %s67 = sphi 0, %s69
      %s70 = sphi 0, %s67
      %s71 = sphi 0, %s70
      %s87 = sphi 0, %s71
      %s91 = sphi 0, %s91
      %s93 = sphi 0, %s91
      %s94 = sphi 0, %s93
      %s108 = sphi 0, %s94
      %s114 = sphi 0, %s116
      %s117 = sphi 0, %s114
      %s118 = sphi 0, %s117
      %s134 = sphi 0, %s118
      %s142 = sphi 0, %s144
      %s145 = sphi 0, %s142
      %s146 = sphi 0, %s145
      %s162 = sphi 0, %s146
    $region4: #{tpu_custom_call.1} parent=1 // loop_header_branch
      %22 = sbr.rel (%p20) target = $region8
    $region5: #{tpu_custom_call.1} parent=1 // loop_body
      %s24 = ssub.s32 %s19, 1
      %s25 = ssub.s32 %s19, 2
      %s32 = sadd.s32 1, %s27
      %p33 = scmp.ge.s32.totalorder %s32, 2
      %s34 = scalar_select %p33, 0, %s32
      %s35 = sadd.s32 1, %s26
      %s36 = scalar_select %p33, %s35, %s26
      %p37 = scmp.ge.s32.totalorder %s36, 2
      %s38 = scalar_select %p37, 0, %s36
      %s39 = ssub.s32 %s27, %s34
      %p40 = scmp.eq.s32.totalorder %s39, 0
      %s42 = sadd.s32 %s41, 1
      %s43 = scalar_select %p40, %s41, %s42
      %p46 = pneg %p40
      %p47 = scmp.eq.s32.totalorder %s19, 3
      %p48 = por %p46, %p47
      %p49 = scmp.ne.s32.totalorder %s41, %s44
      %p50 = scmp.eq.s32.totalorder %s19, 0
      %p51 = por %p49, %p50
      %p52 = scmp.ne.s32.totalorder %s41, %s44
      %p53 = scmp.eq.s32.totalorder %s24, 3
      %p54 = por %p52, %p53
      %p55 = scmp.ne.s32.totalorder %s44, %s45
      %p56 = scmp.eq.s32.totalorder %s24, 0
      %p57 = por %p55, %p56
      %p58 = scmp.ne.s32.totalorder %s44, %s45
      %p59 = scmp.eq.s32.totalorder %s25, 3
      %p60 = por %p58, %p59
      %p62 = scmp.ne.s32.totalorder %s45, %s61
      %p63 = scmp.eq.s32.totalorder %s25, 0
      %p64 = por %p62, %p63
      %s65 = ssub.s32 %s26, %s38
      %p66 = scmp.eq.s32.totalorder %s65, 0
      %s68 = sadd.s32 %s67, 1
      %s69 = scalar_select %p66, %s67, %s68
      %p72 = pneg %p66
      %p73 = scmp.eq.s32.totalorder %s19, 3
      %p74 = por %p72, %p73
      %p75 = scmp.ne.s32.totalorder %s67, %s70
      %p76 = scmp.eq.s32.totalorder %s19, 0
      %p77 = por %p75, %p76
      %p78 = scmp.ne.s32.totalorder %s67, %s70
      %p79 = scmp.eq.s32.totalorder %s24, 3
      %p80 = por %p78, %p79
      %p81 = scmp.ne.s32.totalorder %s70, %s71
      %p82 = scmp.eq.s32.totalorder %s24, 0
      %p83 = por %p81, %p82
      %p84 = scmp.ne.s32.totalorder %s70, %s71
      %p85 = scmp.eq.s32.totalorder %s25, 3
      %p86 = por %p84, %p85
      %p88 = scmp.ne.s32.totalorder %s71, %s87
      %p89 = scmp.eq.s32.totalorder %s25, 0
      %p90 = por %p88, %p89
      %s92 = sadd.s32 %s91, 1
      %p95 = scmp.eq.s32.totalorder %s19, 3
      %p96 = scmp.ne.s32.totalorder %s91, %s93
      %p97 = scmp.eq.s32.totalorder %s19, 0
      %p98 = por %p96, %p97
      %p99 = scmp.ne.s32.totalorder %s91, %s93
      %p100 = scmp.eq.s32.totalorder %s24, 3
      %p101 = por %p99, %p100
      %p102 = scmp.ne.s32.totalorder %s93, %s94
      %p103 = scmp.eq.s32.totalorder %s24, 0
      %p104 = por %p102, %p103
      %p105 = scmp.ne.s32.totalorder %s93, %s94
      %p106 = scmp.eq.s32.totalorder %s25, 3
      %p107 = por %p105, %p106
      %p109 = scmp.ne.s32.totalorder %s94, %s108
      %p110 = scmp.eq.s32.totalorder %s25, 0
      %p111 = por %p109, %p110
      %s112 = ssub.s32 %s26, %s38
      %p113 = scmp.eq.s32.totalorder %s112, 0
      %s115 = sadd.s32 %s114, 1
      %s116 = scalar_select %p113, %s114, %s115
      %p119 = pneg %p113
      %p120 = scmp.eq.s32.totalorder %s19, 3
      %p121 = por %p119, %p120
      %p122 = scmp.ne.s32.totalorder %s114, %s117
      %p123 = scmp.eq.s32.totalorder %s19, 0
      %p124 = por %p122, %p123
      %p125 = scmp.ne.s32.totalorder %s114, %s117
      %p126 = scmp.eq.s32.totalorder %s24, 3
      %p127 = por %p125, %p126
      %p128 = scmp.ne.s32.totalorder %s117, %s118
      %p129 = scmp.eq.s32.totalorder %s24, 0
      %p130 = por %p128, %p129
      %p131 = scmp.ne.s32.totalorder %s117, %s118
      %p132 = scmp.eq.s32.totalorder %s25, 3
      %p133 = por %p131, %p132
      %p135 = scmp.ne.s32.totalorder %s118, %s134
      %p136 = scmp.eq.s32.totalorder %s25, 0
      %p137 = por %p135, %p136
      %s138 = ssub.s32 %s27, %s34
      %s139 = ssub.s32 %s26, %s38
      %s140 = sor.u32 %s138, %s139
      %p141 = scmp.eq.s32.totalorder %s140, 0
      %s143 = sadd.s32 %s142, 1
      %s144 = scalar_select %p141, %s142, %s143
      %p147 = pneg %p141
      %p148 = scmp.eq.s32.totalorder %s19, 3
      %p149 = por %p147, %p148
      %p150 = scmp.ne.s32.totalorder %s142, %s145
      %p151 = scmp.eq.s32.totalorder %s19, 0
      %p152 = por %p150, %p151
      %p153 = scmp.ne.s32.totalorder %s142, %s145
      %p154 = scmp.eq.s32.totalorder %s24, 3
      %p155 = por %p153, %p154
      %p156 = scmp.ne.s32.totalorder %s145, %s146
      %p157 = scmp.eq.s32.totalorder %s24, 0
      %p158 = por %p156, %p157
      %p159 = scmp.ne.s32.totalorder %s145, %s146
      %p160 = scmp.eq.s32.totalorder %s25, 3
      %p161 = por %p159, %p160
      %p163 = scmp.ne.s32.totalorder %s146, %s162
      %p164 = scmp.eq.s32.totalorder %s25, 0
      %p165 = por %p163, %p164
      %p166 = scmp.le.s32.totalorder 1, %s19
      %p167 = scmp.lt.s32.totalorder %s19, 5
      %p168 = pnand %p166, %p167
      %p169 = pneg %p168
      // Predicated region
      $region9: #{tpu_custom_call.1} parent=5 // pred_check
        _
      $region10: #{tpu_custom_call.1} parent=5 // pred_check_branch
        %171 = sbr.rel (%p168) target = $region12
      $region11: #{tpu_custom_call.1} parent=5 // pred_region
        %s172 = ssub.s32 %s19, 1
        // Predicated region
        $region13: #{tpu_custom_call.1} parent=11 // pred_check
          %p173 = pneg %p104
        $region14: #{tpu_custom_call.1} parent=11 // pred_check_branch
          %175 = sbr.rel (%p173) target = $region16
        $region15: #{tpu_custom_call.1} parent=11 // pred_region
          %s177 = ssub.s32 256, 256
          %178 = vsyncadd [#allocation7], %s177
          %s180 = sshll.u32 [#allocation8], 4
          %s181 = int_to_ptr.vmem [resolvable:$true] %s180
          %183 = dma.hbm_to_vmem [thread:$0]  %s2, 256, %s181, [#allocation7]
        $region16: #{tpu_custom_call.1} parent=11 // pred_fallthru
          _
      $region12: #{tpu_custom_call.1} parent=5 // pred_fallthru
        _
      %p184 = scmp.lt.s32.totalorder %s19, 4
      // Predicated region
      $region17: #{tpu_custom_call.1} parent=5 // pred_check
        %p185 = pneg %p184
      $region18: #{tpu_custom_call.1} parent=5 // pred_check_branch
        %187 = sbr.rel (%p185) target = $region20
      $region19: #{tpu_custom_call.1} parent=5 // pred_region
        // Predicated region
        $region21: #{tpu_custom_call.1} parent=19 // pred_check
          %p188 = pneg %p51
        $region22: #{tpu_custom_call.1} parent=19 // pred_check_branch
          %190 = sbr.rel (%p188) target = $region24
        $region23: #{tpu_custom_call.1} parent=19 // pred_region
          %s191 = sand.u32 %s41, 1
          %s192 = scalar_lea.sflag [#allocation4], %s191
          %s193 = sand.u32 %s41, 1
          %s194 = smul.addr %s193, 8
          %s195 = scalar_lea.vmem [#allocation3], %s194
          %s197 = ssub.s32 128, 128
          %198 = vsyncadd %s192, %s197
          %s199 = smul.addr %s27, 128
          %s200 = scalar_lea.hbm %s0, %s199
          %s202 = sshll.u32 %s195, 4
          %s203 = int_to_ptr.vmem [resolvable:$true] %s202
          %205 = dma.hbm_to_vmem [thread:$0]  %s200, 128, %s203, %s192
        $region24: #{tpu_custom_call.1} parent=19 // pred_fallthru
          _
        // Predicated region
        $region25: #{tpu_custom_call.1} parent=19 // pred_check
          %p206 = pneg %p77
        $region26: #{tpu_custom_call.1} parent=19 // pred_check_branch
          %208 = sbr.rel (%p206) target = $region28
        $region27: #{tpu_custom_call.1} parent=19 // pred_region
          %s209 = sand.u32 %s19, 1
          %s210 = scalar_lea.sflag [#allocation7], %s209
          %s211 = sand.u32 %s67, 1
          %s212 = smul.addr %s211, 8
          %s213 = scalar_lea.vmem [#allocation6], %s212
          %s214 = smul.u32 2, %s26
          %s216 = ssub.s32 128, 128
          %217 = vsyncadd %s210, %s216
          %s218 = smul.addr %s214, 32
          %s219 = scalar_lea.hbm %s1, %s218
          %s220 = sshll.u32 %s213, 4
          %s221 = int_to_ptr.vmem [resolvable:$true] %s220
          %226 = dma.hbm_to_vmem [thread:$0]  %s219, 128, %s221, %s210, 128, 64, 4
        $region28: #{tpu_custom_call.1} parent=19 // pred_fallthru
          _
        // Predicated region
        $region29: #{tpu_custom_call.1} parent=19 // pred_check
          %p227 = pneg %p124
        $region30: #{tpu_custom_call.1} parent=19 // pred_check_branch
          %229 = sbr.rel (%p227) target = $region32
        $region31: #{tpu_custom_call.1} parent=19 // pred_region
          %s230 = smul.u32 2, %s26
          %p231 = scmp.lt.s32.totalorder %s230, 3
          %s232 = scalar_select %p231, %s230, 3
          %s233 = scalar_lea.vmem %s3, %s232
          %s234 = smul.u32 2, %s26
        $region32: #{tpu_custom_call.1} parent=19 // pred_fallthru
          _
      $region20: #{tpu_custom_call.1} parent=5 // pred_fallthru
        _
      %p235 = scmp.le.s32.totalorder 1, %s19
      %p236 = scmp.lt.s32.totalorder %s19, 5
      %p237 = pnand %p235, %p236
      %p238 = pneg %p237
      // Predicated region
      $region33: #{tpu_custom_call.1} parent=5 // pred_check
        _
      $region34: #{tpu_custom_call.1} parent=5 // pred_check_branch
        %240 = sbr.rel (%p237) target = $region36
      $region35: #{tpu_custom_call.1} parent=5 // pred_region
        %s241 = ssub.s32 %s19, 1
        %s242 = sand.u32 %s44, 1
        %s243 = scalar_lea.sflag [#allocation4], %s242
        %s244 = sand.u32 %s44, 1
        %s245 = smul.addr %s244, 8
        %s246 = scalar_lea.vmem [#allocation3], %s245
        // Predicated region
        $region37: #{tpu_custom_call.1} parent=35 // pred_check
          %p247 = pneg %p57
        $region38: #{tpu_custom_call.1} parent=35 // pred_check_branch
          %249 = sbr.rel (%p247) target = $region40
        $region39: #{tpu_custom_call.1} parent=35 // pred_region
          %250 = dma.done %s243, 128
        $region40: #{tpu_custom_call.1} parent=35 // pred_fallthru
          _
        %s251 = sand.u32 %s24, 1
        %s252 = scalar_lea.sflag [#allocation7], %s251
        %s253 = sand.u32 %s70, 1
        %s254 = smul.addr %s253, 8
        %s255 = scalar_lea.vmem [#allocation6], %s254
        // Predicated region
        $region41: #{tpu_custom_call.1} parent=35 // pred_check
          %p256 = pneg %p83
        $region42: #{tpu_custom_call.1} parent=35 // pred_check_branch
          %258 = sbr.rel (%p256) target = $region44
        $region43: #{tpu_custom_call.1} parent=35 // pred_region
          %259 = dma.done %s252, 128
        $region44: #{tpu_custom_call.1} parent=35 // pred_fallthru
          _
        // Predicated region
        $region45: #{tpu_custom_call.1} parent=35 // pred_check
          %p260 = pneg %p104
        $region46: #{tpu_custom_call.1} parent=35 // pred_check_branch
          %262 = sbr.rel (%p260) target = $region48
        $region47: #{tpu_custom_call.1} parent=35 // pred_region
          %263 = dma.done [#allocation7], 256
        $region48: #{tpu_custom_call.1} parent=35 // pred_fallthru
          _
        %s264 = sand.u32 %s44, 1
        %s265 = scalar_lea.sflag [#allocation4], %s264
        %s266 = sand.u32 %s44, 1
        %s267 = smul.addr %s266, 8
        %s268 = scalar_lea.vmem [#allocation3], %s267
        %p269 = pneg %p57
        %p270 = pneg %p54
        %s271 = sand.u32 %s24, 1
        %s272 = scalar_lea.sflag [#allocation7], %s271
        %s273 = sand.u32 %s70, 1
        %s274 = smul.addr %s273, 8
        %s275 = scalar_lea.vmem [#allocation6], %s274
        %p276 = pneg %p83
        %p277 = pneg %p80
        %p278 = pneg %p104
        %p279 = pneg %p101
        %s280 = smul.u32 2, %s28
        %p281 = scmp.lt.s32.totalorder %s280, 3
        %s282 = scalar_select %p281, %s280, 3
        %s283 = scalar_lea.vmem %s3, %s282
        %p284 = pneg %p130
        %p285 = pneg %p127
        %p286 = pneg %p158
        %p287 = pneg %p155
        %s288 = sand.u32 %s145, 1
        %s289 = scalar_lea.sflag [#allocation5], %s288
        %s290 = sand.u32 %s145, 1
        %s291 = smul.addr %s290, 16
        %s292 = scalar_lea.vmem [#allocation9], %s291
        %s293 = smul.u32 2, %s28
        %s294 = smul.u32 2, %s28
        %p295 = scmp.lt.s32.totalorder %s294, 3
        %s296 = scalar_select %p295, %s294, 3
        %s297 = scalar_lea.vmem %s3, %s296
        %s298 = smul.u32 2, %s28
        %s299 = smul.u32 2, %s28
        %p300 = scmp.eq.s32.totalorder %s29, 0
        // Predicated region
        $region49: #{tpu_custom_call.1} parent=35 // pred_check
          %p301 = pneg %p300
        $region50: #{tpu_custom_call.1} parent=35 // pred_check_branch
          %303 = sbr.rel (%p301) target = $region52
        $region51: #{tpu_custom_call.1} parent=35 // pred_region
          %v304 = vld [vmem:[%s255] sm:$0xf]
          %v305 = vld [vmem:[%s255 + $0x4] sm:$0xf]
          %v306 = vunpack.c.0.s8 %v304
          %v307 = vunpack.c.1.s8 %v304
          %v308 = vunpack.c.0.s8 %v305
          %v309 = vunpack.c.1.s8 %v305
          %v310 = vand.u32 %v306, 255
          %v311 = vand.u32 %v307, 255
          %v312 = vand.u32 %v308, 255
          %v313 = vand.u32 %v309, 255
          %v314 = vld [vmem:[#allocation8] sm:$0xff]
          %v315 = vld [vmem:[#allocation8 + $0x8] sm:$0xff]
          %v316 = vlaneseq
          %v317 = vshrl.u32 %v316, 7
          %v318 = vadd.s32 %v317, 8
          %v319 = vadd.s32 %v317, 16
          %v320 = vadd.s32 %v317, 24
          %v321 = vadd.s32 %v317, 32
          %v322 = vadd.s32 %v317, 40
          %v323 = vadd.s32 %v317, 48
          %v324 = vadd.s32 %v317, 56
          %v325 = vadd.s32 %v317, 64
          %v326 = vadd.s32 %v317, 72
          %v327 = vadd.s32 %v317, 80
          %v328 = vadd.s32 %v317, 88
          %v329 = vadd.s32 %v317, 96
          %v330 = vadd.s32 %v317, 104
          %v331 = vadd.s32 %v317, 112
          %v332 = vadd.s32 %v317, 120
          %v333 = vadd.s32 %v317, 128
          %v334 = vadd.s32 %v317, 136
          %v335 = vadd.s32 %v317, 144
          %v336 = vadd.s32 %v317, 152
          %v337 = vadd.s32 %v317, 160
          %v338 = vadd.s32 %v317, 168
          %v339 = vadd.s32 %v317, 176
          %v340 = vadd.s32 %v317, 184
          %v341 = vadd.s32 %v317, 192
          %v342 = vadd.s32 %v317, 200
          %v343 = vadd.s32 %v317, 208
          %v344 = vadd.s32 %v317, 216
          %v345 = vadd.s32 %v317, 224
          %v346 = vadd.s32 %v317, 232
          %v347 = vadd.s32 %v317, 240
          %v348 = vadd.s32 %v317, 248
          %v349 = vlaneseq
          %v350 = vshrl.u32 %v349, 7
          %v351 = vsub.s32 0, %v350
          %v352 = vrot.slane %v310, %v351
          %v353 = vlaneseq
          %v354 = vshrl.u32 %v353, 7
          %v355 = vsub.s32 0, %v354
          %v356 = vrot.slane %v311, %v355
          %vm357 = vcmp.eq.s32.totalorder %v317, %v352
          %vm358 = vcmp.eq.s32.totalorder %v317, %v356
          %vm359 = vcmp.eq.s32.totalorder %v318, %v352
          %vm360 = vcmp.eq.s32.totalorder %v318, %v356
          %vm361 = vcmp.eq.s32.totalorder %v319, %v352
          %vm362 = vcmp.eq.s32.totalorder %v319, %v356
          %vm363 = vcmp.eq.s32.totalorder %v320, %v352
          %vm364 = vcmp.eq.s32.totalorder %v320, %v356
          %vm365 = vcmp.eq.s32.totalorder %v321, %v352
          %vm366 = vcmp.eq.s32.totalorder %v321, %v356
          %vm367 = vcmp.eq.s32.totalorder %v322, %v352
          %vm368 = vcmp.eq.s32.totalorder %v322, %v356
          %vm369 = vcmp.eq.s32.totalorder %v323, %v352
          %vm370 = vcmp.eq.s32.totalorder %v323, %v356
          %vm371 = vcmp.eq.s32.totalorder %v324, %v352
          %vm372 = vcmp.eq.s32.totalorder %v324, %v356
          %vm373 = vcmp.eq.s32.totalorder %v325, %v352
          %vm374 = vcmp.eq.s32.totalorder %v325, %v356
          %vm375 = vcmp.eq.s32.totalorder %v326, %v352
          %vm376 = vcmp.eq.s32.totalorder %v326, %v356
          %vm377 = vcmp.eq.s32.totalorder %v327, %v352
          %vm378 = vcmp.eq.s32.totalorder %v327, %v356
          %vm379 = vcmp.eq.s32.totalorder %v328, %v352
          %vm380 = vcmp.eq.s32.totalorder %v328, %v356
          %vm381 = vcmp.eq.s32.totalorder %v329, %v352
          %vm382 = vcmp.eq.s32.totalorder %v329, %v356
          %vm383 = vcmp.eq.s32.totalorder %v330, %v352
          %vm384 = vcmp.eq.s32.totalorder %v330, %v356
          %vm385 = vcmp.eq.s32.totalorder %v331, %v352
          %vm386 = vcmp.eq.s32.totalorder %v331, %v356
          %vm387 = vcmp.eq.s32.totalorder %v332, %v352
          %vm388 = vcmp.eq.s32.totalorder %v332, %v356
          %vm389 = vcmp.eq.s32.totalorder %v333, %v352
          %vm390 = vcmp.eq.s32.totalorder %v333, %v356
          %vm391 = vcmp.eq.s32.totalorder %v334, %v352
          %vm392 = vcmp.eq.s32.totalorder %v334, %v356
          %vm393 = vcmp.eq.s32.totalorder %v335, %v352
          %vm394 = vcmp.eq.s32.totalorder %v335, %v356
          %vm395 = vcmp.eq.s32.totalorder %v336, %v352
          %vm396 = vcmp.eq.s32.totalorder %v336, %v356
          %vm397 = vcmp.eq.s32.totalorder %v337, %v352
          %vm398 = vcmp.eq.s32.totalorder %v337, %v356
          %vm399 = vcmp.eq.s32.totalorder %v338, %v352
          %vm400 = vcmp.eq.s32.totalorder %v338, %v356
          %vm401 = vcmp.eq.s32.totalorder %v339, %v352
          %vm402 = vcmp.eq.s32.totalorder %v339, %v356
          %vm403 = vcmp.eq.s32.totalorder %v340, %v352
          %vm404 = vcmp.eq.s32.totalorder %v340, %v356
          %vm405 = vcmp.eq.s32.totalorder %v341, %v352
          %vm406 = vcmp.eq.s32.totalorder %v341, %v356
          %vm407 = vcmp.eq.s32.totalorder %v342, %v352
          %vm408 = vcmp.eq.s32.totalorder %v342, %v356
          %vm409 = vcmp.eq.s32.totalorder %v343, %v352
          %vm410 = vcmp.eq.s32.totalorder %v343, %v356
          %vm411 = vcmp.eq.s32.totalorder %v344, %v352
          %vm412 = vcmp.eq.s32.totalorder %v344, %v356
          %vm413 = vcmp.eq.s32.totalorder %v345, %v352
          %vm414 = vcmp.eq.s32.totalorder %v345, %v356
          %vm415 = vcmp.eq.s32.totalorder %v346, %v352
          %vm416 = vcmp.eq.s32.totalorder %v346, %v356
          %vm417 = vcmp.eq.s32.totalorder %v347, %v352
          %vm418 = vcmp.eq.s32.totalorder %v347, %v356
          %vm419 = vcmp.eq.s32.totalorder %v348, %v352
          %vm420 = vcmp.eq.s32.totalorder %v348, %v356
          %v421 = vsel %vm357, 1, 0
          %v422 = vsel %vm358, 1, 0
          %v423 = vsel %vm359, 1, 0
          %v424 = vsel %vm360, 1, 0
          %v425 = vsel %vm361, 1, 0
          %v426 = vsel %vm362, 1, 0
          %v427 = vsel %vm363, 1, 0
          %v428 = vsel %vm364, 1, 0
          %v429 = vsel %vm365, 1, 0
          %v430 = vsel %vm366, 1, 0
          %v431 = vsel %vm367, 1, 0
          %v432 = vsel %vm368, 1, 0
          %v433 = vsel %vm369, 1, 0
          %v434 = vsel %vm370, 1, 0
          %v435 = vsel %vm371, 1, 0
          %v436 = vsel %vm372, 1, 0
          %v437 = vsel %vm373, 1, 0
          %v438 = vsel %vm374, 1, 0
          %v439 = vsel %vm375, 1, 0
          %v440 = vsel %vm376, 1, 0
          %v441 = vsel %vm377, 1, 0
          %v442 = vsel %vm378, 1, 0
          %v443 = vsel %vm379, 1, 0
          %v444 = vsel %vm380, 1, 0
          %v445 = vsel %vm381, 1, 0
          %v446 = vsel %vm382, 1, 0
          %v447 = vsel %vm383, 1, 0
          %v448 = vsel %vm384, 1, 0
          %v449 = vsel %vm385, 1, 0
          %v450 = vsel %vm386, 1, 0
          %v451 = vsel %vm387, 1, 0
          %v452 = vsel %vm388, 1, 0
          %v453 = vsel %vm389, 1, 0
          %v454 = vsel %vm390, 1, 0
          %v455 = vsel %vm391, 1, 0
          %v456 = vsel %vm392, 1, 0
          %v457 = vsel %vm393, 1, 0
          %v458 = vsel %vm394, 1, 0
          %v459 = vsel %vm395, 1, 0
          %v460 = vsel %vm396, 1, 0
          %v461 = vsel %vm397, 1, 0
          %v462 = vsel %vm398, 1, 0
          %v463 = vsel %vm399, 1, 0
          %v464 = vsel %vm400, 1, 0
          %v465 = vsel %vm401, 1, 0
          %v466 = vsel %vm402, 1, 0
          %v467 = vsel %vm403, 1, 0
          %v468 = vsel %vm404, 1, 0
          %v469 = vsel %vm405, 1, 0
          %v470 = vsel %vm406, 1, 0
          %v471 = vsel %vm407, 1, 0
          %v472 = vsel %vm408, 1, 0
          %v473 = vsel %vm409, 1, 0
          %v474 = vsel %vm410, 1, 0
          %v475 = vsel %vm411, 1, 0
          %v476 = vsel %vm412, 1, 0
          %v477 = vsel %vm413, 1, 0
          %v478 = vsel %vm414, 1, 0
          %v479 = vsel %vm415, 1, 0
          %v480 = vsel %vm416, 1, 0
          %v481 = vsel %vm417, 1, 0
          %v482 = vsel %vm418, 1, 0
          %v483 = vsel %vm419, 1, 0
          %v484 = vsel %vm420, 1, 0
          %v485 = vcvt.s32.f32 %v421
          %v486 = vcvt.s32.f32 %v422
          %v487 = vcvt.s32.f32 %v423
          %v488 = vcvt.s32.f32 %v424
          %v489 = vcvt.s32.f32 %v425
          %v490 = vcvt.s32.f32 %v426
          %v491 = vcvt.s32.f32 %v427
          %v492 = vcvt.s32.f32 %v428
          %v493 = vcvt.s32.f32 %v429
          %v494 = vcvt.s32.f32 %v430
          %v495 = vcvt.s32.f32 %v431
          %v496 = vcvt.s32.f32 %v432
          %v497 = vcvt.s32.f32 %v433
          %v498 = vcvt.s32.f32 %v434
          %v499 = vcvt.s32.f32 %v435
          %v500 = vcvt.s32.f32 %v436
          %v501 = vcvt.s32.f32 %v437
          %v502 = vcvt.s32.f32 %v438
          %v503 = vcvt.s32.f32 %v439
          %v504 = vcvt.s32.f32 %v440
          %v505 = vcvt.s32.f32 %v441
          %v506 = vcvt.s32.f32 %v442
          %v507 = vcvt.s32.f32 %v443
          %v508 = vcvt.s32.f32 %v444
          %v509 = vcvt.s32.f32 %v445
          %v510 = vcvt.s32.f32 %v446
          %v511 = vcvt.s32.f32 %v447
          %v512 = vcvt.s32.f32 %v448
          %v513 = vcvt.s32.f32 %v449
          %v514 = vcvt.s32.f32 %v450
          %v515 = vcvt.s32.f32 %v451
          %v516 = vcvt.s32.f32 %v452
          %v517 = vcvt.s32.f32 %v453
          %v518 = vcvt.s32.f32 %v454
          %v519 = vcvt.s32.f32 %v455
          %v520 = vcvt.s32.f32 %v456
          %v521 = vcvt.s32.f32 %v457
          %v522 = vcvt.s32.f32 %v458
          %v523 = vcvt.s32.f32 %v459
          %v524 = vcvt.s32.f32 %v460
          %v525 = vcvt.s32.f32 %v461
          %v526 = vcvt.s32.f32 %v462
          %v527 = vcvt.s32.f32 %v463
          %v528 = vcvt.s32.f32 %v464
          %v529 = vcvt.s32.f32 %v465
          %v530 = vcvt.s32.f32 %v466
          %v531 = vcvt.s32.f32 %v467
          %v532 = vcvt.s32.f32 %v468
          %v533 = vcvt.s32.f32 %v469
          %v534 = vcvt.s32.f32 %v470
          %v535 = vcvt.s32.f32 %v471
          %v536 = vcvt.s32.f32 %v472
          %v537 = vcvt.s32.f32 %v473
          %v538 = vcvt.s32.f32 %v474
          %v539 = vcvt.s32.f32 %v475
          %v540 = vcvt.s32.f32 %v476
          %v541 = vcvt.s32.f32 %v477
          %v542 = vcvt.s32.f32 %v478
          %v543 = vcvt.s32.f32 %v479
          %v544 = vcvt.s32.f32 %v480
          %v545 = vcvt.s32.f32 %v481
          %v546 = vcvt.s32.f32 %v482
          %v547 = vcvt.s32.f32 %v483
          %v548 = vcvt.s32.f32 %v484
          %549 = vmatprep.subr.mxu0 %v516
          %550 = vmatpush1.msra.mxu0 %v515
          %551 = vmatprep.subr.mxu0 %v514
          %552 = vmatpush1.msra.mxu0 %v513
          %553 = vmatprep.subr.mxu0 %v512
          %554 = vmatpush1.msra.mxu0 %v511
          %555 = vmatprep.subr.mxu0 %v510
          %556 = vmatpush1.msra.mxu0 %v509
          %557 = vmatprep.subr.mxu0 %v508
          %558 = vmatpush1.msra.mxu0 %v507
          %559 = vmatprep.subr.mxu0 %v506
          %560 = vmatpush1.msra.mxu0 %v505
          %561 = vmatprep.subr.mxu0 %v504
          %562 = vmatpush1.msra.mxu0 %v503
          %563 = vmatprep.subr.mxu0 %v502
          %564 = vmatpush1.msra.mxu0 %v501
          %565 = vmatprep.subr.mxu0 %v500
          %566 = vmatpush1.msra.mxu0 %v499
          %567 = vmatprep.subr.mxu0 %v498
          %568 = vmatpush1.msra.mxu0 %v497
          %569 = vmatprep.subr.mxu0 %v496
          %570 = vmatpush1.msra.mxu0 %v495
          %571 = vmatprep.subr.mxu0 %v494
          %572 = vmatpush1.msra.mxu0 %v493
          %573 = vmatprep.subr.mxu0 %v492
          %574 = vmatpush1.msra.mxu0 %v491
          %575 = vmatprep.subr.mxu0 %v490
          %576 = vmatpush1.msra.mxu0 %v489
          %577 = vmatprep.subr.mxu0 %v488
          %578 = vmatpush1.msra.mxu0 %v487
          %579 = vmatprep.subr.mxu0 %v486
          %580 = vmatpush1.msra.mxu0 %v485
          %581 = vmatprep.subr.mxu0 %v548
          %582 = vmatpush2.msra.mxu0 %v547
          %583 = vmatprep.subr.mxu0 %v546
          %584 = vmatpush2.msra.mxu0 %v545
          %585 = vmatprep.subr.mxu0 %v544
          %586 = vmatpush2.msra.mxu0 %v543
          %587 = vmatprep.subr.mxu0 %v542
          %588 = vmatpush2.msra.mxu0 %v541
          %589 = vmatprep.subr.mxu0 %v540
          %590 = vmatpush2.msra.mxu0 %v539
          %591 = vmatprep.subr.mxu0 %v538
          %592 = vmatpush2.msra.mxu0 %v537
          %593 = vmatprep.subr.mxu0 %v536
          %594 = vmatpush2.msra.mxu0 %v535
          %595 = vmatprep.subr.mxu0 %v534
          %596 = vmatpush2.msra.mxu0 %v533
          %597 = vmatprep.subr.mxu0 %v532
          %598 = vmatpush2.msra.mxu0 %v531
          %599 = vmatprep.subr.mxu0 %v530
          %600 = vmatpush2.msra.mxu0 %v529
          %601 = vmatprep.subr.mxu0 %v528
          %602 = vmatpush2.msra.mxu0 %v527
          %603 = vmatprep.subr.mxu0 %v526
          %604 = vmatpush2.msra.mxu0 %v525
          %605 = vmatprep.subr.mxu0 %v524
          %606 = vmatpush2.msra.mxu0 %v523
          %607 = vmatprep.subr.mxu0 %v522
          %608 = vmatpush2.msra.mxu0 %v521
          %609 = vmatprep.subr.mxu0 %v520
          %610 = vmatpush2.msra.mxu0 %v519
          %611 = vmatprep.subr.mxu0 %v518
          %612 = vmatpush2.msra.mxu0 %v517
          %613 = vmatprep.mubr.f32.mxu0 %v315
          %614 = vmatmul.mubr.f32.gmra.mxu0 %v314
          %v615 = vpop.f32.mrf.mxu0
          %v616 = vadd.f32 0.0, %v615
          %v617 = vpop.f32.mrf.mxu0
          %v618 = vadd.f32 0.0, %v617
          %619 = vdwg.mxu0
          %620 = vst [vmem:[#allocation2] sm:$0xff] %v616
          %621 = vst [vmem:[#allocation2 + $0x8] sm:$0xff] %v618
          %v622 = vlaneseq
          %v623 = vshrl.u32 %v622, 7
          %v624 = vsub.s32 1, %v623
          %v625 = vrot.slane %v310, %v624
          %v626 = vlaneseq
          %v627 = vshrl.u32 %v626, 7
          %v628 = vsub.s32 1, %v627
          %v629 = vrot.slane %v311, %v628
          %vm630 = vcmp.eq.s32.totalorder %v317, %v625
          %vm631 = vcmp.eq.s32.totalorder %v317, %v629
          %vm632 = vcmp.eq.s32.totalorder %v318, %v625
          %vm633 = vcmp.eq.s32.totalorder %v318, %v629
          %vm634 = vcmp.eq.s32.totalorder %v319, %v625
          %vm635 = vcmp.eq.s32.totalorder %v319, %v629
          %vm636 = vcmp.eq.s32.totalorder %v320, %v625
          %vm637 = vcmp.eq.s32.totalorder %v320, %v629
          %vm638 = vcmp.eq.s32.totalorder %v321, %v625
          %vm639 = vcmp.eq.s32.totalorder %v321, %v629
          %vm640 = vcmp.eq.s32.totalorder %v322, %v625
          %vm641 = vcmp.eq.s32.totalorder %v322, %v629
          %vm642 = vcmp.eq.s32.totalorder %v323, %v625
          %vm643 = vcmp.eq.s32.totalorder %v323, %v629
          %vm644 = vcmp.eq.s32.totalorder %v324, %v625
          %vm645 = vcmp.eq.s32.totalorder %v324, %v629
          %vm646 = vcmp.eq.s32.totalorder %v325, %v625
          %vm647 = vcmp.eq.s32.totalorder %v325, %v629
          %vm648 = vcmp.eq.s32.totalorder %v326, %v625
          %vm649 = vcmp.eq.s32.totalorder %v326, %v629
          %vm650 = vcmp.eq.s32.totalorder %v327, %v625
          %vm651 = vcmp.eq.s32.totalorder %v327, %v629
          %vm652 = vcmp.eq.s32.totalorder %v328, %v625
          %vm653 = vcmp.eq.s32.totalorder %v328, %v629
          %vm654 = vcmp.eq.s32.totalorder %v329, %v625
          %vm655 = vcmp.eq.s32.totalorder %v329, %v629
          %vm656 = vcmp.eq.s32.totalorder %v330, %v625
          %vm657 = vcmp.eq.s32.totalorder %v330, %v629
          %vm658 = vcmp.eq.s32.totalorder %v331, %v625
          %vm659 = vcmp.eq.s32.totalorder %v331, %v629
          %vm660 = vcmp.eq.s32.totalorder %v332, %v625
          %vm661 = vcmp.eq.s32.totalorder %v332, %v629
          %vm662 = vcmp.eq.s32.totalorder %v333, %v625
          %vm663 = vcmp.eq.s32.totalorder %v333, %v629
          %vm664 = vcmp.eq.s32.totalorder %v334, %v625
          %vm665 = vcmp.eq.s32.totalorder %v334, %v629
          %vm666 = vcmp.eq.s32.totalorder %v335, %v625
          %vm667 = vcmp.eq.s32.totalorder %v335, %v629
          %vm668 = vcmp.eq.s32.totalorder %v336, %v625
          %vm669 = vcmp.eq.s32.totalorder %v336, %v629
          %vm670 = vcmp.eq.s32.totalorder %v337, %v625
          %vm671 = vcmp.eq.s32.totalorder %v337, %v629
          %vm672 = vcmp.eq.s32.totalorder %v338, %v625
          %vm673 = vcmp.eq.s32.totalorder %v338, %v629
          %vm674 = vcmp.eq.s32.totalorder %v339, %v625
          %vm675 = vcmp.eq.s32.totalorder %v339, %v629
          %vm676 = vcmp.eq.s32.totalorder %v340, %v625
          %vm677 = vcmp.eq.s32.totalorder %v340, %v629
          %vm678 = vcmp.eq.s32.totalorder %v341, %v625
          %vm679 = vcmp.eq.s32.totalorder %v341, %v629
          %vm680 = vcmp.eq.s32.totalorder %v342, %v625
          %vm681 = vcmp.eq.s32.totalorder %v342, %v629
          %vm682 = vcmp.eq.s32.totalorder %v343, %v625
          %vm683 = vcmp.eq.s32.totalorder %v343, %v629
          %vm684 = vcmp.eq.s32.totalorder %v344, %v625
          %vm685 = vcmp.eq.s32.totalorder %v344, %v629
          %vm686 = vcmp.eq.s32.totalorder %v345, %v625
          %vm687 = vcmp.eq.s32.totalorder %v345, %v629
          %vm688 = vcmp.eq.s32.totalorder %v346, %v625
          %vm689 = vcmp.eq.s32.totalorder %v346, %v629
          %vm690 = vcmp.eq.s32.totalorder %v347, %v625
          %vm691 = vcmp.eq.s32.totalorder %v347, %v629
          %vm692 = vcmp.eq.s32.totalorder %v348, %v625
          %vm693 = vcmp.eq.s32.totalorder %v348, %v629
          %v694 = vsel %vm630, 1, 0
          %v695 = vsel %vm631, 1, 0
          %v696 = vsel %vm632, 1, 0
          %v697 = vsel %vm633, 1, 0
          %v698 = vsel %vm634, 1, 0
          %v699 = vsel %vm635, 1, 0
          %v700 = vsel %vm636, 1, 0
          %v701 = vsel %vm637, 1, 0
          %v702 = vsel %vm638, 1, 0
          %v703 = vsel %vm639, 1, 0
          %v704 = vsel %vm640, 1, 0
          %v705 = vsel %vm641, 1, 0
          %v706 = vsel %vm642, 1, 0
          %v707 = vsel %vm643, 1, 0
          %v708 = vsel %vm644, 1, 0
          %v709 = vsel %vm645, 1, 0
          %v710 = vsel %vm646, 1, 0
          %v711 = vsel %vm647, 1, 0
          %v712 = vsel %vm648, 1, 0
          %v713 = vsel %vm649, 1, 0
          %v714 = vsel %vm650, 1, 0
          %v715 = vsel %vm651, 1, 0
          %v716 = vsel %vm652, 1, 0
          %v717 = vsel %vm653, 1, 0
          %v718 = vsel %vm654, 1, 0
          %v719 = vsel %vm655, 1, 0
          %v720 = vsel %vm656, 1, 0
          %v721 = vsel %vm657, 1, 0
          %v722 = vsel %vm658, 1, 0
          %v723 = vsel %vm659, 1, 0
          %v724 = vsel %vm660, 1, 0
          %v725 = vsel %vm661, 1, 0
          %v726 = vsel %vm662, 1, 0
          %v727 = vsel %vm663, 1, 0
          %v728 = vsel %vm664, 1, 0
          %v729 = vsel %vm665, 1, 0
          %v730 = vsel %vm666, 1, 0
          %v731 = vsel %vm667, 1, 0
          %v732 = vsel %vm668, 1, 0
          %v733 = vsel %vm669, 1, 0
          %v734 = vsel %vm670, 1, 0
          %v735 = vsel %vm671, 1, 0
          %v736 = vsel %vm672, 1, 0
          %v737 = vsel %vm673, 1, 0
          %v738 = vsel %vm674, 1, 0
          %v739 = vsel %vm675, 1, 0
          %v740 = vsel %vm676, 1, 0
          %v741 = vsel %vm677, 1, 0
          %v742 = vsel %vm678, 1, 0
          %v743 = vsel %vm679, 1, 0
          %v744 = vsel %vm680, 1, 0
          %v745 = vsel %vm681, 1, 0
          %v746 = vsel %vm682, 1, 0
          %v747 = vsel %vm683, 1, 0
          %v748 = vsel %vm684, 1, 0
          %v749 = vsel %vm685, 1, 0
          %v750 = vsel %vm686, 1, 0
          %v751 = vsel %vm687, 1, 0
          %v752 = vsel %vm688, 1, 0
          %v753 = vsel %vm689, 1, 0
          %v754 = vsel %vm690, 1, 0
          %v755 = vsel %vm691, 1, 0
          %v756 = vsel %vm692, 1, 0
          %v757 = vsel %vm693, 1, 0
          %v758 = vcvt.s32.f32 %v694
          %v759 = vcvt.s32.f32 %v695
          %v760 = vcvt.s32.f32 %v696
          %v761 = vcvt.s32.f32 %v697
          %v762 = vcvt.s32.f32 %v698
          %v763 = vcvt.s32.f32 %v699
          %v764 = vcvt.s32.f32 %v700
          %v765 = vcvt.s32.f32 %v701
          %v766 = vcvt.s32.f32 %v702
          %v767 = vcvt.s32.f32 %v703
          %v768 = vcvt.s32.f32 %v704
          %v769 = vcvt.s32.f32 %v705
          %v770 = vcvt.s32.f32 %v706
          %v771 = vcvt.s32.f32 %v707
          %v772 = vcvt.s32.f32 %v708
          %v773 = vcvt.s32.f32 %v709
          %v774 = vcvt.s32.f32 %v710
          %v775 = vcvt.s32.f32 %v711
          %v776 = vcvt.s32.f32 %v712
          %v777 = vcvt.s32.f32 %v713
          %v778 = vcvt.s32.f32 %v714
          %v779 = vcvt.s32.f32 %v715
          %v780 = vcvt.s32.f32 %v716
          %v781 = vcvt.s32.f32 %v717
          %v782 = vcvt.s32.f32 %v718
          %v783 = vcvt.s32.f32 %v719
          %v784 = vcvt.s32.f32 %v720
          %v785 = vcvt.s32.f32 %v721
          %v786 = vcvt.s32.f32 %v722
          %v787 = vcvt.s32.f32 %v723
          %v788 = vcvt.s32.f32 %v724
          %v789 = vcvt.s32.f32 %v725
          %v790 = vcvt.s32.f32 %v726
          %v791 = vcvt.s32.f32 %v727
          %v792 = vcvt.s32.f32 %v728
          %v793 = vcvt.s32.f32 %v729
          %v794 = vcvt.s32.f32 %v730
          %v795 = vcvt.s32.f32 %v731
          %v796 = vcvt.s32.f32 %v732
          %v797 = vcvt.s32.f32 %v733
          %v798 = vcvt.s32.f32 %v734
          %v799 = vcvt.s32.f32 %v735
          %v800 = vcvt.s32.f32 %v736
          %v801 = vcvt.s32.f32 %v737
          %v802 = vcvt.s32.f32 %v738
          %v803 = vcvt.s32.f32 %v739
          %v804 = vcvt.s32.f32 %v740
          %v805 = vcvt.s32.f32 %v741
          %v806 = vcvt.s32.f32 %v742
          %v807 = vcvt.s32.f32 %v743
          %v808 = vcvt.s32.f32 %v744
          %v809 = vcvt.s32.f32 %v745
          %v810 = vcvt.s32.f32 %v746
          %v811 = vcvt.s32.f32 %v747
          %v812 = vcvt.s32.f32 %v748
          %v813 = vcvt.s32.f32 %v749
          %v814 = vcvt.s32.f32 %v750
          %v815 = vcvt.s32.f32 %v751
          %v816 = vcvt.s32.f32 %v752
          %v817 = vcvt.s32.f32 %v753
          %v818 = vcvt.s32.f32 %v754
          %v819 = vcvt.s32.f32 %v755
          %v820 = vcvt.s32.f32 %v756
          %v821 = vcvt.s32.f32 %v757
          %822 = vmatprep.subr.mxu0 %v789
          %823 = vmatpush1.msra.mxu0 %v788
          %824 = vmatprep.subr.mxu0 %v787
          %825 = vmatpush1.msra.mxu0 %v786
          %826 = vmatprep.subr.mxu0 %v785
          %827 = vmatpush1.msra.mxu0 %v784
          %828 = vmatprep.subr.mxu0 %v783
          %829 = vmatpush1.msra.mxu0 %v782
          %830 = vmatprep.subr.mxu0 %v781
          %831 = vmatpush1.msra.mxu0 %v780
          %832 = vmatprep.subr.mxu0 %v779
          %833 = vmatpush1.msra.mxu0 %v778
          %834 = vmatprep.subr.mxu0 %v777
          %835 = vmatpush1.msra.mxu0 %v776
          %836 = vmatprep.subr.mxu0 %v775
          %837 = vmatpush1.msra.mxu0 %v774
          %838 = vmatprep.subr.mxu0 %v773
          %839 = vmatpush1.msra.mxu0 %v772
          %840 = vmatprep.subr.mxu0 %v771
          %841 = vmatpush1.msra.mxu0 %v770
          %842 = vmatprep.subr.mxu0 %v769
          %843 = vmatpush1.msra.mxu0 %v768
          %844 = vmatprep.subr.mxu0 %v767
          %845 = vmatpush1.msra.mxu0 %v766
          %846 = vmatprep.subr.mxu0 %v765
          %847 = vmatpush1.msra.mxu0 %v764
          %848 = vmatprep.subr.mxu0 %v763
          %849 = vmatpush1.msra.mxu0 %v762
          %850 = vmatprep.subr.mxu0 %v761
          %851 = vmatpush1.msra.mxu0 %v760
          %852 = vmatprep.subr.mxu0 %v759
          %853 = vmatpush1.msra.mxu0 %v758
          %854 = vmatprep.subr.mxu0 %v821
          %855 = vmatpush2.msra.mxu0 %v820
          %856 = vmatprep.subr.mxu0 %v819
          %857 = vmatpush2.msra.mxu0 %v818
          %858 = vmatprep.subr.mxu0 %v817
          %859 = vmatpush2.msra.mxu0 %v816
          %860 = vmatprep.subr.mxu0 %v815
          %861 = vmatpush2.msra.mxu0 %v814
          %862 = vmatprep.subr.mxu0 %v813
          %863 = vmatpush2.msra.mxu0 %v812
          %864 = vmatprep.subr.mxu0 %v811
          %865 = vmatpush2.msra.mxu0 %v810
          %866 = vmatprep.subr.mxu0 %v809
          %867 = vmatpush2.msra.mxu0 %v808
          %868 = vmatprep.subr.mxu0 %v807
          %869 = vmatpush2.msra.mxu0 %v806
          %870 = vmatprep.subr.mxu0 %v805
          %871 = vmatpush2.msra.mxu0 %v804
          %872 = vmatprep.subr.mxu0 %v803
          %873 = vmatpush2.msra.mxu0 %v802
          %874 = vmatprep.subr.mxu0 %v801
          %875 = vmatpush2.msra.mxu0 %v800
          %876 = vmatprep.subr.mxu0 %v799
          %877 = vmatpush2.msra.mxu0 %v798
          %878 = vmatprep.subr.mxu0 %v797
          %879 = vmatpush2.msra.mxu0 %v796
          %880 = vmatprep.subr.mxu0 %v795
          %881 = vmatpush2.msra.mxu0 %v794
          %882 = vmatprep.subr.mxu0 %v793
          %883 = vmatpush2.msra.mxu0 %v792
          %884 = vmatprep.subr.mxu0 %v791
          %885 = vmatpush2.msra.mxu0 %v790
          %886 = vmatprep.mubr.f32.mxu0 %v315
          %887 = vmatmul.mubr.f32.gmra.mxu0 %v314
          %v888 = vpop.f32.mrf.mxu0
          %v889 = vadd.f32 0.0, %v888
          %v890 = vpop.f32.mrf.mxu0
          %v891 = vadd.f32 0.0, %v890
          %892 = vdwg.mxu0
          %893 = vst [vmem:[#allocation2 + $0x10] sm:$0xff] %v889
          %894 = vst [vmem:[#allocation2 + $0x18] sm:$0xff] %v891
          %v895 = vlaneseq
          %v896 = vshrl.u32 %v895, 7
          %v897 = vsub.s32 2, %v896
          %v898 = vrot.slane %v310, %v897
          %v899 = vlaneseq
          %v900 = vshrl.u32 %v899, 7
          %v901 = vsub.s32 2, %v900
          %v902 = vrot.slane %v311, %v901
          %vm903 = vcmp.eq.s32.totalorder %v317, %v898
          %vm904 = vcmp.eq.s32.totalorder %v317, %v902
          %vm905 = vcmp.eq.s32.totalorder %v318, %v898
          %vm906 = vcmp.eq.s32.totalorder %v318, %v902
          %vm907 = vcmp.eq.s32.totalorder %v319, %v898
          %vm908 = vcmp.eq.s32.totalorder %v319, %v902
          %vm909 = vcmp.eq.s32.totalorder %v320, %v898
          %vm910 = vcmp.eq.s32.totalorder %v320, %v902
          %vm911 = vcmp.eq.s32.totalorder %v321, %v898
          %vm912 = vcmp.eq.s32.totalorder %v321, %v902
          %vm913 = vcmp.eq.s32.totalorder %v322, %v898
          %vm914 = vcmp.eq.s32.totalorder %v322, %v902
          %vm915 = vcmp.eq.s32.totalorder %v323, %v898
          %vm916 = vcmp.eq.s32.totalorder %v323, %v902
          %vm917 = vcmp.eq.s32.totalorder %v324, %v898
          %vm918 = vcmp.eq.s32.totalorder %v324, %v902
          %vm919 = vcmp.eq.s32.totalorder %v325, %v898
          %vm920 = vcmp.eq.s32.totalorder %v325, %v902
          %vm921 = vcmp.eq.s32.totalorder %v326, %v898
          %vm922 = vcmp.eq.s32.totalorder %v326, %v902
          %vm923 = vcmp.eq.s32.totalorder %v327, %v898
          %vm924 = vcmp.eq.s32.totalorder %v327, %v902
          %vm925 = vcmp.eq.s32.totalorder %v328, %v898
          %vm926 = vcmp.eq.s32.totalorder %v328, %v902
          %vm927 = vcmp.eq.s32.totalorder %v329, %v898
          %vm928 = vcmp.eq.s32.totalorder %v329, %v902
          %vm929 = vcmp.eq.s32.totalorder %v330, %v898
          %vm930 = vcmp.eq.s32.totalorder %v330, %v902
          %vm931 = vcmp.eq.s32.totalorder %v331, %v898
          %vm932 = vcmp.eq.s32.totalorder %v331, %v902
          %vm933 = vcmp.eq.s32.totalorder %v332, %v898
          %vm934 = vcmp.eq.s32.totalorder %v332, %v902
          %vm935 = vcmp.eq.s32.totalorder %v333, %v898
          %vm936 = vcmp.eq.s32.totalorder %v333, %v902
          %vm937 = vcmp.eq.s32.totalorder %v334, %v898
          %vm938 = vcmp.eq.s32.totalorder %v334, %v902
          %vm939 = vcmp.eq.s32.totalorder %v335, %v898
          %vm940 = vcmp.eq.s32.totalorder %v335, %v902
          %vm941 = vcmp.eq.s32.totalorder %v336, %v898
          %vm942 = vcmp.eq.s32.totalorder %v336, %v902
          %vm943 = vcmp.eq.s32.totalorder %v337, %v898
          %vm944 = vcmp.eq.s32.totalorder %v337, %v902
          %vm945 = vcmp.eq.s32.totalorder %v338, %v898
          %vm946 = vcmp.eq.s32.totalorder %v338, %v902
          %vm947 = vcmp.eq.s32.totalorder %v339, %v898
          %vm948 = vcmp.eq.s32.totalorder %v339, %v902
          %vm949 = vcmp.eq.s32.totalorder %v340, %v898
          %vm950 = vcmp.eq.s32.totalorder %v340, %v902
          %vm951 = vcmp.eq.s32.totalorder %v341, %v898
          %vm952 = vcmp.eq.s32.totalorder %v341, %v902
          %vm953 = vcmp.eq.s32.totalorder %v342, %v898
          %vm954 = vcmp.eq.s32.totalorder %v342, %v902
          %vm955 = vcmp.eq.s32.totalorder %v343, %v898
          %vm956 = vcmp.eq.s32.totalorder %v343, %v902
          %vm957 = vcmp.eq.s32.totalorder %v344, %v898
          %vm958 = vcmp.eq.s32.totalorder %v344, %v902
          %vm959 = vcmp.eq.s32.totalorder %v345, %v898
          %vm960 = vcmp.eq.s32.totalorder %v345, %v902
          %vm961 = vcmp.eq.s32.totalorder %v346, %v898
          %vm962 = vcmp.eq.s32.totalorder %v346, %v902
          %vm963 = vcmp.eq.s32.totalorder %v347, %v898
          %vm964 = vcmp.eq.s32.totalorder %v347, %v902
          %vm965 = vcmp.eq.s32.totalorder %v348, %v898
          %vm966 = vcmp.eq.s32.totalorder %v348, %v902
          %v967 = vsel %vm903, 1, 0
          %v968 = vsel %vm904, 1, 0
          %v969 = vsel %vm905, 1, 0
          %v970 = vsel %vm906, 1, 0
          %v971 = vsel %vm907, 1, 0
          %v972 = vsel %vm908, 1, 0
          %v973 = vsel %vm909, 1, 0
          %v974 = vsel %vm910, 1, 0
          %v975 = vsel %vm911, 1, 0
          %v976 = vsel %vm912, 1, 0
          %v977 = vsel %vm913, 1, 0
          %v978 = vsel %vm914, 1, 0
          %v979 = vsel %vm915, 1, 0
          %v980 = vsel %vm916, 1, 0
          %v981 = vsel %vm917, 1, 0
          %v982 = vsel %vm918, 1, 0
          %v983 = vsel %vm919, 1, 0
          %v984 = vsel %vm920, 1, 0
          %v985 = vsel %vm921, 1, 0
          %v986 = vsel %vm922, 1, 0
          %v987 = vsel %vm923, 1, 0
          %v988 = vsel %vm924, 1, 0
          %v989 = vsel %vm925, 1, 0
          %v990 = vsel %vm926, 1, 0
          %v991 = vsel %vm927, 1, 0
          %v992 = vsel %vm928, 1, 0
          %v993 = vsel %vm929, 1, 0
          %v994 = vsel %vm930, 1, 0
          %v995 = vsel %vm931, 1, 0
          %v996 = vsel %vm932, 1, 0
          %v997 = vsel %vm933, 1, 0
          %v998 = vsel %vm934, 1, 0
          %v999 = vsel %vm935, 1, 0
          %v1000 = vsel %vm936, 1, 0
          %v1001 = vsel %vm937, 1, 0
          %v1002 = vsel %vm938, 1, 0
          %v1003 = vsel %vm939, 1, 0
          %v1004 = vsel %vm940, 1, 0
          %v1005 = vsel %vm941, 1, 0
          %v1006 = vsel %vm942, 1, 0
          %v1007 = vsel %vm943, 1, 0
          %v1008 = vsel %vm944, 1, 0
          %v1009 = vsel %vm945, 1, 0
          %v1010 = vsel %vm946, 1, 0
          %v1011 = vsel %vm947, 1, 0
          %v1012 = vsel %vm948, 1, 0
          %v1013 = vsel %vm949, 1, 0
          %v1014 = vsel %vm950, 1, 0
          %v1015 = vsel %vm951, 1, 0
          %v1016 = vsel %vm952, 1, 0
          %v1017 = vsel %vm953, 1, 0
          %v1018 = vsel %vm954, 1, 0
          %v1019 = vsel %vm955, 1, 0
          %v1020 = vsel %vm956, 1, 0
          %v1021 = vsel %vm957, 1, 0
          %v1022 = vsel %vm958, 1, 0
          %v1023 = vsel %vm959, 1, 0
          %v1024 = vsel %vm960, 1, 0
          %v1025 = vsel %vm961, 1, 0
          %v1026 = vsel %vm962, 1, 0
          %v1027 = vsel %vm963, 1, 0
          %v1028 = vsel %vm964, 1, 0
          %v1029 = vsel %vm965, 1, 0
          %v1030 = vsel %vm966, 1, 0
          %v1031 = vcvt.s32.f32 %v967
          %v1032 = vcvt.s32.f32 %v968
          %v1033 = vcvt.s32.f32 %v969
          %v1034 = vcvt.s32.f32 %v970
          %v1035 = vcvt.s32.f32 %v971
          %v1036 = vcvt.s32.f32 %v972
          %v1037 = vcvt.s32.f32 %v973
          %v1038 = vcvt.s32.f32 %v974
          %v1039 = vcvt.s32.f32 %v975
          %v1040 = vcvt.s32.f32 %v976
          %v1041 = vcvt.s32.f32 %v977
          %v1042 = vcvt.s32.f32 %v978
          %v1043 = vcvt.s32.f32 %v979
          %v1044 = vcvt.s32.f32 %v980
          %v1045 = vcvt.s32.f32 %v981
          %v1046 = vcvt.s32.f32 %v982
          %v1047 = vcvt.s32.f32 %v983
          %v1048 = vcvt.s32.f32 %v984
          %v1049 = vcvt.s32.f32 %v985
          %v1050 = vcvt.s32.f32 %v986
          %v1051 = vcvt.s32.f32 %v987
          %v1052 = vcvt.s32.f32 %v988
          %v1053 = vcvt.s32.f32 %v989
          %v1054 = vcvt.s32.f32 %v990
          %v1055 = vcvt.s32.f32 %v991
          %v1056 = vcvt.s32.f32 %v992
          %v1057 = vcvt.s32.f32 %v993
          %v1058 = vcvt.s32.f32 %v994
          %v1059 = vcvt.s32.f32 %v995
          %v1060 = vcvt.s32.f32 %v996
          %v1061 = vcvt.s32.f32 %v997
          %v1062 = vcvt.s32.f32 %v998
          %v1063 = vcvt.s32.f32 %v999
          %v1064 = vcvt.s32.f32 %v1000
          %v1065 = vcvt.s32.f32 %v1001
          %v1066 = vcvt.s32.f32 %v1002
          %v1067 = vcvt.s32.f32 %v1003
          %v1068 = vcvt.s32.f32 %v1004
          %v1069 = vcvt.s32.f32 %v1005
          %v1070 = vcvt.s32.f32 %v1006
          %v1071 = vcvt.s32.f32 %v1007
          %v1072 = vcvt.s32.f32 %v1008
          %v1073 = vcvt.s32.f32 %v1009
          %v1074 = vcvt.s32.f32 %v1010
          %v1075 = vcvt.s32.f32 %v1011
          %v1076 = vcvt.s32.f32 %v1012
          %v1077 = vcvt.s32.f32 %v1013
          %v1078 = vcvt.s32.f32 %v1014
          %v1079 = vcvt.s32.f32 %v1015
          %v1080 = vcvt.s32.f32 %v1016
          %v1081 = vcvt.s32.f32 %v1017
          %v1082 = vcvt.s32.f32 %v1018
          %v1083 = vcvt.s32.f32 %v1019
          %v1084 = vcvt.s32.f32 %v1020
          %v1085 = vcvt.s32.f32 %v1021
          %v1086 = vcvt.s32.f32 %v1022
          %v1087 = vcvt.s32.f32 %v1023
          %v1088 = vcvt.s32.f32 %v1024
          %v1089 = vcvt.s32.f32 %v1025
          %v1090 = vcvt.s32.f32 %v1026
          %v1091 = vcvt.s32.f32 %v1027
          %v1092 = vcvt.s32.f32 %v1028
          %v1093 = vcvt.s32.f32 %v1029
          %v1094 = vcvt.s32.f32 %v1030
          %1095 = vmatprep.subr.mxu0 %v1062
          %1096 = vmatpush1.msra.mxu0 %v1061
          %1097 = vmatprep.subr.mxu0 %v1060
          %1098 = vmatpush1.msra.mxu0 %v1059
          %1099 = vmatprep.subr.mxu0 %v1058
          %1100 = vmatpush1.msra.mxu0 %v1057
          %1101 = vmatprep.subr.mxu0 %v1056
          %1102 = vmatpush1.msra.mxu0 %v1055
          %1103 = vmatprep.subr.mxu0 %v1054
          %1104 = vmatpush1.msra.mxu0 %v1053
          %1105 = vmatprep.subr.mxu0 %v1052
          %1106 = vmatpush1.msra.mxu0 %v1051
          %1107 = vmatprep.subr.mxu0 %v1050
          %1108 = vmatpush1.msra.mxu0 %v1049
          %1109 = vmatprep.subr.mxu0 %v1048
          %1110 = vmatpush1.msra.mxu0 %v1047
          %1111 = vmatprep.subr.mxu0 %v1046
          %1112 = vmatpush1.msra.mxu0 %v1045
          %1113 = vmatprep.subr.mxu0 %v1044
          %1114 = vmatpush1.msra.mxu0 %v1043
          %1115 = vmatprep.subr.mxu0 %v1042
          %1116 = vmatpush1.msra.mxu0 %v1041
          %1117 = vmatprep.subr.mxu0 %v1040
          %1118 = vmatpush1.msra.mxu0 %v1039
          %1119 = vmatprep.subr.mxu0 %v1038
          %1120 = vmatpush1.msra.mxu0 %v1037
          %1121 = vmatprep.subr.mxu0 %v1036
          %1122 = vmatpush1.msra.mxu0 %v1035
          %1123 = vmatprep.subr.mxu0 %v1034
          %1124 = vmatpush1.msra.mxu0 %v1033
          %1125 = vmatprep.subr.mxu0 %v1032
          %1126 = vmatpush1.msra.mxu0 %v1031
          %1127 = vmatprep.subr.mxu0 %v1094
          %1128 = vmatpush2.msra.mxu0 %v1093
          %1129 = vmatprep.subr.mxu0 %v1092
          %1130 = vmatpush2.msra.mxu0 %v1091
          %1131 = vmatprep.subr.mxu0 %v1090
          %1132 = vmatpush2.msra.mxu0 %v1089
          %1133 = vmatprep.subr.mxu0 %v1088
          %1134 = vmatpush2.msra.mxu0 %v1087
          %1135 = vmatprep.subr.mxu0 %v1086
          %1136 = vmatpush2.msra.mxu0 %v1085
          %1137 = vmatprep.subr.mxu0 %v1084
          %1138 = vmatpush2.msra.mxu0 %v1083
          %1139 = vmatprep.subr.mxu0 %v1082
          %1140 = vmatpush2.msra.mxu0 %v1081
          %1141 = vmatprep.subr.mxu0 %v1080
          %1142 = vmatpush2.msra.mxu0 %v1079
          %1143 = vmatprep.subr.mxu0 %v1078
          %1144 = vmatpush2.msra.mxu0 %v1077
          %1145 = vmatprep.subr.mxu0 %v1076
          %1146 = vmatpush2.msra.mxu0 %v1075
          %1147 = vmatprep.subr.mxu0 %v1074
          %1148 = vmatpush2.msra.mxu0 %v1073
          %1149 = vmatprep.subr.mxu0 %v1072
          %1150 = vmatpush2.msra.mxu0 %v1071
          %1151 = vmatprep.subr.mxu0 %v1070
          %1152 = vmatpush2.msra.mxu0 %v1069
          %1153 = vmatprep.subr.mxu0 %v1068
          %1154 = vmatpush2.msra.mxu0 %v1067
          %1155 = vmatprep.subr.mxu0 %v1066
          %1156 = vmatpush2.msra.mxu0 %v1065
          %1157 = vmatprep.subr.mxu0 %v1064
          %1158 = vmatpush2.msra.mxu0 %v1063
          %1159 = vmatprep.mubr.f32.mxu0 %v315
          %1160 = vmatmul.mubr.f32.gmra.mxu0 %v314
          %v1161 = vpop.f32.mrf.mxu0
          %v1162 = vadd.f32 0.0, %v1161
          %v1163 = vpop.f32.mrf.mxu0
          %v1164 = vadd.f32 0.0, %v1163
          %1165 = vdwg.mxu0
          %1166 = vst [vmem:[#allocation2 + $0x20] sm:$0xff] %v1162
          %1167 = vst [vmem:[#allocation2 + $0x28] sm:$0xff] %v1164
          %v1168 = vlaneseq
          %v1169 = vshrl.u32 %v1168, 7
          %v1170 = vsub.s32 3, %v1169
          %v1171 = vrot.slane %v310, %v1170
          %v1172 = vlaneseq
          %v1173 = vshrl.u32 %v1172, 7
          %v1174 = vsub.s32 3, %v1173
          %v1175 = vrot.slane %v311, %v1174
          %vm1176 = vcmp.eq.s32.totalorder %v317, %v1171
          %vm1177 = vcmp.eq.s32.totalorder %v317, %v1175
          %vm1178 = vcmp.eq.s32.totalorder %v318, %v1171
          %vm1179 = vcmp.eq.s32.totalorder %v318, %v1175
          %vm1180 = vcmp.eq.s32.totalorder %v319, %v1171
          %vm1181 = vcmp.eq.s32.totalorder %v319, %v1175
          %vm1182 = vcmp.eq.s32.totalorder %v320, %v1171
          %vm1183 = vcmp.eq.s32.totalorder %v320, %v1175
          %vm1184 = vcmp.eq.s32.totalorder %v321, %v1171
          %vm1185 = vcmp.eq.s32.totalorder %v321, %v1175
          %vm1186 = vcmp.eq.s32.totalorder %v322, %v1171
          %vm1187 = vcmp.eq.s32.totalorder %v322, %v1175
          %vm1188 = vcmp.eq.s32.totalorder %v323, %v1171
          %vm1189 = vcmp.eq.s32.totalorder %v323, %v1175
          %vm1190 = vcmp.eq.s32.totalorder %v324, %v1171
          %vm1191 = vcmp.eq.s32.totalorder %v324, %v1175
          %vm1192 = vcmp.eq.s32.totalorder %v325, %v1171
          %vm1193 = vcmp.eq.s32.totalorder %v325, %v1175
          %vm1194 = vcmp.eq.s32.totalorder %v326, %v1171
          %vm1195 = vcmp.eq.s32.totalorder %v326, %v1175
          %vm1196 = vcmp.eq.s32.totalorder %v327, %v1171
          %vm1197 = vcmp.eq.s32.totalorder %v327, %v1175
          %vm1198 = vcmp.eq.s32.totalorder %v328, %v1171
          %vm1199 = vcmp.eq.s32.totalorder %v328, %v1175
          %vm1200 = vcmp.eq.s32.totalorder %v329, %v1171
          %vm1201 = vcmp.eq.s32.totalorder %v329, %v1175
          %vm1202 = vcmp.eq.s32.totalorder %v330, %v1171
          %vm1203 = vcmp.eq.s32.totalorder %v330, %v1175
          %vm1204 = vcmp.eq.s32.totalorder %v331, %v1171
          %vm1205 = vcmp.eq.s32.totalorder %v331, %v1175
          %vm1206 = vcmp.eq.s32.totalorder %v332, %v1171
          %vm1207 = vcmp.eq.s32.totalorder %v332, %v1175
          %vm1208 = vcmp.eq.s32.totalorder %v333, %v1171
          %vm1209 = vcmp.eq.s32.totalorder %v333, %v1175
          %vm1210 = vcmp.eq.s32.totalorder %v334, %v1171
          %vm1211 = vcmp.eq.s32.totalorder %v334, %v1175
          %vm1212 = vcmp.eq.s32.totalorder %v335, %v1171
          %vm1213 = vcmp.eq.s32.totalorder %v335, %v1175
          %vm1214 = vcmp.eq.s32.totalorder %v336, %v1171
          %vm1215 = vcmp.eq.s32.totalorder %v336, %v1175
          %vm1216 = vcmp.eq.s32.totalorder %v337, %v1171
          %vm1217 = vcmp.eq.s32.totalorder %v337, %v1175
          %vm1218 = vcmp.eq.s32.totalorder %v338, %v1171
          %vm1219 = vcmp.eq.s32.totalorder %v338, %v1175
          %vm1220 = vcmp.eq.s32.totalorder %v339, %v1171
          %vm1221 = vcmp.eq.s32.totalorder %v339, %v1175
          %vm1222 = vcmp.eq.s32.totalorder %v340, %v1171
          %vm1223 = vcmp.eq.s32.totalorder %v340, %v1175
          %vm1224 = vcmp.eq.s32.totalorder %v341, %v1171
          %vm1225 = vcmp.eq.s32.totalorder %v341, %v1175
          %vm1226 = vcmp.eq.s32.totalorder %v342, %v1171
          %vm1227 = vcmp.eq.s32.totalorder %v342, %v1175
          %vm1228 = vcmp.eq.s32.totalorder %v343, %v1171
          %vm1229 = vcmp.eq.s32.totalorder %v343, %v1175
          %vm1230 = vcmp.eq.s32.totalorder %v344, %v1171
          %vm1231 = vcmp.eq.s32.totalorder %v344, %v1175
          %vm1232 = vcmp.eq.s32.totalorder %v345, %v1171
          %vm1233 = vcmp.eq.s32.totalorder %v345, %v1175
          %vm1234 = vcmp.eq.s32.totalorder %v346, %v1171
          %vm1235 = vcmp.eq.s32.totalorder %v346, %v1175
          %vm1236 = vcmp.eq.s32.totalorder %v347, %v1171
          %vm1237 = vcmp.eq.s32.totalorder %v347, %v1175
          %vm1238 = vcmp.eq.s32.totalorder %v348, %v1171
          %vm1239 = vcmp.eq.s32.totalorder %v348, %v1175
          %v1240 = vsel %vm1176, 1, 0
          %v1241 = vsel %vm1177, 1, 0
          %v1242 = vsel %vm1178, 1, 0
          %v1243 = vsel %vm1179, 1, 0
          %v1244 = vsel %vm1180, 1, 0
          %v1245 = vsel %vm1181, 1, 0
          %v1246 = vsel %vm1182, 1, 0
          %v1247 = vsel %vm1183, 1, 0
          %v1248 = vsel %vm1184, 1, 0
          %v1249 = vsel %vm1185, 1, 0
          %v1250 = vsel %vm1186, 1, 0
          %v1251 = vsel %vm1187, 1, 0
          %v1252 = vsel %vm1188, 1, 0
          %v1253 = vsel %vm1189, 1, 0
          %v1254 = vsel %vm1190, 1, 0
          %v1255 = vsel %vm1191, 1, 0
          %v1256 = vsel %vm1192, 1, 0
          %v1257 = vsel %vm1193, 1, 0
          %v1258 = vsel %vm1194, 1, 0
          %v1259 = vsel %vm1195, 1, 0
          %v1260 = vsel %vm1196, 1, 0
          %v1261 = vsel %vm1197, 1, 0
          %v1262 = vsel %vm1198, 1, 0
          %v1263 = vsel %vm1199, 1, 0
          %v1264 = vsel %vm1200, 1, 0
          %v1265 = vsel %vm1201, 1, 0
          %v1266 = vsel %vm1202, 1, 0
          %v1267 = vsel %vm1203, 1, 0
          %v1268 = vsel %vm1204, 1, 0
          %v1269 = vsel %vm1205, 1, 0
          %v1270 = vsel %vm1206, 1, 0
          %v1271 = vsel %vm1207, 1, 0
          %v1272 = vsel %vm1208, 1, 0
          %v1273 = vsel %vm1209, 1, 0
          %v1274 = vsel %vm1210, 1, 0
          %v1275 = vsel %vm1211, 1, 0
          %v1276 = vsel %vm1212, 1, 0
          %v1277 = vsel %vm1213, 1, 0
          %v1278 = vsel %vm1214, 1, 0
          %v1279 = vsel %vm1215, 1, 0
          %v1280 = vsel %vm1216, 1, 0
          %v1281 = vsel %vm1217, 1, 0
          %v1282 = vsel %vm1218, 1, 0
          %v1283 = vsel %vm1219, 1, 0
          %v1284 = vsel %vm1220, 1, 0
          %v1285 = vsel %vm1221, 1, 0
          %v1286 = vsel %vm1222, 1, 0
          %v1287 = vsel %vm1223, 1, 0
          %v1288 = vsel %vm1224, 1, 0
          %v1289 = vsel %vm1225, 1, 0
          %v1290 = vsel %vm1226, 1, 0
          %v1291 = vsel %vm1227, 1, 0
          %v1292 = vsel %vm1228, 1, 0
          %v1293 = vsel %vm1229, 1, 0
          %v1294 = vsel %vm1230, 1, 0
          %v1295 = vsel %vm1231, 1, 0
          %v1296 = vsel %vm1232, 1, 0
          %v1297 = vsel %vm1233, 1, 0
          %v1298 = vsel %vm1234, 1, 0
          %v1299 = vsel %vm1235, 1, 0
          %v1300 = vsel %vm1236, 1, 0
          %v1301 = vsel %vm1237, 1, 0
          %v1302 = vsel %vm1238, 1, 0
          %v1303 = vsel %vm1239, 1, 0
          %v1304 = vcvt.s32.f32 %v1240
          %v1305 = vcvt.s32.f32 %v1241
          %v1306 = vcvt.s32.f32 %v1242
          %v1307 = vcvt.s32.f32 %v1243
          %v1308 = vcvt.s32.f32 %v1244
          %v1309 = vcvt.s32.f32 %v1245
          %v1310 = vcvt.s32.f32 %v1246
          %v1311 = vcvt.s32.f32 %v1247
          %v1312 = vcvt.s32.f32 %v1248
          %v1313 = vcvt.s32.f32 %v1249
          %v1314 = vcvt.s32.f32 %v1250
          %v1315 = vcvt.s32.f32 %v1251
          %v1316 = vcvt.s32.f32 %v1252
          %v1317 = vcvt.s32.f32 %v1253
          %v1318 = vcvt.s32.f32 %v1254
          %v1319 = vcvt.s32.f32 %v1255
          %v1320 = vcvt.s32.f32 %v1256
          %v1321 = vcvt.s32.f32 %v1257
          %v1322 = vcvt.s32.f32 %v1258
          %v1323 = vcvt.s32.f32 %v1259
          %v1324 = vcvt.s32.f32 %v1260
          %v1325 = vcvt.s32.f32 %v1261
          %v1326 = vcvt.s32.f32 %v1262
          %v1327 = vcvt.s32.f32 %v1263
          %v1328 = vcvt.s32.f32 %v1264
          %v1329 = vcvt.s32.f32 %v1265
          %v1330 = vcvt.s32.f32 %v1266
          %v1331 = vcvt.s32.f32 %v1267
          %v1332 = vcvt.s32.f32 %v1268
          %v1333 = vcvt.s32.f32 %v1269
          %v1334 = vcvt.s32.f32 %v1270
          %v1335 = vcvt.s32.f32 %v1271
          %v1336 = vcvt.s32.f32 %v1272
          %v1337 = vcvt.s32.f32 %v1273
          %v1338 = vcvt.s32.f32 %v1274
          %v1339 = vcvt.s32.f32 %v1275
          %v1340 = vcvt.s32.f32 %v1276
          %v1341 = vcvt.s32.f32 %v1277
          %v1342 = vcvt.s32.f32 %v1278
          %v1343 = vcvt.s32.f32 %v1279
          %v1344 = vcvt.s32.f32 %v1280
          %v1345 = vcvt.s32.f32 %v1281
          %v1346 = vcvt.s32.f32 %v1282
          %v1347 = vcvt.s32.f32 %v1283
          %v1348 = vcvt.s32.f32 %v1284
          %v1349 = vcvt.s32.f32 %v1285
          %v1350 = vcvt.s32.f32 %v1286
          %v1351 = vcvt.s32.f32 %v1287
          %v1352 = vcvt.s32.f32 %v1288
          %v1353 = vcvt.s32.f32 %v1289
          %v1354 = vcvt.s32.f32 %v1290
          %v1355 = vcvt.s32.f32 %v1291
          %v1356 = vcvt.s32.f32 %v1292
          %v1357 = vcvt.s32.f32 %v1293
          %v1358 = vcvt.s32.f32 %v1294
          %v1359 = vcvt.s32.f32 %v1295
          %v1360 = vcvt.s32.f32 %v1296
          %v1361 = vcvt.s32.f32 %v1297
          %v1362 = vcvt.s32.f32 %v1298
          %v1363 = vcvt.s32.f32 %v1299
          %v1364 = vcvt.s32.f32 %v1300
          %v1365 = vcvt.s32.f32 %v1301
          %v1366 = vcvt.s32.f32 %v1302
          %v1367 = vcvt.s32.f32 %v1303
          %1368 = vmatprep.subr.mxu0 %v1335
          %1369 = vmatpush1.msra.mxu0 %v1334
          %1370 = vmatprep.subr.mxu0 %v1333
          %1371 = vmatpush1.msra.mxu0 %v1332
          %1372 = vmatprep.subr.mxu0 %v1331
          %1373 = vmatpush1.msra.mxu0 %v1330
          %1374 = vmatprep.subr.mxu0 %v1329
          %1375 = vmatpush1.msra.mxu0 %v1328
          %1376 = vmatprep.subr.mxu0 %v1327
          %1377 = vmatpush1.msra.mxu0 %v1326
          %1378 = vmatprep.subr.mxu0 %v1325
          %1379 = vmatpush1.msra.mxu0 %v1324
          %1380 = vmatprep.subr.mxu0 %v1323
          %1381 = vmatpush1.msra.mxu0 %v1322
          %1382 = vmatprep.subr.mxu0 %v1321
          %1383 = vmatpush1.msra.mxu0 %v1320
          %1384 = vmatprep.subr.mxu0 %v1319
          %1385 = vmatpush1.msra.mxu0 %v1318
          %1386 = vmatprep.subr.mxu0 %v1317
          %1387 = vmatpush1.msra.mxu0 %v1316
          %1388 = vmatprep.subr.mxu0 %v1315
          %1389 = vmatpush1.msra.mxu0 %v1314
          %1390 = vmatprep.subr.mxu0 %v1313
          %1391 = vmatpush1.msra.mxu0 %v1312
          %1392 = vmatprep.subr.mxu0 %v1311
          %1393 = vmatpush1.msra.mxu0 %v1310
          %1394 = vmatprep.subr.mxu0 %v1309
          %1395 = vmatpush1.msra.mxu0 %v1308
          %1396 = vmatprep.subr.mxu0 %v1307
          %1397 = vmatpush1.msra.mxu0 %v1306
          %1398 = vmatprep.subr.mxu0 %v1305
          %1399 = vmatpush1.msra.mxu0 %v1304
          %1400 = vmatprep.subr.mxu0 %v1367
          %1401 = vmatpush2.msra.mxu0 %v1366
          %1402 = vmatprep.subr.mxu0 %v1365
          %1403 = vmatpush2.msra.mxu0 %v1364
          %1404 = vmatprep.subr.mxu0 %v1363
          %1405 = vmatpush2.msra.mxu0 %v1362
          %1406 = vmatprep.subr.mxu0 %v1361
          %1407 = vmatpush2.msra.mxu0 %v1360
          %1408 = vmatprep.subr.mxu0 %v1359
          %1409 = vmatpush2.msra.mxu0 %v1358
          %1410 = vmatprep.subr.mxu0 %v1357
          %1411 = vmatpush2.msra.mxu0 %v1356
          %1412 = vmatprep.subr.mxu0 %v1355
          %1413 = vmatpush2.msra.mxu0 %v1354
          %1414 = vmatprep.subr.mxu0 %v1353
          %1415 = vmatpush2.msra.mxu0 %v1352
          %1416 = vmatprep.subr.mxu0 %v1351
          %1417 = vmatpush2.msra.mxu0 %v1350
          %1418 = vmatprep.subr.mxu0 %v1349
          %1419 = vmatpush2.msra.mxu0 %v1348
          %1420 = vmatprep.subr.mxu0 %v1347
          %1421 = vmatpush2.msra.mxu0 %v1346
          %1422 = vmatprep.subr.mxu0 %v1345
          %1423 = vmatpush2.msra.mxu0 %v1344
          %1424 = vmatprep.subr.mxu0 %v1343
          %1425 = vmatpush2.msra.mxu0 %v1342
          %1426 = vmatprep.subr.mxu0 %v1341
          %1427 = vmatpush2.msra.mxu0 %v1340
          %1428 = vmatprep.subr.mxu0 %v1339
          %1429 = vmatpush2.msra.mxu0 %v1338
          %1430 = vmatprep.subr.mxu0 %v1337
          %1431 = vmatpush2.msra.mxu0 %v1336
          %1432 = vmatprep.mubr.f32.mxu0 %v315
          %1433 = vmatmul.mubr.f32.gmra.mxu0 %v314
          %v1434 = vpop.f32.mrf.mxu0
          %v1435 = vadd.f32 0.0, %v1434
          %v1436 = vpop.f32.mrf.mxu0
          %v1437 = vadd.f32 0.0, %v1436
          %1438 = vdwg.mxu0
          %1439 = vst [vmem:[#allocation2 + $0x30] sm:$0xff] %v1435
          %1440 = vst [vmem:[#allocation2 + $0x38] sm:$0xff] %v1437
          %v1441 = vlaneseq
          %v1442 = vshrl.u32 %v1441, 7
          %v1443 = vsub.s32 4, %v1442
          %v1444 = vrot.slane %v310, %v1443
          %v1445 = vlaneseq
          %v1446 = vshrl.u32 %v1445, 7
          %v1447 = vsub.s32 4, %v1446
          %v1448 = vrot.slane %v311, %v1447
          %vm1449 = vcmp.eq.s32.totalorder %v317, %v1444
          %vm1450 = vcmp.eq.s32.totalorder %v317, %v1448
          %vm1451 = vcmp.eq.s32.totalorder %v318, %v1444
          %vm1452 = vcmp.eq.s32.totalorder %v318, %v1448
          %vm1453 = vcmp.eq.s32.totalorder %v319, %v1444
          %vm1454 = vcmp.eq.s32.totalorder %v319, %v1448
          %vm1455 = vcmp.eq.s32.totalorder %v320, %v1444
          %vm1456 = vcmp.eq.s32.totalorder %v320, %v1448
          %vm1457 = vcmp.eq.s32.totalorder %v321, %v1444
          %vm1458 = vcmp.eq.s32.totalorder %v321, %v1448
          %vm1459 = vcmp.eq.s32.totalorder %v322, %v1444
          %vm1460 = vcmp.eq.s32.totalorder %v322, %v1448
          %vm1461 = vcmp.eq.s32.totalorder %v323, %v1444
          %vm1462 = vcmp.eq.s32.totalorder %v323, %v1448
          %vm1463 = vcmp.eq.s32.totalorder %v324, %v1444
          %vm1464 = vcmp.eq.s32.totalorder %v324, %v1448
          %vm1465 = vcmp.eq.s32.totalorder %v325, %v1444
          %vm1466 = vcmp.eq.s32.totalorder %v325, %v1448
          %vm1467 = vcmp.eq.s32.totalorder %v326, %v1444
          %vm1468 = vcmp.eq.s32.totalorder %v326, %v1448
          %vm1469 = vcmp.eq.s32.totalorder %v327, %v1444
          %vm1470 = vcmp.eq.s32.totalorder %v327, %v1448
          %vm1471 = vcmp.eq.s32.totalorder %v328, %v1444
          %vm1472 = vcmp.eq.s32.totalorder %v328, %v1448
          %vm1473 = vcmp.eq.s32.totalorder %v329, %v1444
          %vm1474 = vcmp.eq.s32.totalorder %v329, %v1448
          %vm1475 = vcmp.eq.s32.totalorder %v330, %v1444
          %vm1476 = vcmp.eq.s32.totalorder %v330, %v1448
          %vm1477 = vcmp.eq.s32.totalorder %v331, %v1444
          %vm1478 = vcmp.eq.s32.totalorder %v331, %v1448
          %vm1479 = vcmp.eq.s32.totalorder %v332, %v1444
          %vm1480 = vcmp.eq.s32.totalorder %v332, %v1448
          %vm1481 = vcmp.eq.s32.totalorder %v333, %v1444
          %vm1482 = vcmp.eq.s32.totalorder %v333, %v1448
          %vm1483 = vcmp.eq.s32.totalorder %v334, %v1444
          %vm1484 = vcmp.eq.s32.totalorder %v334, %v1448
          %vm1485 = vcmp.eq.s32.totalorder %v335, %v1444
          %vm1486 = vcmp.eq.s32.totalorder %v335, %v1448
          %vm1487 = vcmp.eq.s32.totalorder %v336, %v1444
          %vm1488 = vcmp.eq.s32.totalorder %v336, %v1448
          %vm1489 = vcmp.eq.s32.totalorder %v337, %v1444
          %vm1490 = vcmp.eq.s32.totalorder %v337, %v1448
          %vm1491 = vcmp.eq.s32.totalorder %v338, %v1444
          %vm1492 = vcmp.eq.s32.totalorder %v338, %v1448
          %vm1493 = vcmp.eq.s32.totalorder %v339, %v1444
          %vm1494 = vcmp.eq.s32.totalorder %v339, %v1448
          %vm1495 = vcmp.eq.s32.totalorder %v340, %v1444
          %vm1496 = vcmp.eq.s32.totalorder %v340, %v1448
          %vm1497 = vcmp.eq.s32.totalorder %v341, %v1444
          %vm1498 = vcmp.eq.s32.totalorder %v341, %v1448
          %vm1499 = vcmp.eq.s32.totalorder %v342, %v1444
          %vm1500 = vcmp.eq.s32.totalorder %v342, %v1448
          %vm1501 = vcmp.eq.s32.totalorder %v343, %v1444
          %vm1502 = vcmp.eq.s32.totalorder %v343, %v1448
          %vm1503 = vcmp.eq.s32.totalorder %v344, %v1444
          %vm1504 = vcmp.eq.s32.totalorder %v344, %v1448
          %vm1505 = vcmp.eq.s32.totalorder %v345, %v1444
          %vm1506 = vcmp.eq.s32.totalorder %v345, %v1448
          %vm1507 = vcmp.eq.s32.totalorder %v346, %v1444
          %vm1508 = vcmp.eq.s32.totalorder %v346, %v1448
          %vm1509 = vcmp.eq.s32.totalorder %v347, %v1444
          %vm1510 = vcmp.eq.s32.totalorder %v347, %v1448
          %vm1511 = vcmp.eq.s32.totalorder %v348, %v1444
          %vm1512 = vcmp.eq.s32.totalorder %v348, %v1448
          %v1513 = vsel %vm1449, 1, 0
          %v1514 = vsel %vm1450, 1, 0
          %v1515 = vsel %vm1451, 1, 0
          %v1516 = vsel %vm1452, 1, 0
          %v1517 = vsel %vm1453, 1, 0
          %v1518 = vsel %vm1454, 1, 0
          %v1519 = vsel %vm1455, 1, 0
          %v1520 = vsel %vm1456, 1, 0
          %v1521 = vsel %vm1457, 1, 0
          %v1522 = vsel %vm1458, 1, 0
          %v1523 = vsel %vm1459, 1, 0
          %v1524 = vsel %vm1460, 1, 0
          %v1525 = vsel %vm1461, 1, 0
          %v1526 = vsel %vm1462, 1, 0
          %v1527 = vsel %vm1463, 1, 0
          %v1528 = vsel %vm1464, 1, 0
          %v1529 = vsel %vm1465, 1, 0
          %v1530 = vsel %vm1466, 1, 0
          %v1531 = vsel %vm1467, 1, 0
          %v1532 = vsel %vm1468, 1, 0
          %v1533 = vsel %vm1469, 1, 0
          %v1534 = vsel %vm1470, 1, 0
          %v1535 = vsel %vm1471, 1, 0
          %v1536 = vsel %vm1472, 1, 0
          %v1537 = vsel %vm1473, 1, 0
          %v1538 = vsel %vm1474, 1, 0
          %v1539 = vsel %vm1475, 1, 0
          %v1540 = vsel %vm1476, 1, 0
          %v1541 = vsel %vm1477, 1, 0
          %v1542 = vsel %vm1478, 1, 0
          %v1543 = vsel %vm1479, 1, 0
          %v1544 = vsel %vm1480, 1, 0
          %v1545 = vsel %vm1481, 1, 0
          %v1546 = vsel %vm1482, 1, 0
          %v1547 = vsel %vm1483, 1, 0
          %v1548 = vsel %vm1484, 1, 0
          %v1549 = vsel %vm1485, 1, 0
          %v1550 = vsel %vm1486, 1, 0
          %v1551 = vsel %vm1487, 1, 0
          %v1552 = vsel %vm1488, 1, 0
          %v1553 = vsel %vm1489, 1, 0
          %v1554 = vsel %vm1490, 1, 0
          %v1555 = vsel %vm1491, 1, 0
          %v1556 = vsel %vm1492, 1, 0
          %v1557 = vsel %vm1493, 1, 0
          %v1558 = vsel %vm1494, 1, 0
          %v1559 = vsel %vm1495, 1, 0
          %v1560 = vsel %vm1496, 1, 0
          %v1561 = vsel %vm1497, 1, 0
          %v1562 = vsel %vm1498, 1, 0
          %v1563 = vsel %vm1499, 1, 0
          %v1564 = vsel %vm1500, 1, 0
          %v1565 = vsel %vm1501, 1, 0
          %v1566 = vsel %vm1502, 1, 0
          %v1567 = vsel %vm1503, 1, 0
          %v1568 = vsel %vm1504, 1, 0
          %v1569 = vsel %vm1505, 1, 0
          %v1570 = vsel %vm1506, 1, 0
          %v1571 = vsel %vm1507, 1, 0
          %v1572 = vsel %vm1508, 1, 0
          %v1573 = vsel %vm1509, 1, 0
          %v1574 = vsel %vm1510, 1, 0
          %v1575 = vsel %vm1511, 1, 0
          %v1576 = vsel %vm1512, 1, 0
          %v1577 = vcvt.s32.f32 %v1513
          %v1578 = vcvt.s32.f32 %v1514
          %v1579 = vcvt.s32.f32 %v1515
          %v1580 = vcvt.s32.f32 %v1516
          %v1581 = vcvt.s32.f32 %v1517
          %v1582 = vcvt.s32.f32 %v1518
          %v1583 = vcvt.s32.f32 %v1519
          %v1584 = vcvt.s32.f32 %v1520
          %v1585 = vcvt.s32.f32 %v1521
          %v1586 = vcvt.s32.f32 %v1522
          %v1587 = vcvt.s32.f32 %v1523
          %v1588 = vcvt.s32.f32 %v1524
          %v1589 = vcvt.s32.f32 %v1525
          %v1590 = vcvt.s32.f32 %v1526
          %v1591 = vcvt.s32.f32 %v1527
          %v1592 = vcvt.s32.f32 %v1528
          %v1593 = vcvt.s32.f32 %v1529
          %v1594 = vcvt.s32.f32 %v1530
          %v1595 = vcvt.s32.f32 %v1531
          %v1596 = vcvt.s32.f32 %v1532
          %v1597 = vcvt.s32.f32 %v1533
          %v1598 = vcvt.s32.f32 %v1534
          %v1599 = vcvt.s32.f32 %v1535
          %v1600 = vcvt.s32.f32 %v1536
          %v1601 = vcvt.s32.f32 %v1537
          %v1602 = vcvt.s32.f32 %v1538
          %v1603 = vcvt.s32.f32 %v1539
          %v1604 = vcvt.s32.f32 %v1540
          %v1605 = vcvt.s32.f32 %v1541
          %v1606 = vcvt.s32.f32 %v1542
          %v1607 = vcvt.s32.f32 %v1543
          %v1608 = vcvt.s32.f32 %v1544
          %v1609 = vcvt.s32.f32 %v1545
          %v1610 = vcvt.s32.f32 %v1546
          %v1611 = vcvt.s32.f32 %v1547
          %v1612 = vcvt.s32.f32 %v1548
          %v1613 = vcvt.s32.f32 %v1549
          %v1614 = vcvt.s32.f32 %v1550
          %v1615 = vcvt.s32.f32 %v1551
          %v1616 = vcvt.s32.f32 %v1552
          %v1617 = vcvt.s32.f32 %v1553
          %v1618 = vcvt.s32.f32 %v1554
          %v1619 = vcvt.s32.f32 %v1555
          %v1620 = vcvt.s32.f32 %v1556
          %v1621 = vcvt.s32.f32 %v1557
          %v1622 = vcvt.s32.f32 %v1558
          %v1623 = vcvt.s32.f32 %v1559
          %v1624 = vcvt.s32.f32 %v1560
          %v1625 = vcvt.s32.f32 %v1561
          %v1626 = vcvt.s32.f32 %v1562
          %v1627 = vcvt.s32.f32 %v1563
          %v1628 = vcvt.s32.f32 %v1564
          %v1629 = vcvt.s32.f32 %v1565
          %v1630 = vcvt.s32.f32 %v1566
          %v1631 = vcvt.s32.f32 %v1567
          %v1632 = vcvt.s32.f32 %v1568
          %v1633 = vcvt.s32.f32 %v1569
          %v1634 = vcvt.s32.f32 %v1570
          %v1635 = vcvt.s32.f32 %v1571
          %v1636 = vcvt.s32.f32 %v1572
          %v1637 = vcvt.s32.f32 %v1573
          %v1638 = vcvt.s32.f32 %v1574
          %v1639 = vcvt.s32.f32 %v1575
          %v1640 = vcvt.s32.f32 %v1576
          %1641 = vmatprep.subr.mxu0 %v1608
          %1642 = vmatpush1.msra.mxu0 %v1607
          %1643 = vmatprep.subr.mxu0 %v1606
          %1644 = vmatpush1.msra.mxu0 %v1605
          %1645 = vmatprep.subr.mxu0 %v1604
          %1646 = vmatpush1.msra.mxu0 %v1603
          %1647 = vmatprep.subr.mxu0 %v1602
          %1648 = vmatpush1.msra.mxu0 %v1601
          %1649 = vmatprep.subr.mxu0 %v1600
          %1650 = vmatpush1.msra.mxu0 %v1599
          %1651 = vmatprep.subr.mxu0 %v1598
          %1652 = vmatpush1.msra.mxu0 %v1597
          %1653 = vmatprep.subr.mxu0 %v1596
          %1654 = vmatpush1.msra.mxu0 %v1595
          %1655 = vmatprep.subr.mxu0 %v1594
          %1656 = vmatpush1.msra.mxu0 %v1593
          %1657 = vmatprep.subr.mxu0 %v1592
          %1658 = vmatpush1.msra.mxu0 %v1591
          %1659 = vmatprep.subr.mxu0 %v1590
          %1660 = vmatpush1.msra.mxu0 %v1589
          %1661 = vmatprep.subr.mxu0 %v1588
          %1662 = vmatpush1.msra.mxu0 %v1587
          %1663 = vmatprep.subr.mxu0 %v1586
          %1664 = vmatpush1.msra.mxu0 %v1585
          %1665 = vmatprep.subr.mxu0 %v1584
          %1666 = vmatpush1.msra.mxu0 %v1583
          %1667 = vmatprep.subr.mxu0 %v1582
          %1668 = vmatpush1.msra.mxu0 %v1581
          %1669 = vmatprep.subr.mxu0 %v1580
          %1670 = vmatpush1.msra.mxu0 %v1579
          %1671 = vmatprep.subr.mxu0 %v1578
          %1672 = vmatpush1.msra.mxu0 %v1577
          %1673 = vmatprep.subr.mxu0 %v1640
          %1674 = vmatpush2.msra.mxu0 %v1639
          %1675 = vmatprep.subr.mxu0 %v1638
          %1676 = vmatpush2.msra.mxu0 %v1637
          %1677 = vmatprep.subr.mxu0 %v1636
          %1678 = vmatpush2.msra.mxu0 %v1635
          %1679 = vmatprep.subr.mxu0 %v1634
          %1680 = vmatpush2.msra.mxu0 %v1633
          %1681 = vmatprep.subr.mxu0 %v1632
          %1682 = vmatpush2.msra.mxu0 %v1631
          %1683 = vmatprep.subr.mxu0 %v1630
          %1684 = vmatpush2.msra.mxu0 %v1629
          %1685 = vmatprep.subr.mxu0 %v1628
          %1686 = vmatpush2.msra.mxu0 %v1627
          %1687 = vmatprep.subr.mxu0 %v1626
          %1688 = vmatpush2.msra.mxu0 %v1625
          %1689 = vmatprep.subr.mxu0 %v1624
          %1690 = vmatpush2.msra.mxu0 %v1623
          %1691 = vmatprep.subr.mxu0 %v1622
          %1692 = vmatpush2.msra.mxu0 %v1621
          %1693 = vmatprep.subr.mxu0 %v1620
          %1694 = vmatpush2.msra.mxu0 %v1619
          %1695 = vmatprep.subr.mxu0 %v1618
          %1696 = vmatpush2.msra.mxu0 %v1617
          %1697 = vmatprep.subr.mxu0 %v1616
          %1698 = vmatpush2.msra.mxu0 %v1615
          %1699 = vmatprep.subr.mxu0 %v1614
          %1700 = vmatpush2.msra.mxu0 %v1613
          %1701 = vmatprep.subr.mxu0 %v1612
          %1702 = vmatpush2.msra.mxu0 %v1611
          %1703 = vmatprep.subr.mxu0 %v1610
          %1704 = vmatpush2.msra.mxu0 %v1609
          %1705 = vmatprep.mubr.f32.mxu0 %v315
          %1706 = vmatmul.mubr.f32.gmra.mxu0 %v314
          %v1707 = vpop.f32.mrf.mxu0
          %v1708 = vadd.f32 0.0, %v1707
          %v1709 = vpop.f32.mrf.mxu0
          %v1710 = vadd.f32 0.0, %v1709
          %1711 = vdwg.mxu0
          %1712 = vst [vmem:[#allocation2 + $0x40] sm:$0xff] %v1708
          %1713 = vst [vmem:[#allocation2 + $0x48] sm:$0xff] %v1710
          %v1714 = vlaneseq
          %v1715 = vshrl.u32 %v1714, 7
          %v1716 = vsub.s32 5, %v1715
          %v1717 = vrot.slane %v310, %v1716
          %v1718 = vlaneseq
          %v1719 = vshrl.u32 %v1718, 7
          %v1720 = vsub.s32 5, %v1719
          %v1721 = vrot.slane %v311, %v1720
          %vm1722 = vcmp.eq.s32.totalorder %v317, %v1717
          %vm1723 = vcmp.eq.s32.totalorder %v317, %v1721
          %vm1724 = vcmp.eq.s32.totalorder %v318, %v1717
          %vm1725 = vcmp.eq.s32.totalorder %v318, %v1721
          %vm1726 = vcmp.eq.s32.totalorder %v319, %v1717
          %vm1727 = vcmp.eq.s32.totalorder %v319, %v1721
          %vm1728 = vcmp.eq.s32.totalorder %v320, %v1717
          %vm1729 = vcmp.eq.s32.totalorder %v320, %v1721
          %vm1730 = vcmp.eq.s32.totalorder %v321, %v1717
          %vm1731 = vcmp.eq.s32.totalorder %v321, %v1721
          %vm1732 = vcmp.eq.s32.totalorder %v322, %v1717
          %vm1733 = vcmp.eq.s32.totalorder %v322, %v1721
          %vm1734 = vcmp.eq.s32.totalorder %v323, %v1717
          %vm1735 = vcmp.eq.s32.totalorder %v323, %v1721
          %vm1736 = vcmp.eq.s32.totalorder %v324, %v1717
          %vm1737 = vcmp.eq.s32.totalorder %v324, %v1721
          %vm1738 = vcmp.eq.s32.totalorder %v325, %v1717
          %vm1739 = vcmp.eq.s32.totalorder %v325, %v1721
          %vm1740 = vcmp.eq.s32.totalorder %v326, %v1717
          %vm1741 = vcmp.eq.s32.totalorder %v326, %v1721
          %vm1742 = vcmp.eq.s32.totalorder %v327, %v1717
          %vm1743 = vcmp.eq.s32.totalorder %v327, %v1721
          %vm1744 = vcmp.eq.s32.totalorder %v328, %v1717
          %vm1745 = vcmp.eq.s32.totalorder %v328, %v1721
          %vm1746 = vcmp.eq.s32.totalorder %v329, %v1717
          %vm1747 = vcmp.eq.s32.totalorder %v329, %v1721
          %vm1748 = vcmp.eq.s32.totalorder %v330, %v1717
          %vm1749 = vcmp.eq.s32.totalorder %v330, %v1721
          %vm1750 = vcmp.eq.s32.totalorder %v331, %v1717
          %vm1751 = vcmp.eq.s32.totalorder %v331, %v1721
          %vm1752 = vcmp.eq.s32.totalorder %v332, %v1717
          %vm1753 = vcmp.eq.s32.totalorder %v332, %v1721
          %vm1754 = vcmp.eq.s32.totalorder %v333, %v1717
          %vm1755 = vcmp.eq.s32.totalorder %v333, %v1721
          %vm1756 = vcmp.eq.s32.totalorder %v334, %v1717
          %vm1757 = vcmp.eq.s32.totalorder %v334, %v1721
          %vm1758 = vcmp.eq.s32.totalorder %v335, %v1717
          %vm1759 = vcmp.eq.s32.totalorder %v335, %v1721
          %vm1760 = vcmp.eq.s32.totalorder %v336, %v1717
          %vm1761 = vcmp.eq.s32.totalorder %v336, %v1721
          %vm1762 = vcmp.eq.s32.totalorder %v337, %v1717
          %vm1763 = vcmp.eq.s32.totalorder %v337, %v1721
          %vm1764 = vcmp.eq.s32.totalorder %v338, %v1717
          %vm1765 = vcmp.eq.s32.totalorder %v338, %v1721
          %vm1766 = vcmp.eq.s32.totalorder %v339, %v1717
          %vm1767 = vcmp.eq.s32.totalorder %v339, %v1721
          %vm1768 = vcmp.eq.s32.totalorder %v340, %v1717
          %vm1769 = vcmp.eq.s32.totalorder %v340, %v1721
          %vm1770 = vcmp.eq.s32.totalorder %v341, %v1717
          %vm1771 = vcmp.eq.s32.totalorder %v341, %v1721
          %vm1772 = vcmp.eq.s32.totalorder %v342, %v1717
          %vm1773 = vcmp.eq.s32.totalorder %v342, %v1721
          %vm1774 = vcmp.eq.s32.totalorder %v343, %v1717
          %vm1775 = vcmp.eq.s32.totalorder %v343, %v1721
          %vm1776 = vcmp.eq.s32.totalorder %v344, %v1717
          %vm1777 = vcmp.eq.s32.totalorder %v344, %v1721
          %vm1778 = vcmp.eq.s32.totalorder %v345, %v1717
          %vm1779 = vcmp.eq.s32.totalorder %v345, %v1721
          %vm1780 = vcmp.eq.s32.totalorder %v346, %v1717
          %vm1781 = vcmp.eq.s32.totalorder %v346, %v1721
          %vm1782 = vcmp.eq.s32.totalorder %v347, %v1717
          %vm1783 = vcmp.eq.s32.totalorder %v347, %v1721
          %vm1784 = vcmp.eq.s32.totalorder %v348, %v1717
          %vm1785 = vcmp.eq.s32.totalorder %v348, %v1721
          %v1786 = vsel %vm1722, 1, 0
          %v1787 = vsel %vm1723, 1, 0
          %v1788 = vsel %vm1724, 1, 0
          %v1789 = vsel %vm1725, 1, 0
          %v1790 = vsel %vm1726, 1, 0
          %v1791 = vsel %vm1727, 1, 0
          %v1792 = vsel %vm1728, 1, 0
          %v1793 = vsel %vm1729, 1, 0
          %v1794 = vsel %vm1730, 1, 0
          %v1795 = vsel %vm1731, 1, 0
          %v1796 = vsel %vm1732, 1, 0
          %v1797 = vsel %vm1733, 1, 0
          %v1798 = vsel %vm1734, 1, 0
          %v1799 = vsel %vm1735, 1, 0
          %v1800 = vsel %vm1736, 1, 0
          %v1801 = vsel %vm1737, 1, 0
          %v1802 = vsel %vm1738, 1, 0
          %v1803 = vsel %vm1739, 1, 0
          %v1804 = vsel %vm1740, 1, 0
          %v1805 = vsel %vm1741, 1, 0
          %v1806 = vsel %vm1742, 1, 0
          %v1807 = vsel %vm1743, 1, 0
          %v1808 = vsel %vm1744, 1, 0
          %v1809 = vsel %vm1745, 1, 0
          %v1810 = vsel %vm1746, 1, 0
          %v1811 = vsel %vm1747, 1, 0
          %v1812 = vsel %vm1748, 1, 0
          %v1813 = vsel %vm1749, 1, 0
          %v1814 = vsel %vm1750, 1, 0
          %v1815 = vsel %vm1751, 1, 0
          %v1816 = vsel %vm1752, 1, 0
          %v1817 = vsel %vm1753, 1, 0
          %v1818 = vsel %vm1754, 1, 0
          %v1819 = vsel %vm1755, 1, 0
          %v1820 = vsel %vm1756, 1, 0
          %v1821 = vsel %vm1757, 1, 0
          %v1822 = vsel %vm1758, 1, 0
          %v1823 = vsel %vm1759, 1, 0
          %v1824 = vsel %vm1760, 1, 0
          %v1825 = vsel %vm1761, 1, 0
          %v1826 = vsel %vm1762, 1, 0
          %v1827 = vsel %vm1763, 1, 0
          %v1828 = vsel %vm1764, 1, 0
          %v1829 = vsel %vm1765, 1, 0
          %v1830 = vsel %vm1766, 1, 0
          %v1831 = vsel %vm1767, 1, 0
          %v1832 = vsel %vm1768, 1, 0
          %v1833 = vsel %vm1769, 1, 0
          %v1834 = vsel %vm1770, 1, 0
          %v1835 = vsel %vm1771, 1, 0
          %v1836 = vsel %vm1772, 1, 0
          %v1837 = vsel %vm1773, 1, 0
          %v1838 = vsel %vm1774, 1, 0
          %v1839 = vsel %vm1775, 1, 0
          %v1840 = vsel %vm1776, 1, 0
          %v1841 = vsel %vm1777, 1, 0
          %v1842 = vsel %vm1778, 1, 0
          %v1843 = vsel %vm1779, 1, 0
          %v1844 = vsel %vm1780, 1, 0
          %v1845 = vsel %vm1781, 1, 0
          %v1846 = vsel %vm1782, 1, 0
          %v1847 = vsel %vm1783, 1, 0
          %v1848 = vsel %vm1784, 1, 0
          %v1849 = vsel %vm1785, 1, 0
          %v1850 = vcvt.s32.f32 %v1786
          %v1851 = vcvt.s32.f32 %v1787
          %v1852 = vcvt.s32.f32 %v1788
          %v1853 = vcvt.s32.f32 %v1789
          %v1854 = vcvt.s32.f32 %v1790
          %v1855 = vcvt.s32.f32 %v1791
          %v1856 = vcvt.s32.f32 %v1792
          %v1857 = vcvt.s32.f32 %v1793
          %v1858 = vcvt.s32.f32 %v1794
          %v1859 = vcvt.s32.f32 %v1795
          %v1860 = vcvt.s32.f32 %v1796
          %v1861 = vcvt.s32.f32 %v1797
          %v1862 = vcvt.s32.f32 %v1798
          %v1863 = vcvt.s32.f32 %v1799
          %v1864 = vcvt.s32.f32 %v1800
          %v1865 = vcvt.s32.f32 %v1801
          %v1866 = vcvt.s32.f32 %v1802
          %v1867 = vcvt.s32.f32 %v1803
          %v1868 = vcvt.s32.f32 %v1804
          %v1869 = vcvt.s32.f32 %v1805
          %v1870 = vcvt.s32.f32 %v1806
          %v1871 = vcvt.s32.f32 %v1807
          %v1872 = vcvt.s32.f32 %v1808
          %v1873 = vcvt.s32.f32 %v1809
          %v1874 = vcvt.s32.f32 %v1810
          %v1875 = vcvt.s32.f32 %v1811
          %v1876 = vcvt.s32.f32 %v1812
          %v1877 = vcvt.s32.f32 %v1813
          %v1878 = vcvt.s32.f32 %v1814
          %v1879 = vcvt.s32.f32 %v1815
          %v1880 = vcvt.s32.f32 %v1816
          %v1881 = vcvt.s32.f32 %v1817
          %v1882 = vcvt.s32.f32 %v1818
          %v1883 = vcvt.s32.f32 %v1819
          %v1884 = vcvt.s32.f32 %v1820
          %v1885 = vcvt.s32.f32 %v1821
          %v1886 = vcvt.s32.f32 %v1822
          %v1887 = vcvt.s32.f32 %v1823
          %v1888 = vcvt.s32.f32 %v1824
          %v1889 = vcvt.s32.f32 %v1825
          %v1890 = vcvt.s32.f32 %v1826
          %v1891 = vcvt.s32.f32 %v1827
          %v1892 = vcvt.s32.f32 %v1828
          %v1893 = vcvt.s32.f32 %v1829
          %v1894 = vcvt.s32.f32 %v1830
          %v1895 = vcvt.s32.f32 %v1831
          %v1896 = vcvt.s32.f32 %v1832
          %v1897 = vcvt.s32.f32 %v1833
          %v1898 = vcvt.s32.f32 %v1834
          %v1899 = vcvt.s32.f32 %v1835
          %v1900 = vcvt.s32.f32 %v1836
          %v1901 = vcvt.s32.f32 %v1837
          %v1902 = vcvt.s32.f32 %v1838
          %v1903 = vcvt.s32.f32 %v1839
          %v1904 = vcvt.s32.f32 %v1840
          %v1905 = vcvt.s32.f32 %v1841
          %v1906 = vcvt.s32.f32 %v1842
          %v1907 = vcvt.s32.f32 %v1843
          %v1908 = vcvt.s32.f32 %v1844
          %v1909 = vcvt.s32.f32 %v1845
          %v1910 = vcvt.s32.f32 %v1846
          %v1911 = vcvt.s32.f32 %v1847
          %v1912 = vcvt.s32.f32 %v1848
          %v1913 = vcvt.s32.f32 %v1849
          %1914 = vmatprep.subr.mxu0 %v1881
          %1915 = vmatpush1.msra.mxu0 %v1880
          %1916 = vmatprep.subr.mxu0 %v1879
          %1917 = vmatpush1.msra.mxu0 %v1878
          %1918 = vmatprep.subr.mxu0 %v1877
          %1919 = vmatpush1.msra.mxu0 %v1876
          %1920 = vmatprep.subr.mxu0 %v1875
          %1921 = vmatpush1.msra.mxu0 %v1874
          %1922 = vmatprep.subr.mxu0 %v1873
          %1923 = vmatpush1.msra.mxu0 %v1872
          %1924 = vmatprep.subr.mxu0 %v1871
          %1925 = vmatpush1.msra.mxu0 %v1870
          %1926 = vmatprep.subr.mxu0 %v1869
          %1927 = vmatpush1.msra.mxu0 %v1868
          %1928 = vmatprep.subr.mxu0 %v1867
          %1929 = vmatpush1.msra.mxu0 %v1866
          %1930 = vmatprep.subr.mxu0 %v1865
          %1931 = vmatpush1.msra.mxu0 %v1864
          %1932 = vmatprep.subr.mxu0 %v1863
          %1933 = vmatpush1.msra.mxu0 %v1862
          %1934 = vmatprep.subr.mxu0 %v1861
          %1935 = vmatpush1.msra.mxu0 %v1860
          %1936 = vmatprep.subr.mxu0 %v1859
          %1937 = vmatpush1.msra.mxu0 %v1858
          %1938 = vmatprep.subr.mxu0 %v1857
          %1939 = vmatpush1.msra.mxu0 %v1856
          %1940 = vmatprep.subr.mxu0 %v1855
          %1941 = vmatpush1.msra.mxu0 %v1854
          %1942 = vmatprep.subr.mxu0 %v1853
          %1943 = vmatpush1.msra.mxu0 %v1852
          %1944 = vmatprep.subr.mxu0 %v1851
          %1945 = vmatpush1.msra.mxu0 %v1850
          %1946 = vmatprep.subr.mxu0 %v1913
          %1947 = vmatpush2.msra.mxu0 %v1912
          %1948 = vmatprep.subr.mxu0 %v1911
          %1949 = vmatpush2.msra.mxu0 %v1910
          %1950 = vmatprep.subr.mxu0 %v1909
          %1951 = vmatpush2.msra.mxu0 %v1908
          %1952 = vmatprep.subr.mxu0 %v1907
          %1953 = vmatpush2.msra.mxu0 %v1906
          %1954 = vmatprep.subr.mxu0 %v1905
          %1955 = vmatpush2.msra.mxu0 %v1904
          %1956 = vmatprep.subr.mxu0 %v1903
          %1957 = vmatpush2.msra.mxu0 %v1902
          %1958 = vmatprep.subr.mxu0 %v1901
          %1959 = vmatpush2.msra.mxu0 %v1900
          %1960 = vmatprep.subr.mxu0 %v1899
          %1961 = vmatpush2.msra.mxu0 %v1898
          %1962 = vmatprep.subr.mxu0 %v1897
          %1963 = vmatpush2.msra.mxu0 %v1896
          %1964 = vmatprep.subr.mxu0 %v1895
          %1965 = vmatpush2.msra.mxu0 %v1894
          %1966 = vmatprep.subr.mxu0 %v1893
          %1967 = vmatpush2.msra.mxu0 %v1892
          %1968 = vmatprep.subr.mxu0 %v1891
          %1969 = vmatpush2.msra.mxu0 %v1890
          %1970 = vmatprep.subr.mxu0 %v1889
          %1971 = vmatpush2.msra.mxu0 %v1888
          %1972 = vmatprep.subr.mxu0 %v1887
          %1973 = vmatpush2.msra.mxu0 %v1886
          %1974 = vmatprep.subr.mxu0 %v1885
          %1975 = vmatpush2.msra.mxu0 %v1884
          %1976 = vmatprep.subr.mxu0 %v1883
          %1977 = vmatpush2.msra.mxu0 %v1882
          %1978 = vmatprep.mubr.f32.mxu0 %v315
          %1979 = vmatmul.mubr.f32.gmra.mxu0 %v314
          %v1980 = vpop.f32.mrf.mxu0
          %v1981 = vadd.f32 0.0, %v1980
          %v1982 = vpop.f32.mrf.mxu0
          %v1983 = vadd.f32 0.0, %v1982
          %1984 = vdwg.mxu0
          %1985 = vst [vmem:[#allocation2 + $0x50] sm:$0xff] %v1981
          %1986 = vst [vmem:[#allocation2 + $0x58] sm:$0xff] %v1983
          %v1987 = vlaneseq
          %v1988 = vshrl.u32 %v1987, 7
          %v1989 = vsub.s32 6, %v1988
          %v1990 = vrot.slane %v310, %v1989
          %v1991 = vlaneseq
          %v1992 = vshrl.u32 %v1991, 7
          %v1993 = vsub.s32 6, %v1992
          %v1994 = vrot.slane %v311, %v1993
          %vm1995 = vcmp.eq.s32.totalorder %v317, %v1990
          %vm1996 = vcmp.eq.s32.totalorder %v317, %v1994
          %vm1997 = vcmp.eq.s32.totalorder %v318, %v1990
          %vm1998 = vcmp.eq.s32.totalorder %v318, %v1994
          %vm1999 = vcmp.eq.s32.totalorder %v319, %v1990
          %vm2000 = vcmp.eq.s32.totalorder %v319, %v1994
          %vm2001 = vcmp.eq.s32.totalorder %v320, %v1990
          %vm2002 = vcmp.eq.s32.totalorder %v320, %v1994
          %vm2003 = vcmp.eq.s32.totalorder %v321, %v1990
          %vm2004 = vcmp.eq.s32.totalorder %v321, %v1994
          %vm2005 = vcmp.eq.s32.totalorder %v322, %v1990
          %vm2006 = vcmp.eq.s32.totalorder %v322, %v1994
          %vm2007 = vcmp.eq.s32.totalorder %v323, %v1990
          %vm2008 = vcmp.eq.s32.totalorder %v323, %v1994
          %vm2009 = vcmp.eq.s32.totalorder %v324, %v1990
          %vm2010 = vcmp.eq.s32.totalorder %v324, %v1994
          %vm2011 = vcmp.eq.s32.totalorder %v325, %v1990
          %vm2012 = vcmp.eq.s32.totalorder %v325, %v1994
          %vm2013 = vcmp.eq.s32.totalorder %v326, %v1990
          %vm2014 = vcmp.eq.s32.totalorder %v326, %v1994
          %vm2015 = vcmp.eq.s32.totalorder %v327, %v1990
          %vm2016 = vcmp.eq.s32.totalorder %v327, %v1994
          %vm2017 = vcmp.eq.s32.totalorder %v328, %v1990
          %vm2018 = vcmp.eq.s32.totalorder %v328, %v1994
          %vm2019 = vcmp.eq.s32.totalorder %v329, %v1990
          %vm2020 = vcmp.eq.s32.totalorder %v329, %v1994
          %vm2021 = vcmp.eq.s32.totalorder %v330, %v1990
          %vm2022 = vcmp.eq.s32.totalorder %v330, %v1994
          %vm2023 = vcmp.eq.s32.totalorder %v331, %v1990
          %vm2024 = vcmp.eq.s32.totalorder %v331, %v1994
          %vm2025 = vcmp.eq.s32.totalorder %v332, %v1990
          %vm2026 = vcmp.eq.s32.totalorder %v332, %v1994
          %vm2027 = vcmp.eq.s32.totalorder %v333, %v1990
          %vm2028 = vcmp.eq.s32.totalorder %v333, %v1994
          %vm2029 = vcmp.eq.s32.totalorder %v334, %v1990
          %vm2030 = vcmp.eq.s32.totalorder %v334, %v1994
          %vm2031 = vcmp.eq.s32.totalorder %v335, %v1990
          %vm2032 = vcmp.eq.s32.totalorder %v335, %v1994
          %vm2033 = vcmp.eq.s32.totalorder %v336, %v1990
          %vm2034 = vcmp.eq.s32.totalorder %v336, %v1994
          %vm2035 = vcmp.eq.s32.totalorder %v337, %v1990
          %vm2036 = vcmp.eq.s32.totalorder %v337, %v1994
          %vm2037 = vcmp.eq.s32.totalorder %v338, %v1990
          %vm2038 = vcmp.eq.s32.totalorder %v338, %v1994
          %vm2039 = vcmp.eq.s32.totalorder %v339, %v1990
          %vm2040 = vcmp.eq.s32.totalorder %v339, %v1994
          %vm2041 = vcmp.eq.s32.totalorder %v340, %v1990
          %vm2042 = vcmp.eq.s32.totalorder %v340, %v1994
          %vm2043 = vcmp.eq.s32.totalorder %v341, %v1990
          %vm2044 = vcmp.eq.s32.totalorder %v341, %v1994
          %vm2045 = vcmp.eq.s32.totalorder %v342, %v1990
          %vm2046 = vcmp.eq.s32.totalorder %v342, %v1994
          %vm2047 = vcmp.eq.s32.totalorder %v343, %v1990
          %vm2048 = vcmp.eq.s32.totalorder %v343, %v1994
          %vm2049 = vcmp.eq.s32.totalorder %v344, %v1990
          %vm2050 = vcmp.eq.s32.totalorder %v344, %v1994
          %vm2051 = vcmp.eq.s32.totalorder %v345, %v1990
          %vm2052 = vcmp.eq.s32.totalorder %v345, %v1994
          %vm2053 = vcmp.eq.s32.totalorder %v346, %v1990
          %vm2054 = vcmp.eq.s32.totalorder %v346, %v1994
          %vm2055 = vcmp.eq.s32.totalorder %v347, %v1990
          %vm2056 = vcmp.eq.s32.totalorder %v347, %v1994
          %vm2057 = vcmp.eq.s32.totalorder %v348, %v1990
          %vm2058 = vcmp.eq.s32.totalorder %v348, %v1994
          %v2059 = vsel %vm1995, 1, 0
          %v2060 = vsel %vm1996, 1, 0
          %v2061 = vsel %vm1997, 1, 0
          %v2062 = vsel %vm1998, 1, 0
          %v2063 = vsel %vm1999, 1, 0
          %v2064 = vsel %vm2000, 1, 0
          %v2065 = vsel %vm2001, 1, 0
          %v2066 = vsel %vm2002, 1, 0
          %v2067 = vsel %vm2003, 1, 0
          %v2068 = vsel %vm2004, 1, 0
          %v2069 = vsel %vm2005, 1, 0
          %v2070 = vsel %vm2006, 1, 0
          %v2071 = vsel %vm2007, 1, 0
          %v2072 = vsel %vm2008, 1, 0
          %v2073 = vsel %vm2009, 1, 0
          %v2074 = vsel %vm2010, 1, 0
          %v2075 = vsel %vm2011, 1, 0
          %v2076 = vsel %vm2012, 1, 0
          %v2077 = vsel %vm2013, 1, 0
          %v2078 = vsel %vm2014, 1, 0
          %v2079 = vsel %vm2015, 1, 0
          %v2080 = vsel %vm2016, 1, 0
          %v2081 = vsel %vm2017, 1, 0
          %v2082 = vsel %vm2018, 1, 0
          %v2083 = vsel %vm2019, 1, 0
          %v2084 = vsel %vm2020, 1, 0
          %v2085 = vsel %vm2021, 1, 0
          %v2086 = vsel %vm2022, 1, 0
          %v2087 = vsel %vm2023, 1, 0
          %v2088 = vsel %vm2024, 1, 0
          %v2089 = vsel %vm2025, 1, 0
          %v2090 = vsel %vm2026, 1, 0
          %v2091 = vsel %vm2027, 1, 0
          %v2092 = vsel %vm2028, 1, 0
          %v2093 = vsel %vm2029, 1, 0
          %v2094 = vsel %vm2030, 1, 0
          %v2095 = vsel %vm2031, 1, 0
          %v2096 = vsel %vm2032, 1, 0
          %v2097 = vsel %vm2033, 1, 0
          %v2098 = vsel %vm2034, 1, 0
          %v2099 = vsel %vm2035, 1, 0
          %v2100 = vsel %vm2036, 1, 0
          %v2101 = vsel %vm2037, 1, 0
          %v2102 = vsel %vm2038, 1, 0
          %v2103 = vsel %vm2039, 1, 0
          %v2104 = vsel %vm2040, 1, 0
          %v2105 = vsel %vm2041, 1, 0
          %v2106 = vsel %vm2042, 1, 0
          %v2107 = vsel %vm2043, 1, 0
          %v2108 = vsel %vm2044, 1, 0
          %v2109 = vsel %vm2045, 1, 0
          %v2110 = vsel %vm2046, 1, 0
          %v2111 = vsel %vm2047, 1, 0
          %v2112 = vsel %vm2048, 1, 0
          %v2113 = vsel %vm2049, 1, 0
          %v2114 = vsel %vm2050, 1, 0
          %v2115 = vsel %vm2051, 1, 0
          %v2116 = vsel %vm2052, 1, 0
          %v2117 = vsel %vm2053, 1, 0
          %v2118 = vsel %vm2054, 1, 0
          %v2119 = vsel %vm2055, 1, 0
          %v2120 = vsel %vm2056, 1, 0
          %v2121 = vsel %vm2057, 1, 0
          %v2122 = vsel %vm2058, 1, 0
          %v2123 = vcvt.s32.f32 %v2059
          %v2124 = vcvt.s32.f32 %v2060
          %v2125 = vcvt.s32.f32 %v2061
          %v2126 = vcvt.s32.f32 %v2062
          %v2127 = vcvt.s32.f32 %v2063
          %v2128 = vcvt.s32.f32 %v2064
          %v2129 = vcvt.s32.f32 %v2065
          %v2130 = vcvt.s32.f32 %v2066
          %v2131 = vcvt.s32.f32 %v2067
          %v2132 = vcvt.s32.f32 %v2068
          %v2133 = vcvt.s32.f32 %v2069
          %v2134 = vcvt.s32.f32 %v2070
          %v2135 = vcvt.s32.f32 %v2071
          %v2136 = vcvt.s32.f32 %v2072
          %v2137 = vcvt.s32.f32 %v2073
          %v2138 = vcvt.s32.f32 %v2074
          %v2139 = vcvt.s32.f32 %v2075
          %v2140 = vcvt.s32.f32 %v2076
          %v2141 = vcvt.s32.f32 %v2077
          %v2142 = vcvt.s32.f32 %v2078
          %v2143 = vcvt.s32.f32 %v2079
          %v2144 = vcvt.s32.f32 %v2080
          %v2145 = vcvt.s32.f32 %v2081
          %v2146 = vcvt.s32.f32 %v2082
          %v2147 = vcvt.s32.f32 %v2083
          %v2148 = vcvt.s32.f32 %v2084
          %v2149 = vcvt.s32.f32 %v2085
          %v2150 = vcvt.s32.f32 %v2086
          %v2151 = vcvt.s32.f32 %v2087
          %v2152 = vcvt.s32.f32 %v2088
          %v2153 = vcvt.s32.f32 %v2089
          %v2154 = vcvt.s32.f32 %v2090
          %v2155 = vcvt.s32.f32 %v2091
          %v2156 = vcvt.s32.f32 %v2092
          %v2157 = vcvt.s32.f32 %v2093
          %v2158 = vcvt.s32.f32 %v2094
          %v2159 = vcvt.s32.f32 %v2095
          %v2160 = vcvt.s32.f32 %v2096
          %v2161 = vcvt.s32.f32 %v2097
          %v2162 = vcvt.s32.f32 %v2098
          %v2163 = vcvt.s32.f32 %v2099
          %v2164 = vcvt.s32.f32 %v2100
          %v2165 = vcvt.s32.f32 %v2101
          %v2166 = vcvt.s32.f32 %v2102
          %v2167 = vcvt.s32.f32 %v2103
          %v2168 = vcvt.s32.f32 %v2104
          %v2169 = vcvt.s32.f32 %v2105
          %v2170 = vcvt.s32.f32 %v2106
          %v2171 = vcvt.s32.f32 %v2107
          %v2172 = vcvt.s32.f32 %v2108
          %v2173 = vcvt.s32.f32 %v2109
          %v2174 = vcvt.s32.f32 %v2110
          %v2175 = vcvt.s32.f32 %v2111
          %v2176 = vcvt.s32.f32 %v2112
          %v2177 = vcvt.s32.f32 %v2113
          %v2178 = vcvt.s32.f32 %v2114
          %v2179 = vcvt.s32.f32 %v2115
          %v2180 = vcvt.s32.f32 %v2116
          %v2181 = vcvt.s32.f32 %v2117
          %v2182 = vcvt.s32.f32 %v2118
          %v2183 = vcvt.s32.f32 %v2119
          %v2184 = vcvt.s32.f32 %v2120
          %v2185 = vcvt.s32.f32 %v2121
          %v2186 = vcvt.s32.f32 %v2122
          %2187 = vmatprep.subr.mxu0 %v2154
          %2188 = vmatpush1.msra.mxu0 %v2153
          %2189 = vmatprep.subr.mxu0 %v2152
          %2190 = vmatpush1.msra.mxu0 %v2151
          %2191 = vmatprep.subr.mxu0 %v2150
          %2192 = vmatpush1.msra.mxu0 %v2149
          %2193 = vmatprep.subr.mxu0 %v2148
          %2194 = vmatpush1.msra.mxu0 %v2147
          %2195 = vmatprep.subr.mxu0 %v2146
          %2196 = vmatpush1.msra.mxu0 %v2145
          %2197 = vmatprep.subr.mxu0 %v2144
          %2198 = vmatpush1.msra.mxu0 %v2143
          %2199 = vmatprep.subr.mxu0 %v2142
          %2200 = vmatpush1.msra.mxu0 %v2141
          %2201 = vmatprep.subr.mxu0 %v2140
          %2202 = vmatpush1.msra.mxu0 %v2139
          %2203 = vmatprep.subr.mxu0 %v2138
          %2204 = vmatpush1.msra.mxu0 %v2137
          %2205 = vmatprep.subr.mxu0 %v2136
          %2206 = vmatpush1.msra.mxu0 %v2135
          %2207 = vmatprep.subr.mxu0 %v2134
          %2208 = vmatpush1.msra.mxu0 %v2133
          %2209 = vmatprep.subr.mxu0 %v2132
          %2210 = vmatpush1.msra.mxu0 %v2131
          %2211 = vmatprep.subr.mxu0 %v2130
          %2212 = vmatpush1.msra.mxu0 %v2129
          %2213 = vmatprep.subr.mxu0 %v2128
          %2214 = vmatpush1.msra.mxu0 %v2127
          %2215 = vmatprep.subr.mxu0 %v2126
          %2216 = vmatpush1.msra.mxu0 %v2125
          %2217 = vmatprep.subr.mxu0 %v2124
          %2218 = vmatpush1.msra.mxu0 %v2123
          %2219 = vmatprep.subr.mxu0 %v2186
          %2220 = vmatpush2.msra.mxu0 %v2185
          %2221 = vmatprep.subr.mxu0 %v2184
          %2222 = vmatpush2.msra.mxu0 %v2183
          %2223 = vmatprep.subr.mxu0 %v2182
          %2224 = vmatpush2.msra.mxu0 %v2181
          %2225 = vmatprep.subr.mxu0 %v2180
          %2226 = vmatpush2.msra.mxu0 %v2179
          %2227 = vmatprep.subr.mxu0 %v2178
          %2228 = vmatpush2.msra.mxu0 %v2177
          %2229 = vmatprep.subr.mxu0 %v2176
          %2230 = vmatpush2.msra.mxu0 %v2175
          %2231 = vmatprep.subr.mxu0 %v2174
          %2232 = vmatpush2.msra.mxu0 %v2173
          %2233 = vmatprep.subr.mxu0 %v2172
          %2234 = vmatpush2.msra.mxu0 %v2171
          %2235 = vmatprep.subr.mxu0 %v2170
          %2236 = vmatpush2.msra.mxu0 %v2169
          %2237 = vmatprep.subr.mxu0 %v2168
          %2238 = vmatpush2.msra.mxu0 %v2167
          %2239 = vmatprep.subr.mxu0 %v2166
          %2240 = vmatpush2.msra.mxu0 %v2165
          %2241 = vmatprep.subr.mxu0 %v2164
          %2242 = vmatpush2.msra.mxu0 %v2163
          %2243 = vmatprep.subr.mxu0 %v2162
          %2244 = vmatpush2.msra.mxu0 %v2161
          %2245 = vmatprep.subr.mxu0 %v2160
          %2246 = vmatpush2.msra.mxu0 %v2159
          %2247 = vmatprep.subr.mxu0 %v2158
          %2248 = vmatpush2.msra.mxu0 %v2157
          %2249 = vmatprep.subr.mxu0 %v2156
          %2250 = vmatpush2.msra.mxu0 %v2155
          %2251 = vmatprep.mubr.f32.mxu0 %v315
          %2252 = vmatmul.mubr.f32.gmra.mxu0 %v314
          %v2253 = vpop.f32.mrf.mxu0
          %v2254 = vadd.f32 0.0, %v2253
          %v2255 = vpop.f32.mrf.mxu0
          %v2256 = vadd.f32 0.0, %v2255
          %2257 = vdwg.mxu0
          %2258 = vst [vmem:[#allocation2 + $0x60] sm:$0xff] %v2254
          %2259 = vst [vmem:[#allocation2 + $0x68] sm:$0xff] %v2256
          %v2260 = vlaneseq
          %v2261 = vshrl.u32 %v2260, 7
          %v2262 = vsub.s32 7, %v2261
          %v2263 = vrot.slane %v310, %v2262
          %v2264 = vlaneseq
          %v2265 = vshrl.u32 %v2264, 7
          %v2266 = vsub.s32 7, %v2265
          %v2267 = vrot.slane %v311, %v2266
          %vm2268 = vcmp.eq.s32.totalorder %v317, %v2263
          %vm2269 = vcmp.eq.s32.totalorder %v317, %v2267
          %vm2270 = vcmp.eq.s32.totalorder %v318, %v2263
          %vm2271 = vcmp.eq.s32.totalorder %v318, %v2267
          %vm2272 = vcmp.eq.s32.totalorder %v319, %v2263
          %vm2273 = vcmp.eq.s32.totalorder %v319, %v2267
          %vm2274 = vcmp.eq.s32.totalorder %v320, %v2263
          %vm2275 = vcmp.eq.s32.totalorder %v320, %v2267
          %vm2276 = vcmp.eq.s32.totalorder %v321, %v2263
          %vm2277 = vcmp.eq.s32.totalorder %v321, %v2267
          %vm2278 = vcmp.eq.s32.totalorder %v322, %v2263
          %vm2279 = vcmp.eq.s32.totalorder %v322, %v2267
          %vm2280 = vcmp.eq.s32.totalorder %v323, %v2263
          %vm2281 = vcmp.eq.s32.totalorder %v323, %v2267
          %vm2282 = vcmp.eq.s32.totalorder %v324, %v2263
          %vm2283 = vcmp.eq.s32.totalorder %v324, %v2267
          %vm2284 = vcmp.eq.s32.totalorder %v325, %v2263
          %vm2285 = vcmp.eq.s32.totalorder %v325, %v2267
          %vm2286 = vcmp.eq.s32.totalorder %v326, %v2263
          %vm2287 = vcmp.eq.s32.totalorder %v326, %v2267
          %vm2288 = vcmp.eq.s32.totalorder %v327, %v2263
          %vm2289 = vcmp.eq.s32.totalorder %v327, %v2267
          %vm2290 = vcmp.eq.s32.totalorder %v328, %v2263
          %vm2291 = vcmp.eq.s32.totalorder %v328, %v2267
          %vm2292 = vcmp.eq.s32.totalorder %v329, %v2263
          %vm2293 = vcmp.eq.s32.totalorder %v329, %v2267
          %vm2294 = vcmp.eq.s32.totalorder %v330, %v2263
          %vm2295 = vcmp.eq.s32.totalorder %v330, %v2267
          %vm2296 = vcmp.eq.s32.totalorder %v331, %v2263
          %vm2297 = vcmp.eq.s32.totalorder %v331, %v2267
          %vm2298 = vcmp.eq.s32.totalorder %v332, %v2263
          %vm2299 = vcmp.eq.s32.totalorder %v332, %v2267
          %vm2300 = vcmp.eq.s32.totalorder %v333, %v2263
          %vm2301 = vcmp.eq.s32.totalorder %v333, %v2267
          %vm2302 = vcmp.eq.s32.totalorder %v334, %v2263
          %vm2303 = vcmp.eq.s32.totalorder %v334, %v2267
          %vm2304 = vcmp.eq.s32.totalorder %v335, %v2263
          %vm2305 = vcmp.eq.s32.totalorder %v335, %v2267
          %vm2306 = vcmp.eq.s32.totalorder %v336, %v2263
          %vm2307 = vcmp.eq.s32.totalorder %v336, %v2267
          %vm2308 = vcmp.eq.s32.totalorder %v337, %v2263
          %vm2309 = vcmp.eq.s32.totalorder %v337, %v2267
          %vm2310 = vcmp.eq.s32.totalorder %v338, %v2263
          %vm2311 = vcmp.eq.s32.totalorder %v338, %v2267
          %vm2312 = vcmp.eq.s32.totalorder %v339, %v2263
          %vm2313 = vcmp.eq.s32.totalorder %v339, %v2267
          %vm2314 = vcmp.eq.s32.totalorder %v340, %v2263
          %vm2315 = vcmp.eq.s32.totalorder %v340, %v2267
          %vm2316 = vcmp.eq.s32.totalorder %v341, %v2263
          %vm2317 = vcmp.eq.s32.totalorder %v341, %v2267
          %vm2318 = vcmp.eq.s32.totalorder %v342, %v2263
          %vm2319 = vcmp.eq.s32.totalorder %v342, %v2267
          %vm2320 = vcmp.eq.s32.totalorder %v343, %v2263
          %vm2321 = vcmp.eq.s32.totalorder %v343, %v2267
          %vm2322 = vcmp.eq.s32.totalorder %v344, %v2263
          %vm2323 = vcmp.eq.s32.totalorder %v344, %v2267
          %vm2324 = vcmp.eq.s32.totalorder %v345, %v2263
          %vm2325 = vcmp.eq.s32.totalorder %v345, %v2267
          %vm2326 = vcmp.eq.s32.totalorder %v346, %v2263
          %vm2327 = vcmp.eq.s32.totalorder %v346, %v2267
          %vm2328 = vcmp.eq.s32.totalorder %v347, %v2263
          %vm2329 = vcmp.eq.s32.totalorder %v347, %v2267
          %vm2330 = vcmp.eq.s32.totalorder %v348, %v2263
          %vm2331 = vcmp.eq.s32.totalorder %v348, %v2267
          %v2332 = vsel %vm2268, 1, 0
          %v2333 = vsel %vm2269, 1, 0
          %v2334 = vsel %vm2270, 1, 0
          %v2335 = vsel %vm2271, 1, 0
          %v2336 = vsel %vm2272, 1, 0
          %v2337 = vsel %vm2273, 1, 0
          %v2338 = vsel %vm2274, 1, 0
          %v2339 = vsel %vm2275, 1, 0
          %v2340 = vsel %vm2276, 1, 0
          %v2341 = vsel %vm2277, 1, 0
          %v2342 = vsel %vm2278, 1, 0
          %v2343 = vsel %vm2279, 1, 0
          %v2344 = vsel %vm2280, 1, 0
          %v2345 = vsel %vm2281, 1, 0
          %v2346 = vsel %vm2282, 1, 0
          %v2347 = vsel %vm2283, 1, 0
          %v2348 = vsel %vm2284, 1, 0
          %v2349 = vsel %vm2285, 1, 0
          %v2350 = vsel %vm2286, 1, 0
          %v2351 = vsel %vm2287, 1, 0
          %v2352 = vsel %vm2288, 1, 0
          %v2353 = vsel %vm2289, 1, 0
          %v2354 = vsel %vm2290, 1, 0
          %v2355 = vsel %vm2291, 1, 0
          %v2356 = vsel %vm2292, 1, 0
          %v2357 = vsel %vm2293, 1, 0
          %v2358 = vsel %vm2294, 1, 0
          %v2359 = vsel %vm2295, 1, 0
          %v2360 = vsel %vm2296, 1, 0
          %v2361 = vsel %vm2297, 1, 0
          %v2362 = vsel %vm2298, 1, 0
          %v2363 = vsel %vm2299, 1, 0
          %v2364 = vsel %vm2300, 1, 0
          %v2365 = vsel %vm2301, 1, 0
          %v2366 = vsel %vm2302, 1, 0
          %v2367 = vsel %vm2303, 1, 0
          %v2368 = vsel %vm2304, 1, 0
          %v2369 = vsel %vm2305, 1, 0
          %v2370 = vsel %vm2306, 1, 0
          %v2371 = vsel %vm2307, 1, 0
          %v2372 = vsel %vm2308, 1, 0
          %v2373 = vsel %vm2309, 1, 0
          %v2374 = vsel %vm2310, 1, 0
          %v2375 = vsel %vm2311, 1, 0
          %v2376 = vsel %vm2312, 1, 0
          %v2377 = vsel %vm2313, 1, 0
          %v2378 = vsel %vm2314, 1, 0
          %v2379 = vsel %vm2315, 1, 0
          %v2380 = vsel %vm2316, 1, 0
          %v2381 = vsel %vm2317, 1, 0
          %v2382 = vsel %vm2318, 1, 0
          %v2383 = vsel %vm2319, 1, 0
          %v2384 = vsel %vm2320, 1, 0
          %v2385 = vsel %vm2321, 1, 0
          %v2386 = vsel %vm2322, 1, 0
          %v2387 = vsel %vm2323, 1, 0
          %v2388 = vsel %vm2324, 1, 0
          %v2389 = vsel %vm2325, 1, 0
          %v2390 = vsel %vm2326, 1, 0
          %v2391 = vsel %vm2327, 1, 0
          %v2392 = vsel %vm2328, 1, 0
          %v2393 = vsel %vm2329, 1, 0
          %v2394 = vsel %vm2330, 1, 0
          %v2395 = vsel %vm2331, 1, 0
          %v2396 = vcvt.s32.f32 %v2332
          %v2397 = vcvt.s32.f32 %v2333
          %v2398 = vcvt.s32.f32 %v2334
          %v2399 = vcvt.s32.f32 %v2335
          %v2400 = vcvt.s32.f32 %v2336
          %v2401 = vcvt.s32.f32 %v2337
          %v2402 = vcvt.s32.f32 %v2338
          %v2403 = vcvt.s32.f32 %v2339
          %v2404 = vcvt.s32.f32 %v2340
          %v2405 = vcvt.s32.f32 %v2341
          %v2406 = vcvt.s32.f32 %v2342
          %v2407 = vcvt.s32.f32 %v2343
          %v2408 = vcvt.s32.f32 %v2344
          %v2409 = vcvt.s32.f32 %v2345
          %v2410 = vcvt.s32.f32 %v2346
          %v2411 = vcvt.s32.f32 %v2347
          %v2412 = vcvt.s32.f32 %v2348
          %v2413 = vcvt.s32.f32 %v2349
          %v2414 = vcvt.s32.f32 %v2350
          %v2415 = vcvt.s32.f32 %v2351
          %v2416 = vcvt.s32.f32 %v2352
          %v2417 = vcvt.s32.f32 %v2353
          %v2418 = vcvt.s32.f32 %v2354
          %v2419 = vcvt.s32.f32 %v2355
          %v2420 = vcvt.s32.f32 %v2356
          %v2421 = vcvt.s32.f32 %v2357
          %v2422 = vcvt.s32.f32 %v2358
          %v2423 = vcvt.s32.f32 %v2359
          %v2424 = vcvt.s32.f32 %v2360
          %v2425 = vcvt.s32.f32 %v2361
          %v2426 = vcvt.s32.f32 %v2362
          %v2427 = vcvt.s32.f32 %v2363
          %v2428 = vcvt.s32.f32 %v2364
          %v2429 = vcvt.s32.f32 %v2365
          %v2430 = vcvt.s32.f32 %v2366
          %v2431 = vcvt.s32.f32 %v2367
          %v2432 = vcvt.s32.f32 %v2368
          %v2433 = vcvt.s32.f32 %v2369
          %v2434 = vcvt.s32.f32 %v2370
          %v2435 = vcvt.s32.f32 %v2371
          %v2436 = vcvt.s32.f32 %v2372
          %v2437 = vcvt.s32.f32 %v2373
          %v2438 = vcvt.s32.f32 %v2374
          %v2439 = vcvt.s32.f32 %v2375
          %v2440 = vcvt.s32.f32 %v2376
          %v2441 = vcvt.s32.f32 %v2377
          %v2442 = vcvt.s32.f32 %v2378
          %v2443 = vcvt.s32.f32 %v2379
          %v2444 = vcvt.s32.f32 %v2380
          %v2445 = vcvt.s32.f32 %v2381
          %v2446 = vcvt.s32.f32 %v2382
          %v2447 = vcvt.s32.f32 %v2383
          %v2448 = vcvt.s32.f32 %v2384
          %v2449 = vcvt.s32.f32 %v2385
          %v2450 = vcvt.s32.f32 %v2386
          %v2451 = vcvt.s32.f32 %v2387
          %v2452 = vcvt.s32.f32 %v2388
          %v2453 = vcvt.s32.f32 %v2389
          %v2454 = vcvt.s32.f32 %v2390
          %v2455 = vcvt.s32.f32 %v2391
          %v2456 = vcvt.s32.f32 %v2392
          %v2457 = vcvt.s32.f32 %v2393
          %v2458 = vcvt.s32.f32 %v2394
          %v2459 = vcvt.s32.f32 %v2395
          %2460 = vmatprep.subr.mxu0 %v2427
          %2461 = vmatpush1.msra.mxu0 %v2426
          %2462 = vmatprep.subr.mxu0 %v2425
          %2463 = vmatpush1.msra.mxu0 %v2424
          %2464 = vmatprep.subr.mxu0 %v2423
          %2465 = vmatpush1.msra.mxu0 %v2422
          %2466 = vmatprep.subr.mxu0 %v2421
          %2467 = vmatpush1.msra.mxu0 %v2420
          %2468 = vmatprep.subr.mxu0 %v2419
          %2469 = vmatpush1.msra.mxu0 %v2418
          %2470 = vmatprep.subr.mxu0 %v2417
          %2471 = vmatpush1.msra.mxu0 %v2416
          %2472 = vmatprep.subr.mxu0 %v2415
          %2473 = vmatpush1.msra.mxu0 %v2414
          %2474 = vmatprep.subr.mxu0 %v2413
          %2475 = vmatpush1.msra.mxu0 %v2412
          %2476 = vmatprep.subr.mxu0 %v2411
          %2477 = vmatpush1.msra.mxu0 %v2410
          %2478 = vmatprep.subr.mxu0 %v2409
          %2479 = vmatpush1.msra.mxu0 %v2408
          %2480 = vmatprep.subr.mxu0 %v2407
          %2481 = vmatpush1.msra.mxu0 %v2406
          %2482 = vmatprep.subr.mxu0 %v2405
          %2483 = vmatpush1.msra.mxu0 %v2404
          %2484 = vmatprep.subr.mxu0 %v2403
          %2485 = vmatpush1.msra.mxu0 %v2402
          %2486 = vmatprep.subr.mxu0 %v2401
          %2487 = vmatpush1.msra.mxu0 %v2400
          %2488 = vmatprep.subr.mxu0 %v2399
          %2489 = vmatpush1.msra.mxu0 %v2398
          %2490 = vmatprep.subr.mxu0 %v2397
          %2491 = vmatpush1.msra.mxu0 %v2396
          %2492 = vmatprep.subr.mxu0 %v2459
          %2493 = vmatpush2.msra.mxu0 %v2458
          %2494 = vmatprep.subr.mxu0 %v2457
          %2495 = vmatpush2.msra.mxu0 %v2456
          %2496 = vmatprep.subr.mxu0 %v2455
          %2497 = vmatpush2.msra.mxu0 %v2454
          %2498 = vmatprep.subr.mxu0 %v2453
          %2499 = vmatpush2.msra.mxu0 %v2452
          %2500 = vmatprep.subr.mxu0 %v2451
          %2501 = vmatpush2.msra.mxu0 %v2450
          %2502 = vmatprep.subr.mxu0 %v2449
          %2503 = vmatpush2.msra.mxu0 %v2448
          %2504 = vmatprep.subr.mxu0 %v2447
          %2505 = vmatpush2.msra.mxu0 %v2446
          %2506 = vmatprep.subr.mxu0 %v2445
          %2507 = vmatpush2.msra.mxu0 %v2444
          %2508 = vmatprep.subr.mxu0 %v2443
          %2509 = vmatpush2.msra.mxu0 %v2442
          %2510 = vmatprep.subr.mxu0 %v2441
          %2511 = vmatpush2.msra.mxu0 %v2440
          %2512 = vmatprep.subr.mxu0 %v2439
          %2513 = vmatpush2.msra.mxu0 %v2438
          %2514 = vmatprep.subr.mxu0 %v2437
          %2515 = vmatpush2.msra.mxu0 %v2436
          %2516 = vmatprep.subr.mxu0 %v2435
          %2517 = vmatpush2.msra.mxu0 %v2434
          %2518 = vmatprep.subr.mxu0 %v2433
          %2519 = vmatpush2.msra.mxu0 %v2432
          %2520 = vmatprep.subr.mxu0 %v2431
          %2521 = vmatpush2.msra.mxu0 %v2430
          %2522 = vmatprep.subr.mxu0 %v2429
          %2523 = vmatpush2.msra.mxu0 %v2428
          %2524 = vmatprep.mubr.f32.mxu0 %v315
          %2525 = vmatmul.mubr.f32.gmra.mxu0 %v314
          %v2526 = vpop.f32.mrf.mxu0
          %v2527 = vadd.f32 0.0, %v2526
          %v2528 = vpop.f32.mrf.mxu0
          %v2529 = vadd.f32 0.0, %v2528
          %2530 = vdwg.mxu0
          %2531 = vst [vmem:[#allocation2 + $0x70] sm:$0xff] %v2527
          %2532 = vst [vmem:[#allocation2 + $0x78] sm:$0xff] %v2529
          %v2533 = vlaneseq
          %v2534 = vshrl.u32 %v2533, 7
          %v2535 = vsub.s32 0, %v2534
          %v2536 = vrot.slane %v312, %v2535
          %v2537 = vlaneseq
          %v2538 = vshrl.u32 %v2537, 7
          %v2539 = vsub.s32 0, %v2538
          %v2540 = vrot.slane %v313, %v2539
          %vm2541 = vcmp.eq.s32.totalorder %v317, %v2536
          %vm2542 = vcmp.eq.s32.totalorder %v317, %v2540
          %vm2543 = vcmp.eq.s32.totalorder %v318, %v2536
          %vm2544 = vcmp.eq.s32.totalorder %v318, %v2540
          %vm2545 = vcmp.eq.s32.totalorder %v319, %v2536
          %vm2546 = vcmp.eq.s32.totalorder %v319, %v2540
          %vm2547 = vcmp.eq.s32.totalorder %v320, %v2536
          %vm2548 = vcmp.eq.s32.totalorder %v320, %v2540
          %vm2549 = vcmp.eq.s32.totalorder %v321, %v2536
          %vm2550 = vcmp.eq.s32.totalorder %v321, %v2540
          %vm2551 = vcmp.eq.s32.totalorder %v322, %v2536
          %vm2552 = vcmp.eq.s32.totalorder %v322, %v2540
          %vm2553 = vcmp.eq.s32.totalorder %v323, %v2536
          %vm2554 = vcmp.eq.s32.totalorder %v323, %v2540
          %vm2555 = vcmp.eq.s32.totalorder %v324, %v2536
          %vm2556 = vcmp.eq.s32.totalorder %v324, %v2540
          %vm2557 = vcmp.eq.s32.totalorder %v325, %v2536
          %vm2558 = vcmp.eq.s32.totalorder %v325, %v2540
          %vm2559 = vcmp.eq.s32.totalorder %v326, %v2536
          %vm2560 = vcmp.eq.s32.totalorder %v326, %v2540
          %vm2561 = vcmp.eq.s32.totalorder %v327, %v2536
          %vm2562 = vcmp.eq.s32.totalorder %v327, %v2540
          %vm2563 = vcmp.eq.s32.totalorder %v328, %v2536
          %vm2564 = vcmp.eq.s32.totalorder %v328, %v2540
          %vm2565 = vcmp.eq.s32.totalorder %v329, %v2536
          %vm2566 = vcmp.eq.s32.totalorder %v329, %v2540
          %vm2567 = vcmp.eq.s32.totalorder %v330, %v2536
          %vm2568 = vcmp.eq.s32.totalorder %v330, %v2540
          %vm2569 = vcmp.eq.s32.totalorder %v331, %v2536
          %vm2570 = vcmp.eq.s32.totalorder %v331, %v2540
          %vm2571 = vcmp.eq.s32.totalorder %v332, %v2536
          %vm2572 = vcmp.eq.s32.totalorder %v332, %v2540
          %vm2573 = vcmp.eq.s32.totalorder %v333, %v2536
          %vm2574 = vcmp.eq.s32.totalorder %v333, %v2540
          %vm2575 = vcmp.eq.s32.totalorder %v334, %v2536
          %vm2576 = vcmp.eq.s32.totalorder %v334, %v2540
          %vm2577 = vcmp.eq.s32.totalorder %v335, %v2536
          %vm2578 = vcmp.eq.s32.totalorder %v335, %v2540
          %vm2579 = vcmp.eq.s32.totalorder %v336, %v2536
          %vm2580 = vcmp.eq.s32.totalorder %v336, %v2540
          %vm2581 = vcmp.eq.s32.totalorder %v337, %v2536
          %vm2582 = vcmp.eq.s32.totalorder %v337, %v2540
          %vm2583 = vcmp.eq.s32.totalorder %v338, %v2536
          %vm2584 = vcmp.eq.s32.totalorder %v338, %v2540
          %vm2585 = vcmp.eq.s32.totalorder %v339, %v2536
          %vm2586 = vcmp.eq.s32.totalorder %v339, %v2540
          %vm2587 = vcmp.eq.s32.totalorder %v340, %v2536
          %vm2588 = vcmp.eq.s32.totalorder %v340, %v2540
          %vm2589 = vcmp.eq.s32.totalorder %v341, %v2536
          %vm2590 = vcmp.eq.s32.totalorder %v341, %v2540
          %vm2591 = vcmp.eq.s32.totalorder %v342, %v2536
          %vm2592 = vcmp.eq.s32.totalorder %v342, %v2540
          %vm2593 = vcmp.eq.s32.totalorder %v343, %v2536
          %vm2594 = vcmp.eq.s32.totalorder %v343, %v2540
          %vm2595 = vcmp.eq.s32.totalorder %v344, %v2536
          %vm2596 = vcmp.eq.s32.totalorder %v344, %v2540
          %vm2597 = vcmp.eq.s32.totalorder %v345, %v2536
          %vm2598 = vcmp.eq.s32.totalorder %v345, %v2540
          %vm2599 = vcmp.eq.s32.totalorder %v346, %v2536
          %vm2600 = vcmp.eq.s32.totalorder %v346, %v2540
          %vm2601 = vcmp.eq.s32.totalorder %v347, %v2536
          %vm2602 = vcmp.eq.s32.totalorder %v347, %v2540
          %vm2603 = vcmp.eq.s32.totalorder %v348, %v2536
          %vm2604 = vcmp.eq.s32.totalorder %v348, %v2540
          %v2605 = vsel %vm2541, 1, 0
          %v2606 = vsel %vm2542, 1, 0
          %v2607 = vsel %vm2543, 1, 0
          %v2608 = vsel %vm2544, 1, 0
          %v2609 = vsel %vm2545, 1, 0
          %v2610 = vsel %vm2546, 1, 0
          %v2611 = vsel %vm2547, 1, 0
          %v2612 = vsel %vm2548, 1, 0
          %v2613 = vsel %vm2549, 1, 0
          %v2614 = vsel %vm2550, 1, 0
          %v2615 = vsel %vm2551, 1, 0
          %v2616 = vsel %vm2552, 1, 0
          %v2617 = vsel %vm2553, 1, 0
          %v2618 = vsel %vm2554, 1, 0
          %v2619 = vsel %vm2555, 1, 0
          %v2620 = vsel %vm2556, 1, 0
          %v2621 = vsel %vm2557, 1, 0
          %v2622 = vsel %vm2558, 1, 0
          %v2623 = vsel %vm2559, 1, 0
          %v2624 = vsel %vm2560, 1, 0
          %v2625 = vsel %vm2561, 1, 0
          %v2626 = vsel %vm2562, 1, 0
          %v2627 = vsel %vm2563, 1, 0
          %v2628 = vsel %vm2564, 1, 0
          %v2629 = vsel %vm2565, 1, 0
          %v2630 = vsel %vm2566, 1, 0
          %v2631 = vsel %vm2567, 1, 0
          %v2632 = vsel %vm2568, 1, 0
          %v2633 = vsel %vm2569, 1, 0
          %v2634 = vsel %vm2570, 1, 0
          %v2635 = vsel %vm2571, 1, 0
          %v2636 = vsel %vm2572, 1, 0
          %v2637 = vsel %vm2573, 1, 0
          %v2638 = vsel %vm2574, 1, 0
          %v2639 = vsel %vm2575, 1, 0
          %v2640 = vsel %vm2576, 1, 0
          %v2641 = vsel %vm2577, 1, 0
          %v2642 = vsel %vm2578, 1, 0
          %v2643 = vsel %vm2579, 1, 0
          %v2644 = vsel %vm2580, 1, 0
          %v2645 = vsel %vm2581, 1, 0
          %v2646 = vsel %vm2582, 1, 0
          %v2647 = vsel %vm2583, 1, 0
          %v2648 = vsel %vm2584, 1, 0
          %v2649 = vsel %vm2585, 1, 0
          %v2650 = vsel %vm2586, 1, 0
          %v2651 = vsel %vm2587, 1, 0
          %v2652 = vsel %vm2588, 1, 0
          %v2653 = vsel %vm2589, 1, 0
          %v2654 = vsel %vm2590, 1, 0
          %v2655 = vsel %vm2591, 1, 0
          %v2656 = vsel %vm2592, 1, 0
          %v2657 = vsel %vm2593, 1, 0
          %v2658 = vsel %vm2594, 1, 0
          %v2659 = vsel %vm2595, 1, 0
          %v2660 = vsel %vm2596, 1, 0
          %v2661 = vsel %vm2597, 1, 0
          %v2662 = vsel %vm2598, 1, 0
          %v2663 = vsel %vm2599, 1, 0
          %v2664 = vsel %vm2600, 1, 0
          %v2665 = vsel %vm2601, 1, 0
          %v2666 = vsel %vm2602, 1, 0
          %v2667 = vsel %vm2603, 1, 0
          %v2668 = vsel %vm2604, 1, 0
          %v2669 = vcvt.s32.f32 %v2605
          %v2670 = vcvt.s32.f32 %v2606
          %v2671 = vcvt.s32.f32 %v2607
          %v2672 = vcvt.s32.f32 %v2608
          %v2673 = vcvt.s32.f32 %v2609
          %v2674 = vcvt.s32.f32 %v2610
          %v2675 = vcvt.s32.f32 %v2611
          %v2676 = vcvt.s32.f32 %v2612
          %v2677 = vcvt.s32.f32 %v2613
          %v2678 = vcvt.s32.f32 %v2614
          %v2679 = vcvt.s32.f32 %v2615
          %v2680 = vcvt.s32.f32 %v2616
          %v2681 = vcvt.s32.f32 %v2617
          %v2682 = vcvt.s32.f32 %v2618
          %v2683 = vcvt.s32.f32 %v2619
          %v2684 = vcvt.s32.f32 %v2620
          %v2685 = vcvt.s32.f32 %v2621
          %v2686 = vcvt.s32.f32 %v2622
          %v2687 = vcvt.s32.f32 %v2623
          %v2688 = vcvt.s32.f32 %v2624
          %v2689 = vcvt.s32.f32 %v2625
          %v2690 = vcvt.s32.f32 %v2626
          %v2691 = vcvt.s32.f32 %v2627
          %v2692 = vcvt.s32.f32 %v2628
          %v2693 = vcvt.s32.f32 %v2629
          %v2694 = vcvt.s32.f32 %v2630
          %v2695 = vcvt.s32.f32 %v2631
          %v2696 = vcvt.s32.f32 %v2632
          %v2697 = vcvt.s32.f32 %v2633
          %v2698 = vcvt.s32.f32 %v2634
          %v2699 = vcvt.s32.f32 %v2635
          %v2700 = vcvt.s32.f32 %v2636
          %v2701 = vcvt.s32.f32 %v2637
          %v2702 = vcvt.s32.f32 %v2638
          %v2703 = vcvt.s32.f32 %v2639
          %v2704 = vcvt.s32.f32 %v2640
          %v2705 = vcvt.s32.f32 %v2641
          %v2706 = vcvt.s32.f32 %v2642
          %v2707 = vcvt.s32.f32 %v2643
          %v2708 = vcvt.s32.f32 %v2644
          %v2709 = vcvt.s32.f32 %v2645
          %v2710 = vcvt.s32.f32 %v2646
          %v2711 = vcvt.s32.f32 %v2647
          %v2712 = vcvt.s32.f32 %v2648
          %v2713 = vcvt.s32.f32 %v2649
          %v2714 = vcvt.s32.f32 %v2650
          %v2715 = vcvt.s32.f32 %v2651
          %v2716 = vcvt.s32.f32 %v2652
          %v2717 = vcvt.s32.f32 %v2653
          %v2718 = vcvt.s32.f32 %v2654
          %v2719 = vcvt.s32.f32 %v2655
          %v2720 = vcvt.s32.f32 %v2656
          %v2721 = vcvt.s32.f32 %v2657
          %v2722 = vcvt.s32.f32 %v2658
          %v2723 = vcvt.s32.f32 %v2659
          %v2724 = vcvt.s32.f32 %v2660
          %v2725 = vcvt.s32.f32 %v2661
          %v2726 = vcvt.s32.f32 %v2662
          %v2727 = vcvt.s32.f32 %v2663
          %v2728 = vcvt.s32.f32 %v2664
          %v2729 = vcvt.s32.f32 %v2665
          %v2730 = vcvt.s32.f32 %v2666
          %v2731 = vcvt.s32.f32 %v2667
          %v2732 = vcvt.s32.f32 %v2668
          %2733 = vmatprep.subr.mxu0 %v2700
          %2734 = vmatpush1.msra.mxu0 %v2699
          %2735 = vmatprep.subr.mxu0 %v2698
          %2736 = vmatpush1.msra.mxu0 %v2697
          %2737 = vmatprep.subr.mxu0 %v2696
          %2738 = vmatpush1.msra.mxu0 %v2695
          %2739 = vmatprep.subr.mxu0 %v2694
          %2740 = vmatpush1.msra.mxu0 %v2693
          %2741 = vmatprep.subr.mxu0 %v2692
          %2742 = vmatpush1.msra.mxu0 %v2691
          %2743 = vmatprep.subr.mxu0 %v2690
          %2744 = vmatpush1.msra.mxu0 %v2689
          %2745 = vmatprep.subr.mxu0 %v2688
          %2746 = vmatpush1.msra.mxu0 %v2687
          %2747 = vmatprep.subr.mxu0 %v2686
          %2748 = vmatpush1.msra.mxu0 %v2685
          %2749 = vmatprep.subr.mxu0 %v2684
          %2750 = vmatpush1.msra.mxu0 %v2683
          %2751 = vmatprep.subr.mxu0 %v2682
          %2752 = vmatpush1.msra.mxu0 %v2681
          %2753 = vmatprep.subr.mxu0 %v2680
          %2754 = vmatpush1.msra.mxu0 %v2679
          %2755 = vmatprep.subr.mxu0 %v2678
          %2756 = vmatpush1.msra.mxu0 %v2677
          %2757 = vmatprep.subr.mxu0 %v2676
          %2758 = vmatpush1.msra.mxu0 %v2675
          %2759 = vmatprep.subr.mxu0 %v2674
          %2760 = vmatpush1.msra.mxu0 %v2673
          %2761 = vmatprep.subr.mxu0 %v2672
          %2762 = vmatpush1.msra.mxu0 %v2671
          %2763 = vmatprep.subr.mxu0 %v2670
          %2764 = vmatpush1.msra.mxu0 %v2669
          %2765 = vmatprep.subr.mxu0 %v2732
          %2766 = vmatpush2.msra.mxu0 %v2731
          %2767 = vmatprep.subr.mxu0 %v2730
          %2768 = vmatpush2.msra.mxu0 %v2729
          %2769 = vmatprep.subr.mxu0 %v2728
          %2770 = vmatpush2.msra.mxu0 %v2727
          %2771 = vmatprep.subr.mxu0 %v2726
          %2772 = vmatpush2.msra.mxu0 %v2725
          %2773 = vmatprep.subr.mxu0 %v2724
          %2774 = vmatpush2.msra.mxu0 %v2723
          %2775 = vmatprep.subr.mxu0 %v2722
          %2776 = vmatpush2.msra.mxu0 %v2721
          %2777 = vmatprep.subr.mxu0 %v2720
          %2778 = vmatpush2.msra.mxu0 %v2719
          %2779 = vmatprep.subr.mxu0 %v2718
          %2780 = vmatpush2.msra.mxu0 %v2717
          %2781 = vmatprep.subr.mxu0 %v2716
          %2782 = vmatpush2.msra.mxu0 %v2715
          %2783 = vmatprep.subr.mxu0 %v2714
          %2784 = vmatpush2.msra.mxu0 %v2713
          %2785 = vmatprep.subr.mxu0 %v2712
          %2786 = vmatpush2.msra.mxu0 %v2711
          %2787 = vmatprep.subr.mxu0 %v2710
          %2788 = vmatpush2.msra.mxu0 %v2709
          %2789 = vmatprep.subr.mxu0 %v2708
          %2790 = vmatpush2.msra.mxu0 %v2707
          %2791 = vmatprep.subr.mxu0 %v2706
          %2792 = vmatpush2.msra.mxu0 %v2705
          %2793 = vmatprep.subr.mxu0 %v2704
          %2794 = vmatpush2.msra.mxu0 %v2703
          %2795 = vmatprep.subr.mxu0 %v2702
          %2796 = vmatpush2.msra.mxu0 %v2701
          %2797 = vmatprep.mubr.f32.mxu0 %v315
          %2798 = vmatmul.mubr.f32.gmra.mxu0 %v314
          %v2799 = vpop.f32.mrf.mxu0
          %v2800 = vadd.f32 0.0, %v2799
          %v2801 = vpop.f32.mrf.mxu0
          %v2802 = vadd.f32 0.0, %v2801
          %2803 = vdwg.mxu0
          %2804 = vst [vmem:[#allocation2 + $0x80] sm:$0xff] %v2800
          %2805 = vst [vmem:[#allocation2 + $0x88] sm:$0xff] %v2802
          %v2806 = vlaneseq
          %v2807 = vshrl.u32 %v2806, 7
          %v2808 = vsub.s32 1, %v2807
          %v2809 = vrot.slane %v312, %v2808
          %v2810 = vlaneseq
          %v2811 = vshrl.u32 %v2810, 7
          %v2812 = vsub.s32 1, %v2811
          %v2813 = vrot.slane %v313, %v2812
          %vm2814 = vcmp.eq.s32.totalorder %v317, %v2809
          %vm2815 = vcmp.eq.s32.totalorder %v317, %v2813
          %vm2816 = vcmp.eq.s32.totalorder %v318, %v2809
          %vm2817 = vcmp.eq.s32.totalorder %v318, %v2813
          %vm2818 = vcmp.eq.s32.totalorder %v319, %v2809
          %vm2819 = vcmp.eq.s32.totalorder %v319, %v2813
          %vm2820 = vcmp.eq.s32.totalorder %v320, %v2809
          %vm2821 = vcmp.eq.s32.totalorder %v320, %v2813
          %vm2822 = vcmp.eq.s32.totalorder %v321, %v2809
          %vm2823 = vcmp.eq.s32.totalorder %v321, %v2813
          %vm2824 = vcmp.eq.s32.totalorder %v322, %v2809
          %vm2825 = vcmp.eq.s32.totalorder %v322, %v2813
          %vm2826 = vcmp.eq.s32.totalorder %v323, %v2809
          %vm2827 = vcmp.eq.s32.totalorder %v323, %v2813
          %vm2828 = vcmp.eq.s32.totalorder %v324, %v2809
          %vm2829 = vcmp.eq.s32.totalorder %v324, %v2813
          %vm2830 = vcmp.eq.s32.totalorder %v325, %v2809
          %vm2831 = vcmp.eq.s32.totalorder %v325, %v2813
          %vm2832 = vcmp.eq.s32.totalorder %v326, %v2809
          %vm2833 = vcmp.eq.s32.totalorder %v326, %v2813
          %vm2834 = vcmp.eq.s32.totalorder %v327, %v2809
          %vm2835 = vcmp.eq.s32.totalorder %v327, %v2813
          %vm2836 = vcmp.eq.s32.totalorder %v328, %v2809
          %vm2837 = vcmp.eq.s32.totalorder %v328, %v2813
          %vm2838 = vcmp.eq.s32.totalorder %v329, %v2809
          %vm2839 = vcmp.eq.s32.totalorder %v329, %v2813
          %vm2840 = vcmp.eq.s32.totalorder %v330, %v2809
          %vm2841 = vcmp.eq.s32.totalorder %v330, %v2813
          %vm2842 = vcmp.eq.s32.totalorder %v331, %v2809
          %vm2843 = vcmp.eq.s32.totalorder %v331, %v2813
          %vm2844 = vcmp.eq.s32.totalorder %v332, %v2809
          %vm2845 = vcmp.eq.s32.totalorder %v332, %v2813
          %vm2846 = vcmp.eq.s32.totalorder %v333, %v2809
          %vm2847 = vcmp.eq.s32.totalorder %v333, %v2813
          %vm2848 = vcmp.eq.s32.totalorder %v334, %v2809
          %vm2849 = vcmp.eq.s32.totalorder %v334, %v2813
          %vm2850 = vcmp.eq.s32.totalorder %v335, %v2809
          %vm2851 = vcmp.eq.s32.totalorder %v335, %v2813
          %vm2852 = vcmp.eq.s32.totalorder %v336, %v2809
          %vm2853 = vcmp.eq.s32.totalorder %v336, %v2813
          %vm2854 = vcmp.eq.s32.totalorder %v337, %v2809
          %vm2855 = vcmp.eq.s32.totalorder %v337, %v2813
          %vm2856 = vcmp.eq.s32.totalorder %v338, %v2809
          %vm2857 = vcmp.eq.s32.totalorder %v338, %v2813
          %vm2858 = vcmp.eq.s32.totalorder %v339, %v2809
          %vm2859 = vcmp.eq.s32.totalorder %v339, %v2813
          %vm2860 = vcmp.eq.s32.totalorder %v340, %v2809
          %vm2861 = vcmp.eq.s32.totalorder %v340, %v2813
          %vm2862 = vcmp.eq.s32.totalorder %v341, %v2809
          %vm2863 = vcmp.eq.s32.totalorder %v341, %v2813
          %vm2864 = vcmp.eq.s32.totalorder %v342, %v2809
          %vm2865 = vcmp.eq.s32.totalorder %v342, %v2813
          %vm2866 = vcmp.eq.s32.totalorder %v343, %v2809
          %vm2867 = vcmp.eq.s32.totalorder %v343, %v2813
          %vm2868 = vcmp.eq.s32.totalorder %v344, %v2809
          %vm2869 = vcmp.eq.s32.totalorder %v344, %v2813
          %vm2870 = vcmp.eq.s32.totalorder %v345, %v2809
          %vm2871 = vcmp.eq.s32.totalorder %v345, %v2813
          %vm2872 = vcmp.eq.s32.totalorder %v346, %v2809
          %vm2873 = vcmp.eq.s32.totalorder %v346, %v2813
          %vm2874 = vcmp.eq.s32.totalorder %v347, %v2809
          %vm2875 = vcmp.eq.s32.totalorder %v347, %v2813
          %vm2876 = vcmp.eq.s32.totalorder %v348, %v2809
          %vm2877 = vcmp.eq.s32.totalorder %v348, %v2813
          %v2878 = vsel %vm2814, 1, 0
          %v2879 = vsel %vm2815, 1, 0
          %v2880 = vsel %vm2816, 1, 0
          %v2881 = vsel %vm2817, 1, 0
          %v2882 = vsel %vm2818, 1, 0
          %v2883 = vsel %vm2819, 1, 0
          %v2884 = vsel %vm2820, 1, 0
          %v2885 = vsel %vm2821, 1, 0
          %v2886 = vsel %vm2822, 1, 0
          %v2887 = vsel %vm2823, 1, 0
          %v2888 = vsel %vm2824, 1, 0
          %v2889 = vsel %vm2825, 1, 0
          %v2890 = vsel %vm2826, 1, 0
          %v2891 = vsel %vm2827, 1, 0
          %v2892 = vsel %vm2828, 1, 0
          %v2893 = vsel %vm2829, 1, 0
          %v2894 = vsel %vm2830, 1, 0
          %v2895 = vsel %vm2831, 1, 0
          %v2896 = vsel %vm2832, 1, 0
          %v2897 = vsel %vm2833, 1, 0
          %v2898 = vsel %vm2834, 1, 0
          %v2899 = vsel %vm2835, 1, 0
          %v2900 = vsel %vm2836, 1, 0
          %v2901 = vsel %vm2837, 1, 0
          %v2902 = vsel %vm2838, 1, 0
          %v2903 = vsel %vm2839, 1, 0
          %v2904 = vsel %vm2840, 1, 0
          %v2905 = vsel %vm2841, 1, 0
          %v2906 = vsel %vm2842, 1, 0
          %v2907 = vsel %vm2843, 1, 0
          %v2908 = vsel %vm2844, 1, 0
          %v2909 = vsel %vm2845, 1, 0
          %v2910 = vsel %vm2846, 1, 0
          %v2911 = vsel %vm2847, 1, 0
          %v2912 = vsel %vm2848, 1, 0
          %v2913 = vsel %vm2849, 1, 0
          %v2914 = vsel %vm2850, 1, 0
          %v2915 = vsel %vm2851, 1, 0
          %v2916 = vsel %vm2852, 1, 0
          %v2917 = vsel %vm2853, 1, 0
          %v2918 = vsel %vm2854, 1, 0
          %v2919 = vsel %vm2855, 1, 0
          %v2920 = vsel %vm2856, 1, 0
          %v2921 = vsel %vm2857, 1, 0
          %v2922 = vsel %vm2858, 1, 0
          %v2923 = vsel %vm2859, 1, 0
          %v2924 = vsel %vm2860, 1, 0
          %v2925 = vsel %vm2861, 1, 0
          %v2926 = vsel %vm2862, 1, 0
          %v2927 = vsel %vm2863, 1, 0
          %v2928 = vsel %vm2864, 1, 0
          %v2929 = vsel %vm2865, 1, 0
          %v2930 = vsel %vm2866, 1, 0
          %v2931 = vsel %vm2867, 1, 0
          %v2932 = vsel %vm2868, 1, 0
          %v2933 = vsel %vm2869, 1, 0
          %v2934 = vsel %vm2870, 1, 0
          %v2935 = vsel %vm2871, 1, 0
          %v2936 = vsel %vm2872, 1, 0
          %v2937 = vsel %vm2873, 1, 0
          %v2938 = vsel %vm2874, 1, 0
          %v2939 = vsel %vm2875, 1, 0
          %v2940 = vsel %vm2876, 1, 0
          %v2941 = vsel %vm2877, 1, 0
          %v2942 = vcvt.s32.f32 %v2878
          %v2943 = vcvt.s32.f32 %v2879
          %v2944 = vcvt.s32.f32 %v2880
          %v2945 = vcvt.s32.f32 %v2881
          %v2946 = vcvt.s32.f32 %v2882
          %v2947 = vcvt.s32.f32 %v2883
          %v2948 = vcvt.s32.f32 %v2884
          %v2949 = vcvt.s32.f32 %v2885
          %v2950 = vcvt.s32.f32 %v2886
          %v2951 = vcvt.s32.f32 %v2887
          %v2952 = vcvt.s32.f32 %v2888
          %v2953 = vcvt.s32.f32 %v2889
          %v2954 = vcvt.s32.f32 %v2890
          %v2955 = vcvt.s32.f32 %v2891
          %v2956 = vcvt.s32.f32 %v2892
          %v2957 = vcvt.s32.f32 %v2893
          %v2958 = vcvt.s32.f32 %v2894
          %v2959 = vcvt.s32.f32 %v2895
          %v2960 = vcvt.s32.f32 %v2896
          %v2961 = vcvt.s32.f32 %v2897
          %v2962 = vcvt.s32.f32 %v2898
          %v2963 = vcvt.s32.f32 %v2899
          %v2964 = vcvt.s32.f32 %v2900
          %v2965 = vcvt.s32.f32 %v2901
          %v2966 = vcvt.s32.f32 %v2902
          %v2967 = vcvt.s32.f32 %v2903
          %v2968 = vcvt.s32.f32 %v2904
          %v2969 = vcvt.s32.f32 %v2905
          %v2970 = vcvt.s32.f32 %v2906
          %v2971 = vcvt.s32.f32 %v2907
          %v2972 = vcvt.s32.f32 %v2908
          %v2973 = vcvt.s32.f32 %v2909
          %v2974 = vcvt.s32.f32 %v2910
          %v2975 = vcvt.s32.f32 %v2911
          %v2976 = vcvt.s32.f32 %v2912
          %v2977 = vcvt.s32.f32 %v2913
          %v2978 = vcvt.s32.f32 %v2914
          %v2979 = vcvt.s32.f32 %v2915
          %v2980 = vcvt.s32.f32 %v2916
          %v2981 = vcvt.s32.f32 %v2917
          %v2982 = vcvt.s32.f32 %v2918
          %v2983 = vcvt.s32.f32 %v2919
          %v2984 = vcvt.s32.f32 %v2920
          %v2985 = vcvt.s32.f32 %v2921
          %v2986 = vcvt.s32.f32 %v2922
          %v2987 = vcvt.s32.f32 %v2923
          %v2988 = vcvt.s32.f32 %v2924
          %v2989 = vcvt.s32.f32 %v2925
          %v2990 = vcvt.s32.f32 %v2926
          %v2991 = vcvt.s32.f32 %v2927
          %v2992 = vcvt.s32.f32 %v2928
          %v2993 = vcvt.s32.f32 %v2929
          %v2994 = vcvt.s32.f32 %v2930
          %v2995 = vcvt.s32.f32 %v2931
          %v2996 = vcvt.s32.f32 %v2932
          %v2997 = vcvt.s32.f32 %v2933
          %v2998 = vcvt.s32.f32 %v2934
          %v2999 = vcvt.s32.f32 %v2935
          %v3000 = vcvt.s32.f32 %v2936
          %v3001 = vcvt.s32.f32 %v2937
          %v3002 = vcvt.s32.f32 %v2938
          %v3003 = vcvt.s32.f32 %v2939
          %v3004 = vcvt.s32.f32 %v2940
          %v3005 = vcvt.s32.f32 %v2941
          %3006 = vmatprep.subr.mxu0 %v2973
          %3007 = vmatpush1.msra.mxu0 %v2972
          %3008 = vmatprep.subr.mxu0 %v2971
          %3009 = vmatpush1.msra.mxu0 %v2970
          %3010 = vmatprep.subr.mxu0 %v2969
          %3011 = vmatpush1.msra.mxu0 %v2968
          %3012 = vmatprep.subr.mxu0 %v2967
          %3013 = vmatpush1.msra.mxu0 %v2966
          %3014 = vmatprep.subr.mxu0 %v2965
          %3015 = vmatpush1.msra.mxu0 %v2964
          %3016 = vmatprep.subr.mxu0 %v2963
          %3017 = vmatpush1.msra.mxu0 %v2962
          %3018 = vmatprep.subr.mxu0 %v2961
          %3019 = vmatpush1.msra.mxu0 %v2960
          %3020 = vmatprep.subr.mxu0 %v2959
          %3021 = vmatpush1.msra.mxu0 %v2958
          %3022 = vmatprep.subr.mxu0 %v2957
          %3023 = vmatpush1.msra.mxu0 %v2956
          %3024 = vmatprep.subr.mxu0 %v2955
          %3025 = vmatpush1.msra.mxu0 %v2954
          %3026 = vmatprep.subr.mxu0 %v2953
          %3027 = vmatpush1.msra.mxu0 %v2952
          %3028 = vmatprep.subr.mxu0 %v2951
          %3029 = vmatpush1.msra.mxu0 %v2950
          %3030 = vmatprep.subr.mxu0 %v2949
          %3031 = vmatpush1.msra.mxu0 %v2948
          %3032 = vmatprep.subr.mxu0 %v2947
          %3033 = vmatpush1.msra.mxu0 %v2946
          %3034 = vmatprep.subr.mxu0 %v2945
          %3035 = vmatpush1.msra.mxu0 %v2944
          %3036 = vmatprep.subr.mxu0 %v2943
          %3037 = vmatpush1.msra.mxu0 %v2942
          %3038 = vmatprep.subr.mxu0 %v3005
          %3039 = vmatpush2.msra.mxu0 %v3004
          %3040 = vmatprep.subr.mxu0 %v3003
          %3041 = vmatpush2.msra.mxu0 %v3002
          %3042 = vmatprep.subr.mxu0 %v3001
          %3043 = vmatpush2.msra.mxu0 %v3000
          %3044 = vmatprep.subr.mxu0 %v2999
          %3045 = vmatpush2.msra.mxu0 %v2998
          %3046 = vmatprep.subr.mxu0 %v2997
          %3047 = vmatpush2.msra.mxu0 %v2996
          %3048 = vmatprep.subr.mxu0 %v2995
          %3049 = vmatpush2.msra.mxu0 %v2994
          %3050 = vmatprep.subr.mxu0 %v2993
          %3051 = vmatpush2.msra.mxu0 %v2992
          %3052 = vmatprep.subr.mxu0 %v2991
          %3053 = vmatpush2.msra.mxu0 %v2990
          %3054 = vmatprep.subr.mxu0 %v2989
          %3055 = vmatpush2.msra.mxu0 %v2988
          %3056 = vmatprep.subr.mxu0 %v2987
          %3057 = vmatpush2.msra.mxu0 %v2986
          %3058 = vmatprep.subr.mxu0 %v2985
          %3059 = vmatpush2.msra.mxu0 %v2984
          %3060 = vmatprep.subr.mxu0 %v2983
          %3061 = vmatpush2.msra.mxu0 %v2982
          %3062 = vmatprep.subr.mxu0 %v2981
          %3063 = vmatpush2.msra.mxu0 %v2980
          %3064 = vmatprep.subr.mxu0 %v2979
          %3065 = vmatpush2.msra.mxu0 %v2978
          %3066 = vmatprep.subr.mxu0 %v2977
          %3067 = vmatpush2.msra.mxu0 %v2976
          %3068 = vmatprep.subr.mxu0 %v2975
          %3069 = vmatpush2.msra.mxu0 %v2974
          %3070 = vmatprep.mubr.f32.mxu0 %v315
          %3071 = vmatmul.mubr.f32.gmra.mxu0 %v314
          %v3072 = vpop.f32.mrf.mxu0
          %v3073 = vadd.f32 0.0, %v3072
          %v3074 = vpop.f32.mrf.mxu0
          %v3075 = vadd.f32 0.0, %v3074
          %3076 = vdwg.mxu0
          %3077 = vst [vmem:[#allocation2 + $0x90] sm:$0xff] %v3073
          %3078 = vst [vmem:[#allocation2 + $0x98] sm:$0xff] %v3075
          %v3079 = vlaneseq
          %v3080 = vshrl.u32 %v3079, 7
          %v3081 = vsub.s32 2, %v3080
          %v3082 = vrot.slane %v312, %v3081
          %v3083 = vlaneseq
          %v3084 = vshrl.u32 %v3083, 7
          %v3085 = vsub.s32 2, %v3084
          %v3086 = vrot.slane %v313, %v3085
          %vm3087 = vcmp.eq.s32.totalorder %v317, %v3082
          %vm3088 = vcmp.eq.s32.totalorder %v317, %v3086
          %vm3089 = vcmp.eq.s32.totalorder %v318, %v3082
          %vm3090 = vcmp.eq.s32.totalorder %v318, %v3086
          %vm3091 = vcmp.eq.s32.totalorder %v319, %v3082
          %vm3092 = vcmp.eq.s32.totalorder %v319, %v3086
          %vm3093 = vcmp.eq.s32.totalorder %v320, %v3082
          %vm3094 = vcmp.eq.s32.totalorder %v320, %v3086
          %vm3095 = vcmp.eq.s32.totalorder %v321, %v3082
          %vm3096 = vcmp.eq.s32.totalorder %v321, %v3086
          %vm3097 = vcmp.eq.s32.totalorder %v322, %v3082
          %vm3098 = vcmp.eq.s32.totalorder %v322, %v3086
          %vm3099 = vcmp.eq.s32.totalorder %v323, %v3082
          %vm3100 = vcmp.eq.s32.totalorder %v323, %v3086
          %vm3101 = vcmp.eq.s32.totalorder %v324, %v3082
          %vm3102 = vcmp.eq.s32.totalorder %v324, %v3086
          %vm3103 = vcmp.eq.s32.totalorder %v325, %v3082
          %vm3104 = vcmp.eq.s32.totalorder %v325, %v3086
          %vm3105 = vcmp.eq.s32.totalorder %v326, %v3082
          %vm3106 = vcmp.eq.s32.totalorder %v326, %v3086
          %vm3107 = vcmp.eq.s32.totalorder %v327, %v3082
          %vm3108 = vcmp.eq.s32.totalorder %v327, %v3086
          %vm3109 = vcmp.eq.s32.totalorder %v328, %v3082
          %vm3110 = vcmp.eq.s32.totalorder %v328, %v3086
          %vm3111 = vcmp.eq.s32.totalorder %v329, %v3082
          %vm3112 = vcmp.eq.s32.totalorder %v329, %v3086
          %vm3113 = vcmp.eq.s32.totalorder %v330, %v3082
          %vm3114 = vcmp.eq.s32.totalorder %v330, %v3086
          %vm3115 = vcmp.eq.s32.totalorder %v331, %v3082
          %vm3116 = vcmp.eq.s32.totalorder %v331, %v3086
          %vm3117 = vcmp.eq.s32.totalorder %v332, %v3082
          %vm3118 = vcmp.eq.s32.totalorder %v332, %v3086
          %vm3119 = vcmp.eq.s32.totalorder %v333, %v3082
          %vm3120 = vcmp.eq.s32.totalorder %v333, %v3086
          %vm3121 = vcmp.eq.s32.totalorder %v334, %v3082
          %vm3122 = vcmp.eq.s32.totalorder %v334, %v3086
          %vm3123 = vcmp.eq.s32.totalorder %v335, %v3082
          %vm3124 = vcmp.eq.s32.totalorder %v335, %v3086
          %vm3125 = vcmp.eq.s32.totalorder %v336, %v3082
          %vm3126 = vcmp.eq.s32.totalorder %v336, %v3086
          %vm3127 = vcmp.eq.s32.totalorder %v337, %v3082
          %vm3128 = vcmp.eq.s32.totalorder %v337, %v3086
          %vm3129 = vcmp.eq.s32.totalorder %v338, %v3082
          %vm3130 = vcmp.eq.s32.totalorder %v338, %v3086
          %vm3131 = vcmp.eq.s32.totalorder %v339, %v3082
          %vm3132 = vcmp.eq.s32.totalorder %v339, %v3086
          %vm3133 = vcmp.eq.s32.totalorder %v340, %v3082
          %vm3134 = vcmp.eq.s32.totalorder %v340, %v3086
          %vm3135 = vcmp.eq.s32.totalorder %v341, %v3082
          %vm3136 = vcmp.eq.s32.totalorder %v341, %v3086
          %vm3137 = vcmp.eq.s32.totalorder %v342, %v3082
          %vm3138 = vcmp.eq.s32.totalorder %v342, %v3086
          %vm3139 = vcmp.eq.s32.totalorder %v343, %v3082
          %vm3140 = vcmp.eq.s32.totalorder %v343, %v3086
          %vm3141 = vcmp.eq.s32.totalorder %v344, %v3082
          %vm3142 = vcmp.eq.s32.totalorder %v344, %v3086
          %vm3143 = vcmp.eq.s32.totalorder %v345, %v3082
          %vm3144 = vcmp.eq.s32.totalorder %v345, %v3086
          %vm3145 = vcmp.eq.s32.totalorder %v346, %v3082
          %vm3146 = vcmp.eq.s32.totalorder %v346, %v3086
          %vm3147 = vcmp.eq.s32.totalorder %v347, %v3082
          %vm3148 = vcmp.eq.s32.totalorder %v347, %v3086
          %vm3149 = vcmp.eq.s32.totalorder %v348, %v3082
          %vm3150 = vcmp.eq.s32.totalorder %v348, %v3086
          %v3151 = vsel %vm3087, 1, 0
          %v3152 = vsel %vm3088, 1, 0
          %v3153 = vsel %vm3089, 1, 0
          %v3154 = vsel %vm3090, 1, 0
          %v3155 = vsel %vm3091, 1, 0
          %v3156 = vsel %vm3092, 1, 0
          %v3157 = vsel %vm3093, 1, 0
          %v3158 = vsel %vm3094, 1, 0
          %v3159 = vsel %vm3095, 1, 0
          %v3160 = vsel %vm3096, 1, 0
          %v3161 = vsel %vm3097, 1, 0
          %v3162 = vsel %vm3098, 1, 0
          %v3163 = vsel %vm3099, 1, 0
          %v3164 = vsel %vm3100, 1, 0
          %v3165 = vsel %vm3101, 1, 0
          %v3166 = vsel %vm3102, 1, 0
          %v3167 = vsel %vm3103, 1, 0
          %v3168 = vsel %vm3104, 1, 0
          %v3169 = vsel %vm3105, 1, 0
          %v3170 = vsel %vm3106, 1, 0
          %v3171 = vsel %vm3107, 1, 0
          %v3172 = vsel %vm3108, 1, 0
          %v3173 = vsel %vm3109, 1, 0
          %v3174 = vsel %vm3110, 1, 0
          %v3175 = vsel %vm3111, 1, 0
          %v3176 = vsel %vm3112, 1, 0
          %v3177 = vsel %vm3113, 1, 0
          %v3178 = vsel %vm3114, 1, 0
          %v3179 = vsel %vm3115, 1, 0
          %v3180 = vsel %vm3116, 1, 0
          %v3181 = vsel %vm3117, 1, 0
          %v3182 = vsel %vm3118, 1, 0
          %v3183 = vsel %vm3119, 1, 0
          %v3184 = vsel %vm3120, 1, 0
          %v3185 = vsel %vm3121, 1, 0
          %v3186 = vsel %vm3122, 1, 0
          %v3187 = vsel %vm3123, 1, 0
          %v3188 = vsel %vm3124, 1, 0
          %v3189 = vsel %vm3125, 1, 0
          %v3190 = vsel %vm3126, 1, 0
          %v3191 = vsel %vm3127, 1, 0
          %v3192 = vsel %vm3128, 1, 0
          %v3193 = vsel %vm3129, 1, 0
          %v3194 = vsel %vm3130, 1, 0
          %v3195 = vsel %vm3131, 1, 0
          %v3196 = vsel %vm3132, 1, 0
          %v3197 = vsel %vm3133, 1, 0
          %v3198 = vsel %vm3134, 1, 0
          %v3199 = vsel %vm3135, 1, 0
          %v3200 = vsel %vm3136, 1, 0
          %v3201 = vsel %vm3137, 1, 0
          %v3202 = vsel %vm3138, 1, 0
          %v3203 = vsel %vm3139, 1, 0
          %v3204 = vsel %vm3140, 1, 0
          %v3205 = vsel %vm3141, 1, 0
          %v3206 = vsel %vm3142, 1, 0
          %v3207 = vsel %vm3143, 1, 0
          %v3208 = vsel %vm3144, 1, 0
          %v3209 = vsel %vm3145, 1, 0
          %v3210 = vsel %vm3146, 1, 0
          %v3211 = vsel %vm3147, 1, 0
          %v3212 = vsel %vm3148, 1, 0
          %v3213 = vsel %vm3149, 1, 0
          %v3214 = vsel %vm3150, 1, 0
          %v3215 = vcvt.s32.f32 %v3151
          %v3216 = vcvt.s32.f32 %v3152
          %v3217 = vcvt.s32.f32 %v3153
          %v3218 = vcvt.s32.f32 %v3154
          %v3219 = vcvt.s32.f32 %v3155
          %v3220 = vcvt.s32.f32 %v3156
          %v3221 = vcvt.s32.f32 %v3157
          %v3222 = vcvt.s32.f32 %v3158
          %v3223 = vcvt.s32.f32 %v3159
          %v3224 = vcvt.s32.f32 %v3160
          %v3225 = vcvt.s32.f32 %v3161
          %v3226 = vcvt.s32.f32 %v3162
          %v3227 = vcvt.s32.f32 %v3163
          %v3228 = vcvt.s32.f32 %v3164
          %v3229 = vcvt.s32.f32 %v3165
          %v3230 = vcvt.s32.f32 %v3166
          %v3231 = vcvt.s32.f32 %v3167
          %v3232 = vcvt.s32.f32 %v3168
          %v3233 = vcvt.s32.f32 %v3169
          %v3234 = vcvt.s32.f32 %v3170
          %v3235 = vcvt.s32.f32 %v3171
          %v3236 = vcvt.s32.f32 %v3172
          %v3237 = vcvt.s32.f32 %v3173
          %v3238 = vcvt.s32.f32 %v3174
          %v3239 = vcvt.s32.f32 %v3175
          %v3240 = vcvt.s32.f32 %v3176
          %v3241 = vcvt.s32.f32 %v3177
          %v3242 = vcvt.s32.f32 %v3178
          %v3243 = vcvt.s32.f32 %v3179
          %v3244 = vcvt.s32.f32 %v3180
          %v3245 = vcvt.s32.f32 %v3181
          %v3246 = vcvt.s32.f32 %v3182
          %v3247 = vcvt.s32.f32 %v3183
          %v3248 = vcvt.s32.f32 %v3184
          %v3249 = vcvt.s32.f32 %v3185
          %v3250 = vcvt.s32.f32 %v3186
          %v3251 = vcvt.s32.f32 %v3187
          %v3252 = vcvt.s32.f32 %v3188
          %v3253 = vcvt.s32.f32 %v3189
          %v3254 = vcvt.s32.f32 %v3190
          %v3255 = vcvt.s32.f32 %v3191
          %v3256 = vcvt.s32.f32 %v3192
          %v3257 = vcvt.s32.f32 %v3193
          %v3258 = vcvt.s32.f32 %v3194
          %v3259 = vcvt.s32.f32 %v3195
          %v3260 = vcvt.s32.f32 %v3196
          %v3261 = vcvt.s32.f32 %v3197
          %v3262 = vcvt.s32.f32 %v3198
          %v3263 = vcvt.s32.f32 %v3199
          %v3264 = vcvt.s32.f32 %v3200
          %v3265 = vcvt.s32.f32 %v3201
          %v3266 = vcvt.s32.f32 %v3202
          %v3267 = vcvt.s32.f32 %v3203
          %v3268 = vcvt.s32.f32 %v3204
          %v3269 = vcvt.s32.f32 %v3205
          %v3270 = vcvt.s32.f32 %v3206
          %v3271 = vcvt.s32.f32 %v3207
          %v3272 = vcvt.s32.f32 %v3208
          %v3273 = vcvt.s32.f32 %v3209
          %v3274 = vcvt.s32.f32 %v3210
          %v3275 = vcvt.s32.f32 %v3211
          %v3276 = vcvt.s32.f32 %v3212
          %v3277 = vcvt.s32.f32 %v3213
          %v3278 = vcvt.s32.f32 %v3214
          %3279 = vmatprep.subr.mxu0 %v3246
          %3280 = vmatpush1.msra.mxu0 %v3245
          %3281 = vmatprep.subr.mxu0 %v3244
          %3282 = vmatpush1.msra.mxu0 %v3243
          %3283 = vmatprep.subr.mxu0 %v3242
          %3284 = vmatpush1.msra.mxu0 %v3241
          %3285 = vmatprep.subr.mxu0 %v3240
          %3286 = vmatpush1.msra.mxu0 %v3239
          %3287 = vmatprep.subr.mxu0 %v3238
          %3288 = vmatpush1.msra.mxu0 %v3237
          %3289 = vmatprep.subr.mxu0 %v3236
          %3290 = vmatpush1.msra.mxu0 %v3235
          %3291 = vmatprep.subr.mxu0 %v3234
          %3292 = vmatpush1.msra.mxu0 %v3233
          %3293 = vmatprep.subr.mxu0 %v3232
          %3294 = vmatpush1.msra.mxu0 %v3231
          %3295 = vmatprep.subr.mxu0 %v3230
          %3296 = vmatpush1.msra.mxu0 %v3229
          %3297 = vmatprep.subr.mxu0 %v3228
          %3298 = vmatpush1.msra.mxu0 %v3227
          %3299 = vmatprep.subr.mxu0 %v3226
          %3300 = vmatpush1.msra.mxu0 %v3225
          %3301 = vmatprep.subr.mxu0 %v3224
          %3302 = vmatpush1.msra.mxu0 %v3223
          %3303 = vmatprep.subr.mxu0 %v3222
          %3304 = vmatpush1.msra.mxu0 %v3221
          %3305 = vmatprep.subr.mxu0 %v3220
          %3306 = vmatpush1.msra.mxu0 %v3219
          %3307 = vmatprep.subr.mxu0 %v3218
          %3308 = vmatpush1.msra.mxu0 %v3217
          %3309 = vmatprep.subr.mxu0 %v3216
          %3310 = vmatpush1.msra.mxu0 %v3215
          %3311 = vmatprep.subr.mxu0 %v3278
          %3312 = vmatpush2.msra.mxu0 %v3277
          %3313 = vmatprep.subr.mxu0 %v3276
          %3314 = vmatpush2.msra.mxu0 %v3275
          %3315 = vmatprep.subr.mxu0 %v3274
          %3316 = vmatpush2.msra.mxu0 %v3273
          %3317 = vmatprep.subr.mxu0 %v3272
          %3318 = vmatpush2.msra.mxu0 %v3271
          %3319 = vmatprep.subr.mxu0 %v3270
          %3320 = vmatpush2.msra.mxu0 %v3269
          %3321 = vmatprep.subr.mxu0 %v3268
          %3322 = vmatpush2.msra.mxu0 %v3267
          %3323 = vmatprep.subr.mxu0 %v3266
          %3324 = vmatpush2.msra.mxu0 %v3265
          %3325 = vmatprep.subr.mxu0 %v3264
          %3326 = vmatpush2.msra.mxu0 %v3263
          %3327 = vmatprep.subr.mxu0 %v3262
          %3328 = vmatpush2.msra.mxu0 %v3261
          %3329 = vmatprep.subr.mxu0 %v3260
          %3330 = vmatpush2.msra.mxu0 %v3259
          %3331 = vmatprep.subr.mxu0 %v3258
          %3332 = vmatpush2.msra.mxu0 %v3257
          %3333 = vmatprep.subr.mxu0 %v3256
          %3334 = vmatpush2.msra.mxu0 %v3255
          %3335 = vmatprep.subr.mxu0 %v3254
          %3336 = vmatpush2.msra.mxu0 %v3253
          %3337 = vmatprep.subr.mxu0 %v3252
          %3338 = vmatpush2.msra.mxu0 %v3251
          %3339 = vmatprep.subr.mxu0 %v3250
          %3340 = vmatpush2.msra.mxu0 %v3249
          %3341 = vmatprep.subr.mxu0 %v3248
          %3342 = vmatpush2.msra.mxu0 %v3247
          %3343 = vmatprep.mubr.f32.mxu0 %v315
          %3344 = vmatmul.mubr.f32.gmra.mxu0 %v314
          %v3345 = vpop.f32.mrf.mxu0
          %v3346 = vadd.f32 0.0, %v3345
          %v3347 = vpop.f32.mrf.mxu0
          %v3348 = vadd.f32 0.0, %v3347
          %3349 = vdwg.mxu0
          %3350 = vst [vmem:[#allocation2 + $0xa0] sm:$0xff] %v3346
          %3351 = vst [vmem:[#allocation2 + $0xa8] sm:$0xff] %v3348
          %v3352 = vlaneseq
          %v3353 = vshrl.u32 %v3352, 7
          %v3354 = vsub.s32 3, %v3353
          %v3355 = vrot.slane %v312, %v3354
          %v3356 = vlaneseq
          %v3357 = vshrl.u32 %v3356, 7
          %v3358 = vsub.s32 3, %v3357
          %v3359 = vrot.slane %v313, %v3358
          %vm3360 = vcmp.eq.s32.totalorder %v317, %v3355
          %vm3361 = vcmp.eq.s32.totalorder %v317, %v3359
          %vm3362 = vcmp.eq.s32.totalorder %v318, %v3355
          %vm3363 = vcmp.eq.s32.totalorder %v318, %v3359
          %vm3364 = vcmp.eq.s32.totalorder %v319, %v3355
          %vm3365 = vcmp.eq.s32.totalorder %v319, %v3359
          %vm3366 = vcmp.eq.s32.totalorder %v320, %v3355
          %vm3367 = vcmp.eq.s32.totalorder %v320, %v3359
          %vm3368 = vcmp.eq.s32.totalorder %v321, %v3355
          %vm3369 = vcmp.eq.s32.totalorder %v321, %v3359
          %vm3370 = vcmp.eq.s32.totalorder %v322, %v3355
          %vm3371 = vcmp.eq.s32.totalorder %v322, %v3359
          %vm3372 = vcmp.eq.s32.totalorder %v323, %v3355
          %vm3373 = vcmp.eq.s32.totalorder %v323, %v3359
          %vm3374 = vcmp.eq.s32.totalorder %v324, %v3355
          %vm3375 = vcmp.eq.s32.totalorder %v324, %v3359
          %vm3376 = vcmp.eq.s32.totalorder %v325, %v3355
          %vm3377 = vcmp.eq.s32.totalorder %v325, %v3359
          %vm3378 = vcmp.eq.s32.totalorder %v326, %v3355
          %vm3379 = vcmp.eq.s32.totalorder %v326, %v3359
          %vm3380 = vcmp.eq.s32.totalorder %v327, %v3355
          %vm3381 = vcmp.eq.s32.totalorder %v327, %v3359
          %vm3382 = vcmp.eq.s32.totalorder %v328, %v3355
          %vm3383 = vcmp.eq.s32.totalorder %v328, %v3359
          %vm3384 = vcmp.eq.s32.totalorder %v329, %v3355
          %vm3385 = vcmp.eq.s32.totalorder %v329, %v3359
          %vm3386 = vcmp.eq.s32.totalorder %v330, %v3355
          %vm3387 = vcmp.eq.s32.totalorder %v330, %v3359
          %vm3388 = vcmp.eq.s32.totalorder %v331, %v3355
          %vm3389 = vcmp.eq.s32.totalorder %v331, %v3359
          %vm3390 = vcmp.eq.s32.totalorder %v332, %v3355
          %vm3391 = vcmp.eq.s32.totalorder %v332, %v3359
          %vm3392 = vcmp.eq.s32.totalorder %v333, %v3355
          %vm3393 = vcmp.eq.s32.totalorder %v333, %v3359
          %vm3394 = vcmp.eq.s32.totalorder %v334, %v3355
          %vm3395 = vcmp.eq.s32.totalorder %v334, %v3359
          %vm3396 = vcmp.eq.s32.totalorder %v335, %v3355
          %vm3397 = vcmp.eq.s32.totalorder %v335, %v3359
          %vm3398 = vcmp.eq.s32.totalorder %v336, %v3355
          %vm3399 = vcmp.eq.s32.totalorder %v336, %v3359
          %vm3400 = vcmp.eq.s32.totalorder %v337, %v3355
          %vm3401 = vcmp.eq.s32.totalorder %v337, %v3359
          %vm3402 = vcmp.eq.s32.totalorder %v338, %v3355
          %vm3403 = vcmp.eq.s32.totalorder %v338, %v3359
          %vm3404 = vcmp.eq.s32.totalorder %v339, %v3355
          %vm3405 = vcmp.eq.s32.totalorder %v339, %v3359
          %vm3406 = vcmp.eq.s32.totalorder %v340, %v3355
          %vm3407 = vcmp.eq.s32.totalorder %v340, %v3359
          %vm3408 = vcmp.eq.s32.totalorder %v341, %v3355
          %vm3409 = vcmp.eq.s32.totalorder %v341, %v3359
          %vm3410 = vcmp.eq.s32.totalorder %v342, %v3355
          %vm3411 = vcmp.eq.s32.totalorder %v342, %v3359
          %vm3412 = vcmp.eq.s32.totalorder %v343, %v3355
          %vm3413 = vcmp.eq.s32.totalorder %v343, %v3359
          %vm3414 = vcmp.eq.s32.totalorder %v344, %v3355
          %vm3415 = vcmp.eq.s32.totalorder %v344, %v3359
          %vm3416 = vcmp.eq.s32.totalorder %v345, %v3355
          %vm3417 = vcmp.eq.s32.totalorder %v345, %v3359
          %vm3418 = vcmp.eq.s32.totalorder %v346, %v3355
          %vm3419 = vcmp.eq.s32.totalorder %v346, %v3359
          %vm3420 = vcmp.eq.s32.totalorder %v347, %v3355
          %vm3421 = vcmp.eq.s32.totalorder %v347, %v3359
          %vm3422 = vcmp.eq.s32.totalorder %v348, %v3355
          %vm3423 = vcmp.eq.s32.totalorder %v348, %v3359
          %v3424 = vsel %vm3360, 1, 0
          %v3425 = vsel %vm3361, 1, 0
          %v3426 = vsel %vm3362, 1, 0
          %v3427 = vsel %vm3363, 1, 0
          %v3428 = vsel %vm3364, 1, 0
          %v3429 = vsel %vm3365, 1, 0
          %v3430 = vsel %vm3366, 1, 0
          %v3431 = vsel %vm3367, 1, 0
          %v3432 = vsel %vm3368, 1, 0
          %v3433 = vsel %vm3369, 1, 0
          %v3434 = vsel %vm3370, 1, 0
          %v3435 = vsel %vm3371, 1, 0
          %v3436 = vsel %vm3372, 1, 0
          %v3437 = vsel %vm3373, 1, 0
          %v3438 = vsel %vm3374, 1, 0
          %v3439 = vsel %vm3375, 1, 0
          %v3440 = vsel %vm3376, 1, 0
          %v3441 = vsel %vm3377, 1, 0
          %v3442 = vsel %vm3378, 1, 0
          %v3443 = vsel %vm3379, 1, 0
          %v3444 = vsel %vm3380, 1, 0
          %v3445 = vsel %vm3381, 1, 0
          %v3446 = vsel %vm3382, 1, 0
          %v3447 = vsel %vm3383, 1, 0
          %v3448 = vsel %vm3384, 1, 0
          %v3449 = vsel %vm3385, 1, 0
          %v3450 = vsel %vm3386, 1, 0
          %v3451 = vsel %vm3387, 1, 0
          %v3452 = vsel %vm3388, 1, 0
          %v3453 = vsel %vm3389, 1, 0
          %v3454 = vsel %vm3390, 1, 0
          %v3455 = vsel %vm3391, 1, 0
          %v3456 = vsel %vm3392, 1, 0
          %v3457 = vsel %vm3393, 1, 0
          %v3458 = vsel %vm3394, 1, 0
          %v3459 = vsel %vm3395, 1, 0
          %v3460 = vsel %vm3396, 1, 0
          %v3461 = vsel %vm3397, 1, 0
          %v3462 = vsel %vm3398, 1, 0
          %v3463 = vsel %vm3399, 1, 0
          %v3464 = vsel %vm3400, 1, 0
          %v3465 = vsel %vm3401, 1, 0
          %v3466 = vsel %vm3402, 1, 0
          %v3467 = vsel %vm3403, 1, 0
          %v3468 = vsel %vm3404, 1, 0
          %v3469 = vsel %vm3405, 1, 0
          %v3470 = vsel %vm3406, 1, 0
          %v3471 = vsel %vm3407, 1, 0
          %v3472 = vsel %vm3408, 1, 0
          %v3473 = vsel %vm3409, 1, 0
          %v3474 = vsel %vm3410, 1, 0
          %v3475 = vsel %vm3411, 1, 0
          %v3476 = vsel %vm3412, 1, 0
          %v3477 = vsel %vm3413, 1, 0
          %v3478 = vsel %vm3414, 1, 0
          %v3479 = vsel %vm3415, 1, 0
          %v3480 = vsel %vm3416, 1, 0
          %v3481 = vsel %vm3417, 1, 0
          %v3482 = vsel %vm3418, 1, 0
          %v3483 = vsel %vm3419, 1, 0
          %v3484 = vsel %vm3420, 1, 0
          %v3485 = vsel %vm3421, 1, 0
          %v3486 = vsel %vm3422, 1, 0
          %v3487 = vsel %vm3423, 1, 0
          %v3488 = vcvt.s32.f32 %v3424
          %v3489 = vcvt.s32.f32 %v3425
          %v3490 = vcvt.s32.f32 %v3426
          %v3491 = vcvt.s32.f32 %v3427
          %v3492 = vcvt.s32.f32 %v3428
          %v3493 = vcvt.s32.f32 %v3429
          %v3494 = vcvt.s32.f32 %v3430
          %v3495 = vcvt.s32.f32 %v3431
          %v3496 = vcvt.s32.f32 %v3432
          %v3497 = vcvt.s32.f32 %v3433
          %v3498 = vcvt.s32.f32 %v3434
          %v3499 = vcvt.s32.f32 %v3435
          %v3500 = vcvt.s32.f32 %v3436
          %v3501 = vcvt.s32.f32 %v3437
          %v3502 = vcvt.s32.f32 %v3438
          %v3503 = vcvt.s32.f32 %v3439
          %v3504 = vcvt.s32.f32 %v3440
          %v3505 = vcvt.s32.f32 %v3441
          %v3506 = vcvt.s32.f32 %v3442
          %v3507 = vcvt.s32.f32 %v3443
          %v3508 = vcvt.s32.f32 %v3444
          %v3509 = vcvt.s32.f32 %v3445
          %v3510 = vcvt.s32.f32 %v3446
          %v3511 = vcvt.s32.f32 %v3447
          %v3512 = vcvt.s32.f32 %v3448
          %v3513 = vcvt.s32.f32 %v3449
          %v3514 = vcvt.s32.f32 %v3450
          %v3515 = vcvt.s32.f32 %v3451
          %v3516 = vcvt.s32.f32 %v3452
          %v3517 = vcvt.s32.f32 %v3453
          %v3518 = vcvt.s32.f32 %v3454
          %v3519 = vcvt.s32.f32 %v3455
          %v3520 = vcvt.s32.f32 %v3456
          %v3521 = vcvt.s32.f32 %v3457
          %v3522 = vcvt.s32.f32 %v3458
          %v3523 = vcvt.s32.f32 %v3459
          %v3524 = vcvt.s32.f32 %v3460
          %v3525 = vcvt.s32.f32 %v3461
          %v3526 = vcvt.s32.f32 %v3462
          %v3527 = vcvt.s32.f32 %v3463
          %v3528 = vcvt.s32.f32 %v3464
          %v3529 = vcvt.s32.f32 %v3465
          %v3530 = vcvt.s32.f32 %v3466
          %v3531 = vcvt.s32.f32 %v3467
          %v3532 = vcvt.s32.f32 %v3468
          %v3533 = vcvt.s32.f32 %v3469
          %v3534 = vcvt.s32.f32 %v3470
          %v3535 = vcvt.s32.f32 %v3471
          %v3536 = vcvt.s32.f32 %v3472
          %v3537 = vcvt.s32.f32 %v3473
          %v3538 = vcvt.s32.f32 %v3474
          %v3539 = vcvt.s32.f32 %v3475
          %v3540 = vcvt.s32.f32 %v3476
          %v3541 = vcvt.s32.f32 %v3477
          %v3542 = vcvt.s32.f32 %v3478
          %v3543 = vcvt.s32.f32 %v3479
          %v3544 = vcvt.s32.f32 %v3480
          %v3545 = vcvt.s32.f32 %v3481
          %v3546 = vcvt.s32.f32 %v3482
          %v3547 = vcvt.s32.f32 %v3483
          %v3548 = vcvt.s32.f32 %v3484
          %v3549 = vcvt.s32.f32 %v3485
          %v3550 = vcvt.s32.f32 %v3486
          %v3551 = vcvt.s32.f32 %v3487
          %3552 = vmatprep.subr.mxu0 %v3519
          %3553 = vmatpush1.msra.mxu0 %v3518
          %3554 = vmatprep.subr.mxu0 %v3517
          %3555 = vmatpush1.msra.mxu0 %v3516
          %3556 = vmatprep.subr.mxu0 %v3515
          %3557 = vmatpush1.msra.mxu0 %v3514
          %3558 = vmatprep.subr.mxu0 %v3513
          %3559 = vmatpush1.msra.mxu0 %v3512
          %3560 = vmatprep.subr.mxu0 %v3511
          %3561 = vmatpush1.msra.mxu0 %v3510
          %3562 = vmatprep.subr.mxu0 %v3509
          %3563 = vmatpush1.msra.mxu0 %v3508
          %3564 = vmatprep.subr.mxu0 %v3507
          %3565 = vmatpush1.msra.mxu0 %v3506
          %3566 = vmatprep.subr.mxu0 %v3505
          %3567 = vmatpush1.msra.mxu0 %v3504
          %3568 = vmatprep.subr.mxu0 %v3503
          %3569 = vmatpush1.msra.mxu0 %v3502
          %3570 = vmatprep.subr.mxu0 %v3501
          %3571 = vmatpush1.msra.mxu0 %v3500
          %3572 = vmatprep.subr.mxu0 %v3499
          %3573 = vmatpush1.msra.mxu0 %v3498
          %3574 = vmatprep.subr.mxu0 %v3497
          %3575 = vmatpush1.msra.mxu0 %v3496
          %3576 = vmatprep.subr.mxu0 %v3495
          %3577 = vmatpush1.msra.mxu0 %v3494
          %3578 = vmatprep.subr.mxu0 %v3493
          %3579 = vmatpush1.msra.mxu0 %v3492
          %3580 = vmatprep.subr.mxu0 %v3491
          %3581 = vmatpush1.msra.mxu0 %v3490
          %3582 = vmatprep.subr.mxu0 %v3489
          %3583 = vmatpush1.msra.mxu0 %v3488
          %3584 = vmatprep.subr.mxu0 %v3551
          %3585 = vmatpush2.msra.mxu0 %v3550
          %3586 = vmatprep.subr.mxu0 %v3549
          %3587 = vmatpush2.msra.mxu0 %v3548
          %3588 = vmatprep.subr.mxu0 %v3547
          %3589 = vmatpush2.msra.mxu0 %v3546
          %3590 = vmatprep.subr.mxu0 %v3545
          %3591 = vmatpush2.msra.mxu0 %v3544
          %3592 = vmatprep.subr.mxu0 %v3543
          %3593 = vmatpush2.msra.mxu0 %v3542
          %3594 = vmatprep.subr.mxu0 %v3541
          %3595 = vmatpush2.msra.mxu0 %v3540
          %3596 = vmatprep.subr.mxu0 %v3539
          %3597 = vmatpush2.msra.mxu0 %v3538
          %3598 = vmatprep.subr.mxu0 %v3537
          %3599 = vmatpush2.msra.mxu0 %v3536
          %3600 = vmatprep.subr.mxu0 %v3535
          %3601 = vmatpush2.msra.mxu0 %v3534
          %3602 = vmatprep.subr.mxu0 %v3533
          %3603 = vmatpush2.msra.mxu0 %v3532
          %3604 = vmatprep.subr.mxu0 %v3531
          %3605 = vmatpush2.msra.mxu0 %v3530
          %3606 = vmatprep.subr.mxu0 %v3529
          %3607 = vmatpush2.msra.mxu0 %v3528
          %3608 = vmatprep.subr.mxu0 %v3527
          %3609 = vmatpush2.msra.mxu0 %v3526
          %3610 = vmatprep.subr.mxu0 %v3525
          %3611 = vmatpush2.msra.mxu0 %v3524
          %3612 = vmatprep.subr.mxu0 %v3523
          %3613 = vmatpush2.msra.mxu0 %v3522
          %3614 = vmatprep.subr.mxu0 %v3521
          %3615 = vmatpush2.msra.mxu0 %v3520
          %3616 = vmatprep.mubr.f32.mxu0 %v315
          %3617 = vmatmul.mubr.f32.gmra.mxu0 %v314
          %v3618 = vpop.f32.mrf.mxu0
          %v3619 = vadd.f32 0.0, %v3618
          %v3620 = vpop.f32.mrf.mxu0
          %v3621 = vadd.f32 0.0, %v3620
          %3622 = vdwg.mxu0
          %3623 = vst [vmem:[#allocation2 + $0xb0] sm:$0xff] %v3619
          %3624 = vst [vmem:[#allocation2 + $0xb8] sm:$0xff] %v3621
          %v3625 = vlaneseq
          %v3626 = vshrl.u32 %v3625, 7
          %v3627 = vsub.s32 4, %v3626
          %v3628 = vrot.slane %v312, %v3627
          %v3629 = vlaneseq
          %v3630 = vshrl.u32 %v3629, 7
          %v3631 = vsub.s32 4, %v3630
          %v3632 = vrot.slane %v313, %v3631
          %vm3633 = vcmp.eq.s32.totalorder %v317, %v3628
          %vm3634 = vcmp.eq.s32.totalorder %v317, %v3632
          %vm3635 = vcmp.eq.s32.totalorder %v318, %v3628
          %vm3636 = vcmp.eq.s32.totalorder %v318, %v3632
          %vm3637 = vcmp.eq.s32.totalorder %v319, %v3628
          %vm3638 = vcmp.eq.s32.totalorder %v319, %v3632
          %vm3639 = vcmp.eq.s32.totalorder %v320, %v3628
          %vm3640 = vcmp.eq.s32.totalorder %v320, %v3632
          %vm3641 = vcmp.eq.s32.totalorder %v321, %v3628
          %vm3642 = vcmp.eq.s32.totalorder %v321, %v3632
          %vm3643 = vcmp.eq.s32.totalorder %v322, %v3628
          %vm3644 = vcmp.eq.s32.totalorder %v322, %v3632
          %vm3645 = vcmp.eq.s32.totalorder %v323, %v3628
          %vm3646 = vcmp.eq.s32.totalorder %v323, %v3632
          %vm3647 = vcmp.eq.s32.totalorder %v324, %v3628
          %vm3648 = vcmp.eq.s32.totalorder %v324, %v3632
          %vm3649 = vcmp.eq.s32.totalorder %v325, %v3628
          %vm3650 = vcmp.eq.s32.totalorder %v325, %v3632
          %vm3651 = vcmp.eq.s32.totalorder %v326, %v3628
          %vm3652 = vcmp.eq.s32.totalorder %v326, %v3632
          %vm3653 = vcmp.eq.s32.totalorder %v327, %v3628
          %vm3654 = vcmp.eq.s32.totalorder %v327, %v3632
          %vm3655 = vcmp.eq.s32.totalorder %v328, %v3628
          %vm3656 = vcmp.eq.s32.totalorder %v328, %v3632
          %vm3657 = vcmp.eq.s32.totalorder %v329, %v3628
          %vm3658 = vcmp.eq.s32.totalorder %v329, %v3632
          %vm3659 = vcmp.eq.s32.totalorder %v330, %v3628
          %vm3660 = vcmp.eq.s32.totalorder %v330, %v3632
          %vm3661 = vcmp.eq.s32.totalorder %v331, %v3628
          %vm3662 = vcmp.eq.s32.totalorder %v331, %v3632
          %vm3663 = vcmp.eq.s32.totalorder %v332, %v3628
          %vm3664 = vcmp.eq.s32.totalorder %v332, %v3632
          %vm3665 = vcmp.eq.s32.totalorder %v333, %v3628
          %vm3666 = vcmp.eq.s32.totalorder %v333, %v3632
          %vm3667 = vcmp.eq.s32.totalorder %v334, %v3628
          %vm3668 = vcmp.eq.s32.totalorder %v334, %v3632
          %vm3669 = vcmp.eq.s32.totalorder %v335, %v3628
          %vm3670 = vcmp.eq.s32.totalorder %v335, %v3632
          %vm3671 = vcmp.eq.s32.totalorder %v336, %v3628
          %vm3672 = vcmp.eq.s32.totalorder %v336, %v3632
          %vm3673 = vcmp.eq.s32.totalorder %v337, %v3628
          %vm3674 = vcmp.eq.s32.totalorder %v337, %v3632
          %vm3675 = vcmp.eq.s32.totalorder %v338, %v3628
          %vm3676 = vcmp.eq.s32.totalorder %v338, %v3632
          %vm3677 = vcmp.eq.s32.totalorder %v339, %v3628
          %vm3678 = vcmp.eq.s32.totalorder %v339, %v3632
          %vm3679 = vcmp.eq.s32.totalorder %v340, %v3628
          %vm3680 = vcmp.eq.s32.totalorder %v340, %v3632
          %vm3681 = vcmp.eq.s32.totalorder %v341, %v3628
          %vm3682 = vcmp.eq.s32.totalorder %v341, %v3632
          %vm3683 = vcmp.eq.s32.totalorder %v342, %v3628
          %vm3684 = vcmp.eq.s32.totalorder %v342, %v3632
          %vm3685 = vcmp.eq.s32.totalorder %v343, %v3628
          %vm3686 = vcmp.eq.s32.totalorder %v343, %v3632
          %vm3687 = vcmp.eq.s32.totalorder %v344, %v3628
          %vm3688 = vcmp.eq.s32.totalorder %v344, %v3632
          %vm3689 = vcmp.eq.s32.totalorder %v345, %v3628
          %vm3690 = vcmp.eq.s32.totalorder %v345, %v3632
          %vm3691 = vcmp.eq.s32.totalorder %v346, %v3628
          %vm3692 = vcmp.eq.s32.totalorder %v346, %v3632
          %vm3693 = vcmp.eq.s32.totalorder %v347, %v3628
          %vm3694 = vcmp.eq.s32.totalorder %v347, %v3632
          %vm3695 = vcmp.eq.s32.totalorder %v348, %v3628
          %vm3696 = vcmp.eq.s32.totalorder %v348, %v3632
          %v3697 = vsel %vm3633, 1, 0
          %v3698 = vsel %vm3634, 1, 0
          %v3699 = vsel %vm3635, 1, 0
          %v3700 = vsel %vm3636, 1, 0
          %v3701 = vsel %vm3637, 1, 0
          %v3702 = vsel %vm3638, 1, 0
          %v3703 = vsel %vm3639, 1, 0
          %v3704 = vsel %vm3640, 1, 0
          %v3705 = vsel %vm3641, 1, 0
          %v3706 = vsel %vm3642, 1, 0
          %v3707 = vsel %vm3643, 1, 0
          %v3708 = vsel %vm3644, 1, 0
          %v3709 = vsel %vm3645, 1, 0
          %v3710 = vsel %vm3646, 1, 0
          %v3711 = vsel %vm3647, 1, 0
          %v3712 = vsel %vm3648, 1, 0
          %v3713 = vsel %vm3649, 1, 0
          %v3714 = vsel %vm3650, 1, 0
          %v3715 = vsel %vm3651, 1, 0
          %v3716 = vsel %vm3652, 1, 0
          %v3717 = vsel %vm3653, 1, 0
          %v3718 = vsel %vm3654, 1, 0
          %v3719 = vsel %vm3655, 1, 0
          %v3720 = vsel %vm3656, 1, 0
          %v3721 = vsel %vm3657, 1, 0
          %v3722 = vsel %vm3658, 1, 0
          %v3723 = vsel %vm3659, 1, 0
          %v3724 = vsel %vm3660, 1, 0
          %v3725 = vsel %vm3661, 1, 0
          %v3726 = vsel %vm3662, 1, 0
          %v3727 = vsel %vm3663, 1, 0
          %v3728 = vsel %vm3664, 1, 0
          %v3729 = vsel %vm3665, 1, 0
          %v3730 = vsel %vm3666, 1, 0
          %v3731 = vsel %vm3667, 1, 0
          %v3732 = vsel %vm3668, 1, 0
          %v3733 = vsel %vm3669, 1, 0
          %v3734 = vsel %vm3670, 1, 0
          %v3735 = vsel %vm3671, 1, 0
          %v3736 = vsel %vm3672, 1, 0
          %v3737 = vsel %vm3673, 1, 0
          %v3738 = vsel %vm3674, 1, 0
          %v3739 = vsel %vm3675, 1, 0
          %v3740 = vsel %vm3676, 1, 0
          %v3741 = vsel %vm3677, 1, 0
          %v3742 = vsel %vm3678, 1, 0
          %v3743 = vsel %vm3679, 1, 0
          %v3744 = vsel %vm3680, 1, 0
          %v3745 = vsel %vm3681, 1, 0
          %v3746 = vsel %vm3682, 1, 0
          %v3747 = vsel %vm3683, 1, 0
          %v3748 = vsel %vm3684, 1, 0
          %v3749 = vsel %vm3685, 1, 0
          %v3750 = vsel %vm3686, 1, 0
          %v3751 = vsel %vm3687, 1, 0
          %v3752 = vsel %vm3688, 1, 0
          %v3753 = vsel %vm3689, 1, 0
          %v3754 = vsel %vm3690, 1, 0
          %v3755 = vsel %vm3691, 1, 0
          %v3756 = vsel %vm3692, 1, 0
          %v3757 = vsel %vm3693, 1, 0
          %v3758 = vsel %vm3694, 1, 0
          %v3759 = vsel %vm3695, 1, 0
          %v3760 = vsel %vm3696, 1, 0
          %v3761 = vcvt.s32.f32 %v3697
          %v3762 = vcvt.s32.f32 %v3698
          %v3763 = vcvt.s32.f32 %v3699
          %v3764 = vcvt.s32.f32 %v3700
          %v3765 = vcvt.s32.f32 %v3701
          %v3766 = vcvt.s32.f32 %v3702
          %v3767 = vcvt.s32.f32 %v3703
          %v3768 = vcvt.s32.f32 %v3704
          %v3769 = vcvt.s32.f32 %v3705
          %v3770 = vcvt.s32.f32 %v3706
          %v3771 = vcvt.s32.f32 %v3707
          %v3772 = vcvt.s32.f32 %v3708
          %v3773 = vcvt.s32.f32 %v3709
          %v3774 = vcvt.s32.f32 %v3710
          %v3775 = vcvt.s32.f32 %v3711
          %v3776 = vcvt.s32.f32 %v3712
          %v3777 = vcvt.s32.f32 %v3713
          %v3778 = vcvt.s32.f32 %v3714
          %v3779 = vcvt.s32.f32 %v3715
          %v3780 = vcvt.s32.f32 %v3716
          %v3781 = vcvt.s32.f32 %v3717
          %v3782 = vcvt.s32.f32 %v3718
          %v3783 = vcvt.s32.f32 %v3719
          %v3784 = vcvt.s32.f32 %v3720
          %v3785 = vcvt.s32.f32 %v3721
          %v3786 = vcvt.s32.f32 %v3722
          %v3787 = vcvt.s32.f32 %v3723
          %v3788 = vcvt.s32.f32 %v3724
          %v3789 = vcvt.s32.f32 %v3725
          %v3790 = vcvt.s32.f32 %v3726
          %v3791 = vcvt.s32.f32 %v3727
          %v3792 = vcvt.s32.f32 %v3728
          %v3793 = vcvt.s32.f32 %v3729
          %v3794 = vcvt.s32.f32 %v3730
          %v3795 = vcvt.s32.f32 %v3731
          %v3796 = vcvt.s32.f32 %v3732
          %v3797 = vcvt.s32.f32 %v3733
          %v3798 = vcvt.s32.f32 %v3734
          %v3799 = vcvt.s32.f32 %v3735
          %v3800 = vcvt.s32.f32 %v3736
          %v3801 = vcvt.s32.f32 %v3737
          %v3802 = vcvt.s32.f32 %v3738
          %v3803 = vcvt.s32.f32 %v3739
          %v3804 = vcvt.s32.f32 %v3740
          %v3805 = vcvt.s32.f32 %v3741
          %v3806 = vcvt.s32.f32 %v3742
          %v3807 = vcvt.s32.f32 %v3743
          %v3808 = vcvt.s32.f32 %v3744
          %v3809 = vcvt.s32.f32 %v3745
          %v3810 = vcvt.s32.f32 %v3746
          %v3811 = vcvt.s32.f32 %v3747
          %v3812 = vcvt.s32.f32 %v3748
          %v3813 = vcvt.s32.f32 %v3749
          %v3814 = vcvt.s32.f32 %v3750
          %v3815 = vcvt.s32.f32 %v3751
          %v3816 = vcvt.s32.f32 %v3752
          %v3817 = vcvt.s32.f32 %v3753
          %v3818 = vcvt.s32.f32 %v3754
          %v3819 = vcvt.s32.f32 %v3755
          %v3820 = vcvt.s32.f32 %v3756
          %v3821 = vcvt.s32.f32 %v3757
          %v3822 = vcvt.s32.f32 %v3758
          %v3823 = vcvt.s32.f32 %v3759
          %v3824 = vcvt.s32.f32 %v3760
          %3825 = vmatprep.subr.mxu0 %v3792
          %3826 = vmatpush1.msra.mxu0 %v3791
          %3827 = vmatprep.subr.mxu0 %v3790
          %3828 = vmatpush1.msra.mxu0 %v3789
          %3829 = vmatprep.subr.mxu0 %v3788
          %3830 = vmatpush1.msra.mxu0 %v3787
          %3831 = vmatprep.subr.mxu0 %v3786
          %3832 = vmatpush1.msra.mxu0 %v3785
          %3833 = vmatprep.subr.mxu0 %v3784
          %3834 = vmatpush1.msra.mxu0 %v3783
          %3835 = vmatprep.subr.mxu0 %v3782
          %3836 = vmatpush1.msra.mxu0 %v3781
          %3837 = vmatprep.subr.mxu0 %v3780
          %3838 = vmatpush1.msra.mxu0 %v3779
          %3839 = vmatprep.subr.mxu0 %v3778
          %3840 = vmatpush1.msra.mxu0 %v3777
          %3841 = vmatprep.subr.mxu0 %v3776
          %3842 = vmatpush1.msra.mxu0 %v3775
          %3843 = vmatprep.subr.mxu0 %v3774
          %3844 = vmatpush1.msra.mxu0 %v3773
          %3845 = vmatprep.subr.mxu0 %v3772
          %3846 = vmatpush1.msra.mxu0 %v3771
          %3847 = vmatprep.subr.mxu0 %v3770
          %3848 = vmatpush1.msra.mxu0 %v3769
          %3849 = vmatprep.subr.mxu0 %v3768
          %3850 = vmatpush1.msra.mxu0 %v3767
          %3851 = vmatprep.subr.mxu0 %v3766
          %3852 = vmatpush1.msra.mxu0 %v3765
          %3853 = vmatprep.subr.mxu0 %v3764
          %3854 = vmatpush1.msra.mxu0 %v3763
          %3855 = vmatprep.subr.mxu0 %v3762
          %3856 = vmatpush1.msra.mxu0 %v3761
          %3857 = vmatprep.subr.mxu0 %v3824
          %3858 = vmatpush2.msra.mxu0 %v3823
          %3859 = vmatprep.subr.mxu0 %v3822
          %3860 = vmatpush2.msra.mxu0 %v3821
          %3861 = vmatprep.subr.mxu0 %v3820
          %3862 = vmatpush2.msra.mxu0 %v3819
          %3863 = vmatprep.subr.mxu0 %v3818
          %3864 = vmatpush2.msra.mxu0 %v3817
          %3865 = vmatprep.subr.mxu0 %v3816
          %3866 = vmatpush2.msra.mxu0 %v3815
          %3867 = vmatprep.subr.mxu0 %v3814
          %3868 = vmatpush2.msra.mxu0 %v3813
          %3869 = vmatprep.subr.mxu0 %v3812
          %3870 = vmatpush2.msra.mxu0 %v3811
          %3871 = vmatprep.subr.mxu0 %v3810
          %3872 = vmatpush2.msra.mxu0 %v3809
          %3873 = vmatprep.subr.mxu0 %v3808
          %3874 = vmatpush2.msra.mxu0 %v3807
          %3875 = vmatprep.subr.mxu0 %v3806
          %3876 = vmatpush2.msra.mxu0 %v3805
          %3877 = vmatprep.subr.mxu0 %v3804
          %3878 = vmatpush2.msra.mxu0 %v3803
          %3879 = vmatprep.subr.mxu0 %v3802
          %3880 = vmatpush2.msra.mxu0 %v3801
          %3881 = vmatprep.subr.mxu0 %v3800
          %3882 = vmatpush2.msra.mxu0 %v3799
          %3883 = vmatprep.subr.mxu0 %v3798
          %3884 = vmatpush2.msra.mxu0 %v3797
          %3885 = vmatprep.subr.mxu0 %v3796
          %3886 = vmatpush2.msra.mxu0 %v3795
          %3887 = vmatprep.subr.mxu0 %v3794
          %3888 = vmatpush2.msra.mxu0 %v3793
          %3889 = vmatprep.mubr.f32.mxu0 %v315
          %3890 = vmatmul.mubr.f32.gmra.mxu0 %v314
          %v3891 = vpop.f32.mrf.mxu0
          %v3892 = vadd.f32 0.0, %v3891
          %v3893 = vpop.f32.mrf.mxu0
          %v3894 = vadd.f32 0.0, %v3893
          %3895 = vdwg.mxu0
          %3896 = vst [vmem:[#allocation2 + $0xc0] sm:$0xff] %v3892
          %3897 = vst [vmem:[#allocation2 + $0xc8] sm:$0xff] %v3894
          %v3898 = vlaneseq
          %v3899 = vshrl.u32 %v3898, 7
          %v3900 = vsub.s32 5, %v3899
          %v3901 = vrot.slane %v312, %v3900
          %v3902 = vlaneseq
          %v3903 = vshrl.u32 %v3902, 7
          %v3904 = vsub.s32 5, %v3903
          %v3905 = vrot.slane %v313, %v3904
          %vm3906 = vcmp.eq.s32.totalorder %v317, %v3901
          %vm3907 = vcmp.eq.s32.totalorder %v317, %v3905
          %vm3908 = vcmp.eq.s32.totalorder %v318, %v3901
          %vm3909 = vcmp.eq.s32.totalorder %v318, %v3905
          %vm3910 = vcmp.eq.s32.totalorder %v319, %v3901
          %vm3911 = vcmp.eq.s32.totalorder %v319, %v3905
          %vm3912 = vcmp.eq.s32.totalorder %v320, %v3901
          %vm3913 = vcmp.eq.s32.totalorder %v320, %v3905
          %vm3914 = vcmp.eq.s32.totalorder %v321, %v3901
          %vm3915 = vcmp.eq.s32.totalorder %v321, %v3905
          %vm3916 = vcmp.eq.s32.totalorder %v322, %v3901
          %vm3917 = vcmp.eq.s32.totalorder %v322, %v3905
          %vm3918 = vcmp.eq.s32.totalorder %v323, %v3901
          %vm3919 = vcmp.eq.s32.totalorder %v323, %v3905
          %vm3920 = vcmp.eq.s32.totalorder %v324, %v3901
          %vm3921 = vcmp.eq.s32.totalorder %v324, %v3905
          %vm3922 = vcmp.eq.s32.totalorder %v325, %v3901
          %vm3923 = vcmp.eq.s32.totalorder %v325, %v3905
          %vm3924 = vcmp.eq.s32.totalorder %v326, %v3901
          %vm3925 = vcmp.eq.s32.totalorder %v326, %v3905
          %vm3926 = vcmp.eq.s32.totalorder %v327, %v3901
          %vm3927 = vcmp.eq.s32.totalorder %v327, %v3905
          %vm3928 = vcmp.eq.s32.totalorder %v328, %v3901
          %vm3929 = vcmp.eq.s32.totalorder %v328, %v3905
          %vm3930 = vcmp.eq.s32.totalorder %v329, %v3901
          %vm3931 = vcmp.eq.s32.totalorder %v329, %v3905
          %vm3932 = vcmp.eq.s32.totalorder %v330, %v3901
          %vm3933 = vcmp.eq.s32.totalorder %v330, %v3905
          %vm3934 = vcmp.eq.s32.totalorder %v331, %v3901
          %vm3935 = vcmp.eq.s32.totalorder %v331, %v3905
          %vm3936 = vcmp.eq.s32.totalorder %v332, %v3901
          %vm3937 = vcmp.eq.s32.totalorder %v332, %v3905
          %vm3938 = vcmp.eq.s32.totalorder %v333, %v3901
          %vm3939 = vcmp.eq.s32.totalorder %v333, %v3905
          %vm3940 = vcmp.eq.s32.totalorder %v334, %v3901
          %vm3941 = vcmp.eq.s32.totalorder %v334, %v3905
          %vm3942 = vcmp.eq.s32.totalorder %v335, %v3901
          %vm3943 = vcmp.eq.s32.totalorder %v335, %v3905
          %vm3944 = vcmp.eq.s32.totalorder %v336, %v3901
          %vm3945 = vcmp.eq.s32.totalorder %v336, %v3905
          %vm3946 = vcmp.eq.s32.totalorder %v337, %v3901
          %vm3947 = vcmp.eq.s32.totalorder %v337, %v3905
          %vm3948 = vcmp.eq.s32.totalorder %v338, %v3901
          %vm3949 = vcmp.eq.s32.totalorder %v338, %v3905
          %vm3950 = vcmp.eq.s32.totalorder %v339, %v3901
          %vm3951 = vcmp.eq.s32.totalorder %v339, %v3905
          %vm3952 = vcmp.eq.s32.totalorder %v340, %v3901
          %vm3953 = vcmp.eq.s32.totalorder %v340, %v3905
          %vm3954 = vcmp.eq.s32.totalorder %v341, %v3901
          %vm3955 = vcmp.eq.s32.totalorder %v341, %v3905
          %vm3956 = vcmp.eq.s32.totalorder %v342, %v3901
          %vm3957 = vcmp.eq.s32.totalorder %v342, %v3905
          %vm3958 = vcmp.eq.s32.totalorder %v343, %v3901
          %vm3959 = vcmp.eq.s32.totalorder %v343, %v3905
          %vm3960 = vcmp.eq.s32.totalorder %v344, %v3901
          %vm3961 = vcmp.eq.s32.totalorder %v344, %v3905
          %vm3962 = vcmp.eq.s32.totalorder %v345, %v3901
          %vm3963 = vcmp.eq.s32.totalorder %v345, %v3905
          %vm3964 = vcmp.eq.s32.totalorder %v346, %v3901
          %vm3965 = vcmp.eq.s32.totalorder %v346, %v3905
          %vm3966 = vcmp.eq.s32.totalorder %v347, %v3901
          %vm3967 = vcmp.eq.s32.totalorder %v347, %v3905
          %vm3968 = vcmp.eq.s32.totalorder %v348, %v3901
          %vm3969 = vcmp.eq.s32.totalorder %v348, %v3905
          %v3970 = vsel %vm3906, 1, 0
          %v3971 = vsel %vm3907, 1, 0
          %v3972 = vsel %vm3908, 1, 0
          %v3973 = vsel %vm3909, 1, 0
          %v3974 = vsel %vm3910, 1, 0
          %v3975 = vsel %vm3911, 1, 0
          %v3976 = vsel %vm3912, 1, 0
          %v3977 = vsel %vm3913, 1, 0
          %v3978 = vsel %vm3914, 1, 0
          %v3979 = vsel %vm3915, 1, 0
          %v3980 = vsel %vm3916, 1, 0
          %v3981 = vsel %vm3917, 1, 0
          %v3982 = vsel %vm3918, 1, 0
          %v3983 = vsel %vm3919, 1, 0
          %v3984 = vsel %vm3920, 1, 0
          %v3985 = vsel %vm3921, 1, 0
          %v3986 = vsel %vm3922, 1, 0
          %v3987 = vsel %vm3923, 1, 0
          %v3988 = vsel %vm3924, 1, 0
          %v3989 = vsel %vm3925, 1, 0
          %v3990 = vsel %vm3926, 1, 0
          %v3991 = vsel %vm3927, 1, 0
          %v3992 = vsel %vm3928, 1, 0
          %v3993 = vsel %vm3929, 1, 0
          %v3994 = vsel %vm3930, 1, 0
          %v3995 = vsel %vm3931, 1, 0
          %v3996 = vsel %vm3932, 1, 0
          %v3997 = vsel %vm3933, 1, 0
          %v3998 = vsel %vm3934, 1, 0
          %v3999 = vsel %vm3935, 1, 0
          %v4000 = vsel %vm3936, 1, 0
          %v4001 = vsel %vm3937, 1, 0
          %v4002 = vsel %vm3938, 1, 0
          %v4003 = vsel %vm3939, 1, 0
          %v4004 = vsel %vm3940, 1, 0
          %v4005 = vsel %vm3941, 1, 0
          %v4006 = vsel %vm3942, 1, 0
          %v4007 = vsel %vm3943, 1, 0
          %v4008 = vsel %vm3944, 1, 0
          %v4009 = vsel %vm3945, 1, 0
          %v4010 = vsel %vm3946, 1, 0
          %v4011 = vsel %vm3947, 1, 0
          %v4012 = vsel %vm3948, 1, 0
          %v4013 = vsel %vm3949, 1, 0
          %v4014 = vsel %vm3950, 1, 0
          %v4015 = vsel %vm3951, 1, 0
          %v4016 = vsel %vm3952, 1, 0
          %v4017 = vsel %vm3953, 1, 0
          %v4018 = vsel %vm3954, 1, 0
          %v4019 = vsel %vm3955, 1, 0
          %v4020 = vsel %vm3956, 1, 0
          %v4021 = vsel %vm3957, 1, 0
          %v4022 = vsel %vm3958, 1, 0
          %v4023 = vsel %vm3959, 1, 0
          %v4024 = vsel %vm3960, 1, 0
          %v4025 = vsel %vm3961, 1, 0
          %v4026 = vsel %vm3962, 1, 0
          %v4027 = vsel %vm3963, 1, 0
          %v4028 = vsel %vm3964, 1, 0
          %v4029 = vsel %vm3965, 1, 0
          %v4030 = vsel %vm3966, 1, 0
          %v4031 = vsel %vm3967, 1, 0
          %v4032 = vsel %vm3968, 1, 0
          %v4033 = vsel %vm3969, 1, 0
          %v4034 = vcvt.s32.f32 %v3970
          %v4035 = vcvt.s32.f32 %v3971
          %v4036 = vcvt.s32.f32 %v3972
          %v4037 = vcvt.s32.f32 %v3973
          %v4038 = vcvt.s32.f32 %v3974
          %v4039 = vcvt.s32.f32 %v3975
          %v4040 = vcvt.s32.f32 %v3976
          %v4041 = vcvt.s32.f32 %v3977
          %v4042 = vcvt.s32.f32 %v3978
          %v4043 = vcvt.s32.f32 %v3979
          %v4044 = vcvt.s32.f32 %v3980
          %v4045 = vcvt.s32.f32 %v3981
          %v4046 = vcvt.s32.f32 %v3982
          %v4047 = vcvt.s32.f32 %v3983
          %v4048 = vcvt.s32.f32 %v3984
          %v4049 = vcvt.s32.f32 %v3985
          %v4050 = vcvt.s32.f32 %v3986
          %v4051 = vcvt.s32.f32 %v3987
          %v4052 = vcvt.s32.f32 %v3988
          %v4053 = vcvt.s32.f32 %v3989
          %v4054 = vcvt.s32.f32 %v3990
          %v4055 = vcvt.s32.f32 %v3991
          %v4056 = vcvt.s32.f32 %v3992
          %v4057 = vcvt.s32.f32 %v3993
          %v4058 = vcvt.s32.f32 %v3994
          %v4059 = vcvt.s32.f32 %v3995
          %v4060 = vcvt.s32.f32 %v3996
          %v4061 = vcvt.s32.f32 %v3997
          %v4062 = vcvt.s32.f32 %v3998
          %v4063 = vcvt.s32.f32 %v3999
          %v4064 = vcvt.s32.f32 %v4000
          %v4065 = vcvt.s32.f32 %v4001
          %v4066 = vcvt.s32.f32 %v4002
          %v4067 = vcvt.s32.f32 %v4003
          %v4068 = vcvt.s32.f32 %v4004
          %v4069 = vcvt.s32.f32 %v4005
          %v4070 = vcvt.s32.f32 %v4006
          %v4071 = vcvt.s32.f32 %v4007
          %v4072 = vcvt.s32.f32 %v4008
          %v4073 = vcvt.s32.f32 %v4009
          %v4074 = vcvt.s32.f32 %v4010
          %v4075 = vcvt.s32.f32 %v4011
          %v4076 = vcvt.s32.f32 %v4012
          %v4077 = vcvt.s32.f32 %v4013
          %v4078 = vcvt.s32.f32 %v4014
          %v4079 = vcvt.s32.f32 %v4015
          %v4080 = vcvt.s32.f32 %v4016
          %v4081 = vcvt.s32.f32 %v4017
          %v4082 = vcvt.s32.f32 %v4018
          %v4083 = vcvt.s32.f32 %v4019
          %v4084 = vcvt.s32.f32 %v4020
          %v4085 = vcvt.s32.f32 %v4021
          %v4086 = vcvt.s32.f32 %v4022
          %v4087 = vcvt.s32.f32 %v4023
          %v4088 = vcvt.s32.f32 %v4024
          %v4089 = vcvt.s32.f32 %v4025
          %v4090 = vcvt.s32.f32 %v4026
          %v4091 = vcvt.s32.f32 %v4027
          %v4092 = vcvt.s32.f32 %v4028
          %v4093 = vcvt.s32.f32 %v4029
          %v4094 = vcvt.s32.f32 %v4030
          %v4095 = vcvt.s32.f32 %v4031
          %v4096 = vcvt.s32.f32 %v4032
          %v4097 = vcvt.s32.f32 %v4033
          %4098 = vmatprep.subr.mxu0 %v4065
          %4099 = vmatpush1.msra.mxu0 %v4064
          %4100 = vmatprep.subr.mxu0 %v4063
          %4101 = vmatpush1.msra.mxu0 %v4062
          %4102 = vmatprep.subr.mxu0 %v4061
          %4103 = vmatpush1.msra.mxu0 %v4060
          %4104 = vmatprep.subr.mxu0 %v4059
          %4105 = vmatpush1.msra.mxu0 %v4058
          %4106 = vmatprep.subr.mxu0 %v4057
          %4107 = vmatpush1.msra.mxu0 %v4056
          %4108 = vmatprep.subr.mxu0 %v4055
          %4109 = vmatpush1.msra.mxu0 %v4054
          %4110 = vmatprep.subr.mxu0 %v4053
          %4111 = vmatpush1.msra.mxu0 %v4052
          %4112 = vmatprep.subr.mxu0 %v4051
          %4113 = vmatpush1.msra.mxu0 %v4050
          %4114 = vmatprep.subr.mxu0 %v4049
          %4115 = vmatpush1.msra.mxu0 %v4048
          %4116 = vmatprep.subr.mxu0 %v4047
          %4117 = vmatpush1.msra.mxu0 %v4046
          %4118 = vmatprep.subr.mxu0 %v4045
          %4119 = vmatpush1.msra.mxu0 %v4044
          %4120 = vmatprep.subr.mxu0 %v4043
          %4121 = vmatpush1.msra.mxu0 %v4042
          %4122 = vmatprep.subr.mxu0 %v4041
          %4123 = vmatpush1.msra.mxu0 %v4040
          %4124 = vmatprep.subr.mxu0 %v4039
          %4125 = vmatpush1.msra.mxu0 %v4038
          %4126 = vmatprep.subr.mxu0 %v4037
          %4127 = vmatpush1.msra.mxu0 %v4036
          %4128 = vmatprep.subr.mxu0 %v4035
          %4129 = vmatpush1.msra.mxu0 %v4034
          %4130 = vmatprep.subr.mxu0 %v4097
          %4131 = vmatpush2.msra.mxu0 %v4096
          %4132 = vmatprep.subr.mxu0 %v4095
          %4133 = vmatpush2.msra.mxu0 %v4094
          %4134 = vmatprep.subr.mxu0 %v4093
          %4135 = vmatpush2.msra.mxu0 %v4092
          %4136 = vmatprep.subr.mxu0 %v4091
          %4137 = vmatpush2.msra.mxu0 %v4090
          %4138 = vmatprep.subr.mxu0 %v4089
          %4139 = vmatpush2.msra.mxu0 %v4088
          %4140 = vmatprep.subr.mxu0 %v4087
          %4141 = vmatpush2.msra.mxu0 %v4086
          %4142 = vmatprep.subr.mxu0 %v4085
          %4143 = vmatpush2.msra.mxu0 %v4084
          %4144 = vmatprep.subr.mxu0 %v4083
          %4145 = vmatpush2.msra.mxu0 %v4082
          %4146 = vmatprep.subr.mxu0 %v4081
          %4147 = vmatpush2.msra.mxu0 %v4080
          %4148 = vmatprep.subr.mxu0 %v4079
          %4149 = vmatpush2.msra.mxu0 %v4078
          %4150 = vmatprep.subr.mxu0 %v4077
          %4151 = vmatpush2.msra.mxu0 %v4076
          %4152 = vmatprep.subr.mxu0 %v4075
          %4153 = vmatpush2.msra.mxu0 %v4074
          %4154 = vmatprep.subr.mxu0 %v4073
          %4155 = vmatpush2.msra.mxu0 %v4072
          %4156 = vmatprep.subr.mxu0 %v4071
          %4157 = vmatpush2.msra.mxu0 %v4070
          %4158 = vmatprep.subr.mxu0 %v4069
          %4159 = vmatpush2.msra.mxu0 %v4068
          %4160 = vmatprep.subr.mxu0 %v4067
          %4161 = vmatpush2.msra.mxu0 %v4066
          %4162 = vmatprep.mubr.f32.mxu0 %v315
          %4163 = vmatmul.mubr.f32.gmra.mxu0 %v314
          %v4164 = vpop.f32.mrf.mxu0
          %v4165 = vadd.f32 0.0, %v4164
          %v4166 = vpop.f32.mrf.mxu0
          %v4167 = vadd.f32 0.0, %v4166
          %4168 = vdwg.mxu0
          %4169 = vst [vmem:[#allocation2 + $0xd0] sm:$0xff] %v4165
          %4170 = vst [vmem:[#allocation2 + $0xd8] sm:$0xff] %v4167
          %v4171 = vlaneseq
          %v4172 = vshrl.u32 %v4171, 7
          %v4173 = vsub.s32 6, %v4172
          %v4174 = vrot.slane %v312, %v4173
          %v4175 = vlaneseq
          %v4176 = vshrl.u32 %v4175, 7
          %v4177 = vsub.s32 6, %v4176
          %v4178 = vrot.slane %v313, %v4177
          %vm4179 = vcmp.eq.s32.totalorder %v317, %v4174
          %vm4180 = vcmp.eq.s32.totalorder %v317, %v4178
          %vm4181 = vcmp.eq.s32.totalorder %v318, %v4174
          %vm4182 = vcmp.eq.s32.totalorder %v318, %v4178
          %vm4183 = vcmp.eq.s32.totalorder %v319, %v4174
          %vm4184 = vcmp.eq.s32.totalorder %v319, %v4178
          %vm4185 = vcmp.eq.s32.totalorder %v320, %v4174
          %vm4186 = vcmp.eq.s32.totalorder %v320, %v4178
          %vm4187 = vcmp.eq.s32.totalorder %v321, %v4174
          %vm4188 = vcmp.eq.s32.totalorder %v321, %v4178
          %vm4189 = vcmp.eq.s32.totalorder %v322, %v4174
          %vm4190 = vcmp.eq.s32.totalorder %v322, %v4178
          %vm4191 = vcmp.eq.s32.totalorder %v323, %v4174
          %vm4192 = vcmp.eq.s32.totalorder %v323, %v4178
          %vm4193 = vcmp.eq.s32.totalorder %v324, %v4174
          %vm4194 = vcmp.eq.s32.totalorder %v324, %v4178
          %vm4195 = vcmp.eq.s32.totalorder %v325, %v4174
          %vm4196 = vcmp.eq.s32.totalorder %v325, %v4178
          %vm4197 = vcmp.eq.s32.totalorder %v326, %v4174
          %vm4198 = vcmp.eq.s32.totalorder %v326, %v4178
          %vm4199 = vcmp.eq.s32.totalorder %v327, %v4174
          %vm4200 = vcmp.eq.s32.totalorder %v327, %v4178
          %vm4201 = vcmp.eq.s32.totalorder %v328, %v4174
          %vm4202 = vcmp.eq.s32.totalorder %v328, %v4178
          %vm4203 = vcmp.eq.s32.totalorder %v329, %v4174
          %vm4204 = vcmp.eq.s32.totalorder %v329, %v4178
          %vm4205 = vcmp.eq.s32.totalorder %v330, %v4174
          %vm4206 = vcmp.eq.s32.totalorder %v330, %v4178
          %vm4207 = vcmp.eq.s32.totalorder %v331, %v4174
          %vm4208 = vcmp.eq.s32.totalorder %v331, %v4178
          %vm4209 = vcmp.eq.s32.totalorder %v332, %v4174
          %vm4210 = vcmp.eq.s32.totalorder %v332, %v4178
          %vm4211 = vcmp.eq.s32.totalorder %v333, %v4174
          %vm4212 = vcmp.eq.s32.totalorder %v333, %v4178
          %vm4213 = vcmp.eq.s32.totalorder %v334, %v4174
          %vm4214 = vcmp.eq.s32.totalorder %v334, %v4178
          %vm4215 = vcmp.eq.s32.totalorder %v335, %v4174
          %vm4216 = vcmp.eq.s32.totalorder %v335, %v4178
          %vm4217 = vcmp.eq.s32.totalorder %v336, %v4174
          %vm4218 = vcmp.eq.s32.totalorder %v336, %v4178
          %vm4219 = vcmp.eq.s32.totalorder %v337, %v4174
          %vm4220 = vcmp.eq.s32.totalorder %v337, %v4178
          %vm4221 = vcmp.eq.s32.totalorder %v338, %v4174
          %vm4222 = vcmp.eq.s32.totalorder %v338, %v4178
          %vm4223 = vcmp.eq.s32.totalorder %v339, %v4174
          %vm4224 = vcmp.eq.s32.totalorder %v339, %v4178
          %vm4225 = vcmp.eq.s32.totalorder %v340, %v4174
          %vm4226 = vcmp.eq.s32.totalorder %v340, %v4178
          %vm4227 = vcmp.eq.s32.totalorder %v341, %v4174
          %vm4228 = vcmp.eq.s32.totalorder %v341, %v4178
          %vm4229 = vcmp.eq.s32.totalorder %v342, %v4174
          %vm4230 = vcmp.eq.s32.totalorder %v342, %v4178
          %vm4231 = vcmp.eq.s32.totalorder %v343, %v4174
          %vm4232 = vcmp.eq.s32.totalorder %v343, %v4178
          %vm4233 = vcmp.eq.s32.totalorder %v344, %v4174
          %vm4234 = vcmp.eq.s32.totalorder %v344, %v4178
          %vm4235 = vcmp.eq.s32.totalorder %v345, %v4174
          %vm4236 = vcmp.eq.s32.totalorder %v345, %v4178
          %vm4237 = vcmp.eq.s32.totalorder %v346, %v4174
          %vm4238 = vcmp.eq.s32.totalorder %v346, %v4178
          %vm4239 = vcmp.eq.s32.totalorder %v347, %v4174
          %vm4240 = vcmp.eq.s32.totalorder %v347, %v4178
          %vm4241 = vcmp.eq.s32.totalorder %v348, %v4174
          %vm4242 = vcmp.eq.s32.totalorder %v348, %v4178
          %v4243 = vsel %vm4179, 1, 0
          %v4244 = vsel %vm4180, 1, 0
          %v4245 = vsel %vm4181, 1, 0
          %v4246 = vsel %vm4182, 1, 0
          %v4247 = vsel %vm4183, 1, 0
          %v4248 = vsel %vm4184, 1, 0
          %v4249 = vsel %vm4185, 1, 0
          %v4250 = vsel %vm4186, 1, 0
          %v4251 = vsel %vm4187, 1, 0
          %v4252 = vsel %vm4188, 1, 0
          %v4253 = vsel %vm4189, 1, 0
          %v4254 = vsel %vm4190, 1, 0
          %v4255 = vsel %vm4191, 1, 0
          %v4256 = vsel %vm4192, 1, 0
          %v4257 = vsel %vm4193, 1, 0
          %v4258 = vsel %vm4194, 1, 0
          %v4259 = vsel %vm4195, 1, 0
          %v4260 = vsel %vm4196, 1, 0
          %v4261 = vsel %vm4197, 1, 0
          %v4262 = vsel %vm4198, 1, 0
          %v4263 = vsel %vm4199, 1, 0
          %v4264 = vsel %vm4200, 1, 0
          %v4265 = vsel %vm4201, 1, 0
          %v4266 = vsel %vm4202, 1, 0
          %v4267 = vsel %vm4203, 1, 0
          %v4268 = vsel %vm4204, 1, 0
          %v4269 = vsel %vm4205, 1, 0
          %v4270 = vsel %vm4206, 1, 0
          %v4271 = vsel %vm4207, 1, 0
          %v4272 = vsel %vm4208, 1, 0
          %v4273 = vsel %vm4209, 1, 0
          %v4274 = vsel %vm4210, 1, 0
          %v4275 = vsel %vm4211, 1, 0
          %v4276 = vsel %vm4212, 1, 0
          %v4277 = vsel %vm4213, 1, 0
          %v4278 = vsel %vm4214, 1, 0
          %v4279 = vsel %vm4215, 1, 0
          %v4280 = vsel %vm4216, 1, 0
          %v4281 = vsel %vm4217, 1, 0
          %v4282 = vsel %vm4218, 1, 0
          %v4283 = vsel %vm4219, 1, 0
          %v4284 = vsel %vm4220, 1, 0
          %v4285 = vsel %vm4221, 1, 0
          %v4286 = vsel %vm4222, 1, 0
          %v4287 = vsel %vm4223, 1, 0
          %v4288 = vsel %vm4224, 1, 0
          %v4289 = vsel %vm4225, 1, 0
          %v4290 = vsel %vm4226, 1, 0
          %v4291 = vsel %vm4227, 1, 0
          %v4292 = vsel %vm4228, 1, 0
          %v4293 = vsel %vm4229, 1, 0
          %v4294 = vsel %vm4230, 1, 0
          %v4295 = vsel %vm4231, 1, 0
          %v4296 = vsel %vm4232, 1, 0
          %v4297 = vsel %vm4233, 1, 0
          %v4298 = vsel %vm4234, 1, 0
          %v4299 = vsel %vm4235, 1, 0
          %v4300 = vsel %vm4236, 1, 0
          %v4301 = vsel %vm4237, 1, 0
          %v4302 = vsel %vm4238, 1, 0
          %v4303 = vsel %vm4239, 1, 0
          %v4304 = vsel %vm4240, 1, 0
          %v4305 = vsel %vm4241, 1, 0
          %v4306 = vsel %vm4242, 1, 0
          %v4307 = vcvt.s32.f32 %v4243
          %v4308 = vcvt.s32.f32 %v4244
          %v4309 = vcvt.s32.f32 %v4245
          %v4310 = vcvt.s32.f32 %v4246
          %v4311 = vcvt.s32.f32 %v4247
          %v4312 = vcvt.s32.f32 %v4248
          %v4313 = vcvt.s32.f32 %v4249
          %v4314 = vcvt.s32.f32 %v4250
          %v4315 = vcvt.s32.f32 %v4251
          %v4316 = vcvt.s32.f32 %v4252
          %v4317 = vcvt.s32.f32 %v4253
          %v4318 = vcvt.s32.f32 %v4254
          %v4319 = vcvt.s32.f32 %v4255
          %v4320 = vcvt.s32.f32 %v4256
          %v4321 = vcvt.s32.f32 %v4257
          %v4322 = vcvt.s32.f32 %v4258
          %v4323 = vcvt.s32.f32 %v4259
          %v4324 = vcvt.s32.f32 %v4260
          %v4325 = vcvt.s32.f32 %v4261
          %v4326 = vcvt.s32.f32 %v4262
          %v4327 = vcvt.s32.f32 %v4263
          %v4328 = vcvt.s32.f32 %v4264
          %v4329 = vcvt.s32.f32 %v4265
          %v4330 = vcvt.s32.f32 %v4266
          %v4331 = vcvt.s32.f32 %v4267
          %v4332 = vcvt.s32.f32 %v4268
          %v4333 = vcvt.s32.f32 %v4269
          %v4334 = vcvt.s32.f32 %v4270
          %v4335 = vcvt.s32.f32 %v4271
          %v4336 = vcvt.s32.f32 %v4272
          %v4337 = vcvt.s32.f32 %v4273
          %v4338 = vcvt.s32.f32 %v4274
          %v4339 = vcvt.s32.f32 %v4275
          %v4340 = vcvt.s32.f32 %v4276
          %v4341 = vcvt.s32.f32 %v4277
          %v4342 = vcvt.s32.f32 %v4278
          %v4343 = vcvt.s32.f32 %v4279
          %v4344 = vcvt.s32.f32 %v4280
          %v4345 = vcvt.s32.f32 %v4281
          %v4346 = vcvt.s32.f32 %v4282
          %v4347 = vcvt.s32.f32 %v4283
          %v4348 = vcvt.s32.f32 %v4284
          %v4349 = vcvt.s32.f32 %v4285
          %v4350 = vcvt.s32.f32 %v4286
          %v4351 = vcvt.s32.f32 %v4287
          %v4352 = vcvt.s32.f32 %v4288
          %v4353 = vcvt.s32.f32 %v4289
          %v4354 = vcvt.s32.f32 %v4290
          %v4355 = vcvt.s32.f32 %v4291
          %v4356 = vcvt.s32.f32 %v4292
          %v4357 = vcvt.s32.f32 %v4293
          %v4358 = vcvt.s32.f32 %v4294
          %v4359 = vcvt.s32.f32 %v4295
          %v4360 = vcvt.s32.f32 %v4296
          %v4361 = vcvt.s32.f32 %v4297
          %v4362 = vcvt.s32.f32 %v4298
          %v4363 = vcvt.s32.f32 %v4299
          %v4364 = vcvt.s32.f32 %v4300
          %v4365 = vcvt.s32.f32 %v4301
          %v4366 = vcvt.s32.f32 %v4302
          %v4367 = vcvt.s32.f32 %v4303
          %v4368 = vcvt.s32.f32 %v4304
          %v4369 = vcvt.s32.f32 %v4305
          %v4370 = vcvt.s32.f32 %v4306
          %4371 = vmatprep.subr.mxu0 %v4338
          %4372 = vmatpush1.msra.mxu0 %v4337
          %4373 = vmatprep.subr.mxu0 %v4336
          %4374 = vmatpush1.msra.mxu0 %v4335
          %4375 = vmatprep.subr.mxu0 %v4334
          %4376 = vmatpush1.msra.mxu0 %v4333
          %4377 = vmatprep.subr.mxu0 %v4332
          %4378 = vmatpush1.msra.mxu0 %v4331
          %4379 = vmatprep.subr.mxu0 %v4330
          %4380 = vmatpush1.msra.mxu0 %v4329
          %4381 = vmatprep.subr.mxu0 %v4328
          %4382 = vmatpush1.msra.mxu0 %v4327
          %4383 = vmatprep.subr.mxu0 %v4326
          %4384 = vmatpush1.msra.mxu0 %v4325
          %4385 = vmatprep.subr.mxu0 %v4324
          %4386 = vmatpush1.msra.mxu0 %v4323
          %4387 = vmatprep.subr.mxu0 %v4322
          %4388 = vmatpush1.msra.mxu0 %v4321
          %4389 = vmatprep.subr.mxu0 %v4320
          %4390 = vmatpush1.msra.mxu0 %v4319
          %4391 = vmatprep.subr.mxu0 %v4318
          %4392 = vmatpush1.msra.mxu0 %v4317
          %4393 = vmatprep.subr.mxu0 %v4316
          %4394 = vmatpush1.msra.mxu0 %v4315
          %4395 = vmatprep.subr.mxu0 %v4314
          %4396 = vmatpush1.msra.mxu0 %v4313
          %4397 = vmatprep.subr.mxu0 %v4312
          %4398 = vmatpush1.msra.mxu0 %v4311
          %4399 = vmatprep.subr.mxu0 %v4310
          %4400 = vmatpush1.msra.mxu0 %v4309
          %4401 = vmatprep.subr.mxu0 %v4308
          %4402 = vmatpush1.msra.mxu0 %v4307
          %4403 = vmatprep.subr.mxu0 %v4370
          %4404 = vmatpush2.msra.mxu0 %v4369
          %4405 = vmatprep.subr.mxu0 %v4368
          %4406 = vmatpush2.msra.mxu0 %v4367
          %4407 = vmatprep.subr.mxu0 %v4366
          %4408 = vmatpush2.msra.mxu0 %v4365
          %4409 = vmatprep.subr.mxu0 %v4364
          %4410 = vmatpush2.msra.mxu0 %v4363
          %4411 = vmatprep.subr.mxu0 %v4362
          %4412 = vmatpush2.msra.mxu0 %v4361
          %4413 = vmatprep.subr.mxu0 %v4360
          %4414 = vmatpush2.msra.mxu0 %v4359
          %4415 = vmatprep.subr.mxu0 %v4358
          %4416 = vmatpush2.msra.mxu0 %v4357
          %4417 = vmatprep.subr.mxu0 %v4356
          %4418 = vmatpush2.msra.mxu0 %v4355
          %4419 = vmatprep.subr.mxu0 %v4354
          %4420 = vmatpush2.msra.mxu0 %v4353
          %4421 = vmatprep.subr.mxu0 %v4352
          %4422 = vmatpush2.msra.mxu0 %v4351
          %4423 = vmatprep.subr.mxu0 %v4350
          %4424 = vmatpush2.msra.mxu0 %v4349
          %4425 = vmatprep.subr.mxu0 %v4348
          %4426 = vmatpush2.msra.mxu0 %v4347
          %4427 = vmatprep.subr.mxu0 %v4346
          %4428 = vmatpush2.msra.mxu0 %v4345
          %4429 = vmatprep.subr.mxu0 %v4344
          %4430 = vmatpush2.msra.mxu0 %v4343
          %4431 = vmatprep.subr.mxu0 %v4342
          %4432 = vmatpush2.msra.mxu0 %v4341
          %4433 = vmatprep.subr.mxu0 %v4340
          %4434 = vmatpush2.msra.mxu0 %v4339
          %4435 = vmatprep.mubr.f32.mxu0 %v315
          %4436 = vmatmul.mubr.f32.gmra.mxu0 %v314
          %v4437 = vpop.f32.mrf.mxu0
          %v4438 = vadd.f32 0.0, %v4437
          %v4439 = vpop.f32.mrf.mxu0
          %v4440 = vadd.f32 0.0, %v4439
          %4441 = vdwg.mxu0
          %4442 = vst [vmem:[#allocation2 + $0xe0] sm:$0xff] %v4438
          %4443 = vst [vmem:[#allocation2 + $0xe8] sm:$0xff] %v4440
          %v4444 = vlaneseq
          %v4445 = vshrl.u32 %v4444, 7
          %v4446 = vsub.s32 7, %v4445
          %v4447 = vrot.slane %v312, %v4446
          %v4448 = vlaneseq
          %v4449 = vshrl.u32 %v4448, 7
          %v4450 = vsub.s32 7, %v4449
          %v4451 = vrot.slane %v313, %v4450
          %vm4452 = vcmp.eq.s32.totalorder %v317, %v4447
          %vm4453 = vcmp.eq.s32.totalorder %v317, %v4451
          %vm4454 = vcmp.eq.s32.totalorder %v318, %v4447
          %vm4455 = vcmp.eq.s32.totalorder %v318, %v4451
          %vm4456 = vcmp.eq.s32.totalorder %v319, %v4447
          %vm4457 = vcmp.eq.s32.totalorder %v319, %v4451
          %vm4458 = vcmp.eq.s32.totalorder %v320, %v4447
          %vm4459 = vcmp.eq.s32.totalorder %v320, %v4451
          %vm4460 = vcmp.eq.s32.totalorder %v321, %v4447
          %vm4461 = vcmp.eq.s32.totalorder %v321, %v4451
          %vm4462 = vcmp.eq.s32.totalorder %v322, %v4447
          %vm4463 = vcmp.eq.s32.totalorder %v322, %v4451
          %vm4464 = vcmp.eq.s32.totalorder %v323, %v4447
          %vm4465 = vcmp.eq.s32.totalorder %v323, %v4451
          %vm4466 = vcmp.eq.s32.totalorder %v324, %v4447
          %vm4467 = vcmp.eq.s32.totalorder %v324, %v4451
          %vm4468 = vcmp.eq.s32.totalorder %v325, %v4447
          %vm4469 = vcmp.eq.s32.totalorder %v325, %v4451
          %vm4470 = vcmp.eq.s32.totalorder %v326, %v4447
          %vm4471 = vcmp.eq.s32.totalorder %v326, %v4451
          %vm4472 = vcmp.eq.s32.totalorder %v327, %v4447
          %vm4473 = vcmp.eq.s32.totalorder %v327, %v4451
          %vm4474 = vcmp.eq.s32.totalorder %v328, %v4447
          %vm4475 = vcmp.eq.s32.totalorder %v328, %v4451
          %vm4476 = vcmp.eq.s32.totalorder %v329, %v4447
          %vm4477 = vcmp.eq.s32.totalorder %v329, %v4451
          %vm4478 = vcmp.eq.s32.totalorder %v330, %v4447
          %vm4479 = vcmp.eq.s32.totalorder %v330, %v4451
          %vm4480 = vcmp.eq.s32.totalorder %v331, %v4447
          %vm4481 = vcmp.eq.s32.totalorder %v331, %v4451
          %vm4482 = vcmp.eq.s32.totalorder %v332, %v4447
          %vm4483 = vcmp.eq.s32.totalorder %v332, %v4451
          %vm4484 = vcmp.eq.s32.totalorder %v333, %v4447
          %vm4485 = vcmp.eq.s32.totalorder %v333, %v4451
          %vm4486 = vcmp.eq.s32.totalorder %v334, %v4447
          %vm4487 = vcmp.eq.s32.totalorder %v334, %v4451
          %vm4488 = vcmp.eq.s32.totalorder %v335, %v4447
          %vm4489 = vcmp.eq.s32.totalorder %v335, %v4451
          %vm4490 = vcmp.eq.s32.totalorder %v336, %v4447
          %vm4491 = vcmp.eq.s32.totalorder %v336, %v4451
          %vm4492 = vcmp.eq.s32.totalorder %v337, %v4447
          %vm4493 = vcmp.eq.s32.totalorder %v337, %v4451
          %vm4494 = vcmp.eq.s32.totalorder %v338, %v4447
          %vm4495 = vcmp.eq.s32.totalorder %v338, %v4451
          %vm4496 = vcmp.eq.s32.totalorder %v339, %v4447
          %vm4497 = vcmp.eq.s32.totalorder %v339, %v4451
          %vm4498 = vcmp.eq.s32.totalorder %v340, %v4447
          %vm4499 = vcmp.eq.s32.totalorder %v340, %v4451
          %vm4500 = vcmp.eq.s32.totalorder %v341, %v4447
          %vm4501 = vcmp.eq.s32.totalorder %v341, %v4451
          %vm4502 = vcmp.eq.s32.totalorder %v342, %v4447
          %vm4503 = vcmp.eq.s32.totalorder %v342, %v4451
          %vm4504 = vcmp.eq.s32.totalorder %v343, %v4447
          %vm4505 = vcmp.eq.s32.totalorder %v343, %v4451
          %vm4506 = vcmp.eq.s32.totalorder %v344, %v4447
          %vm4507 = vcmp.eq.s32.totalorder %v344, %v4451
          %vm4508 = vcmp.eq.s32.totalorder %v345, %v4447
          %vm4509 = vcmp.eq.s32.totalorder %v345, %v4451
          %vm4510 = vcmp.eq.s32.totalorder %v346, %v4447
          %vm4511 = vcmp.eq.s32.totalorder %v346, %v4451
          %vm4512 = vcmp.eq.s32.totalorder %v347, %v4447
          %vm4513 = vcmp.eq.s32.totalorder %v347, %v4451
          %vm4514 = vcmp.eq.s32.totalorder %v348, %v4447
          %vm4515 = vcmp.eq.s32.totalorder %v348, %v4451
          %v4516 = vsel %vm4452, 1, 0
          %v4517 = vsel %vm4453, 1, 0
          %v4518 = vsel %vm4454, 1, 0
          %v4519 = vsel %vm4455, 1, 0
          %v4520 = vsel %vm4456, 1, 0
          %v4521 = vsel %vm4457, 1, 0
          %v4522 = vsel %vm4458, 1, 0
          %v4523 = vsel %vm4459, 1, 0
          %v4524 = vsel %vm4460, 1, 0
          %v4525 = vsel %vm4461, 1, 0
          %v4526 = vsel %vm4462, 1, 0
          %v4527 = vsel %vm4463, 1, 0
          %v4528 = vsel %vm4464, 1, 0
          %v4529 = vsel %vm4465, 1, 0
          %v4530 = vsel %vm4466, 1, 0
          %v4531 = vsel %vm4467, 1, 0
          %v4532 = vsel %vm4468, 1, 0
          %v4533 = vsel %vm4469, 1, 0
          %v4534 = vsel %vm4470, 1, 0
          %v4535 = vsel %vm4471, 1, 0
          %v4536 = vsel %vm4472, 1, 0
          %v4537 = vsel %vm4473, 1, 0
          %v4538 = vsel %vm4474, 1, 0
          %v4539 = vsel %vm4475, 1, 0
          %v4540 = vsel %vm4476, 1, 0
          %v4541 = vsel %vm4477, 1, 0
          %v4542 = vsel %vm4478, 1, 0
          %v4543 = vsel %vm4479, 1, 0
          %v4544 = vsel %vm4480, 1, 0
          %v4545 = vsel %vm4481, 1, 0
          %v4546 = vsel %vm4482, 1, 0
          %v4547 = vsel %vm4483, 1, 0
          %v4548 = vsel %vm4484, 1, 0
          %v4549 = vsel %vm4485, 1, 0
          %v4550 = vsel %vm4486, 1, 0
          %v4551 = vsel %vm4487, 1, 0
          %v4552 = vsel %vm4488, 1, 0
          %v4553 = vsel %vm4489, 1, 0
          %v4554 = vsel %vm4490, 1, 0
          %v4555 = vsel %vm4491, 1, 0
          %v4556 = vsel %vm4492, 1, 0
          %v4557 = vsel %vm4493, 1, 0
          %v4558 = vsel %vm4494, 1, 0
          %v4559 = vsel %vm4495, 1, 0
          %v4560 = vsel %vm4496, 1, 0
          %v4561 = vsel %vm4497, 1, 0
          %v4562 = vsel %vm4498, 1, 0
          %v4563 = vsel %vm4499, 1, 0
          %v4564 = vsel %vm4500, 1, 0
          %v4565 = vsel %vm4501, 1, 0
          %v4566 = vsel %vm4502, 1, 0
          %v4567 = vsel %vm4503, 1, 0
          %v4568 = vsel %vm4504, 1, 0
          %v4569 = vsel %vm4505, 1, 0
          %v4570 = vsel %vm4506, 1, 0
          %v4571 = vsel %vm4507, 1, 0
          %v4572 = vsel %vm4508, 1, 0
          %v4573 = vsel %vm4509, 1, 0
          %v4574 = vsel %vm4510, 1, 0
          %v4575 = vsel %vm4511, 1, 0
          %v4576 = vsel %vm4512, 1, 0
          %v4577 = vsel %vm4513, 1, 0
          %v4578 = vsel %vm4514, 1, 0
          %v4579 = vsel %vm4515, 1, 0
          %v4580 = vcvt.s32.f32 %v4516
          %v4581 = vcvt.s32.f32 %v4517
          %v4582 = vcvt.s32.f32 %v4518
          %v4583 = vcvt.s32.f32 %v4519
          %v4584 = vcvt.s32.f32 %v4520
          %v4585 = vcvt.s32.f32 %v4521
          %v4586 = vcvt.s32.f32 %v4522
          %v4587 = vcvt.s32.f32 %v4523
          %v4588 = vcvt.s32.f32 %v4524
          %v4589 = vcvt.s32.f32 %v4525
          %v4590 = vcvt.s32.f32 %v4526
          %v4591 = vcvt.s32.f32 %v4527
          %v4592 = vcvt.s32.f32 %v4528
          %v4593 = vcvt.s32.f32 %v4529
          %v4594 = vcvt.s32.f32 %v4530
          %v4595 = vcvt.s32.f32 %v4531
          %v4596 = vcvt.s32.f32 %v4532
          %v4597 = vcvt.s32.f32 %v4533
          %v4598 = vcvt.s32.f32 %v4534
          %v4599 = vcvt.s32.f32 %v4535
          %v4600 = vcvt.s32.f32 %v4536
          %v4601 = vcvt.s32.f32 %v4537
          %v4602 = vcvt.s32.f32 %v4538
          %v4603 = vcvt.s32.f32 %v4539
          %v4604 = vcvt.s32.f32 %v4540
          %v4605 = vcvt.s32.f32 %v4541
          %v4606 = vcvt.s32.f32 %v4542
          %v4607 = vcvt.s32.f32 %v4543
          %v4608 = vcvt.s32.f32 %v4544
          %v4609 = vcvt.s32.f32 %v4545
          %v4610 = vcvt.s32.f32 %v4546
          %v4611 = vcvt.s32.f32 %v4547
          %v4612 = vcvt.s32.f32 %v4548
          %v4613 = vcvt.s32.f32 %v4549
          %v4614 = vcvt.s32.f32 %v4550
          %v4615 = vcvt.s32.f32 %v4551
          %v4616 = vcvt.s32.f32 %v4552
          %v4617 = vcvt.s32.f32 %v4553
          %v4618 = vcvt.s32.f32 %v4554
          %v4619 = vcvt.s32.f32 %v4555
          %v4620 = vcvt.s32.f32 %v4556
          %v4621 = vcvt.s32.f32 %v4557
          %v4622 = vcvt.s32.f32 %v4558
          %v4623 = vcvt.s32.f32 %v4559
          %v4624 = vcvt.s32.f32 %v4560
          %v4625 = vcvt.s32.f32 %v4561
          %v4626 = vcvt.s32.f32 %v4562
          %v4627 = vcvt.s32.f32 %v4563
          %v4628 = vcvt.s32.f32 %v4564
          %v4629 = vcvt.s32.f32 %v4565
          %v4630 = vcvt.s32.f32 %v4566
          %v4631 = vcvt.s32.f32 %v4567
          %v4632 = vcvt.s32.f32 %v4568
          %v4633 = vcvt.s32.f32 %v4569
          %v4634 = vcvt.s32.f32 %v4570
          %v4635 = vcvt.s32.f32 %v4571
          %v4636 = vcvt.s32.f32 %v4572
          %v4637 = vcvt.s32.f32 %v4573
          %v4638 = vcvt.s32.f32 %v4574
          %v4639 = vcvt.s32.f32 %v4575
          %v4640 = vcvt.s32.f32 %v4576
          %v4641 = vcvt.s32.f32 %v4577
          %v4642 = vcvt.s32.f32 %v4578
          %v4643 = vcvt.s32.f32 %v4579
          %4644 = vmatprep.subr.mxu0 %v4611
          %4645 = vmatpush1.msra.mxu0 %v4610
          %4646 = vmatprep.subr.mxu0 %v4609
          %4647 = vmatpush1.msra.mxu0 %v4608
          %4648 = vmatprep.subr.mxu0 %v4607
          %4649 = vmatpush1.msra.mxu0 %v4606
          %4650 = vmatprep.subr.mxu0 %v4605
          %4651 = vmatpush1.msra.mxu0 %v4604
          %4652 = vmatprep.subr.mxu0 %v4603
          %4653 = vmatpush1.msra.mxu0 %v4602
          %4654 = vmatprep.subr.mxu0 %v4601
          %4655 = vmatpush1.msra.mxu0 %v4600
          %4656 = vmatprep.subr.mxu0 %v4599
          %4657 = vmatpush1.msra.mxu0 %v4598
          %4658 = vmatprep.subr.mxu0 %v4597
          %4659 = vmatpush1.msra.mxu0 %v4596
          %4660 = vmatprep.subr.mxu0 %v4595
          %4661 = vmatpush1.msra.mxu0 %v4594
          %4662 = vmatprep.subr.mxu0 %v4593
          %4663 = vmatpush1.msra.mxu0 %v4592
          %4664 = vmatprep.subr.mxu0 %v4591
          %4665 = vmatpush1.msra.mxu0 %v4590
          %4666 = vmatprep.subr.mxu0 %v4589
          %4667 = vmatpush1.msra.mxu0 %v4588
          %4668 = vmatprep.subr.mxu0 %v4587
          %4669 = vmatpush1.msra.mxu0 %v4586
          %4670 = vmatprep.subr.mxu0 %v4585
          %4671 = vmatpush1.msra.mxu0 %v4584
          %4672 = vmatprep.subr.mxu0 %v4583
          %4673 = vmatpush1.msra.mxu0 %v4582
          %4674 = vmatprep.subr.mxu0 %v4581
          %4675 = vmatpush1.msra.mxu0 %v4580
          %4676 = vmatprep.subr.mxu0 %v4643
          %4677 = vmatpush2.msra.mxu0 %v4642
          %4678 = vmatprep.subr.mxu0 %v4641
          %4679 = vmatpush2.msra.mxu0 %v4640
          %4680 = vmatprep.subr.mxu0 %v4639
          %4681 = vmatpush2.msra.mxu0 %v4638
          %4682 = vmatprep.subr.mxu0 %v4637
          %4683 = vmatpush2.msra.mxu0 %v4636
          %4684 = vmatprep.subr.mxu0 %v4635
          %4685 = vmatpush2.msra.mxu0 %v4634
          %4686 = vmatprep.subr.mxu0 %v4633
          %4687 = vmatpush2.msra.mxu0 %v4632
          %4688 = vmatprep.subr.mxu0 %v4631
          %4689 = vmatpush2.msra.mxu0 %v4630
          %4690 = vmatprep.subr.mxu0 %v4629
          %4691 = vmatpush2.msra.mxu0 %v4628
          %4692 = vmatprep.subr.mxu0 %v4627
          %4693 = vmatpush2.msra.mxu0 %v4626
          %4694 = vmatprep.subr.mxu0 %v4625
          %4695 = vmatpush2.msra.mxu0 %v4624
          %4696 = vmatprep.subr.mxu0 %v4623
          %4697 = vmatpush2.msra.mxu0 %v4622
          %4698 = vmatprep.subr.mxu0 %v4621
          %4699 = vmatpush2.msra.mxu0 %v4620
          %4700 = vmatprep.subr.mxu0 %v4619
          %4701 = vmatpush2.msra.mxu0 %v4618
          %4702 = vmatprep.subr.mxu0 %v4617
          %4703 = vmatpush2.msra.mxu0 %v4616
          %4704 = vmatprep.subr.mxu0 %v4615
          %4705 = vmatpush2.msra.mxu0 %v4614
          %4706 = vmatprep.subr.mxu0 %v4613
          %4707 = vmatpush2.msra.mxu0 %v4612
          %4708 = vmatprep.mubr.f32.mxu0 %v315
          %4709 = vmatmul.mubr.f32.gmra.mxu0 %v314
          %v4710 = vpop.f32.mrf.mxu0
          %v4711 = vadd.f32 0.0, %v4710
          %v4712 = vpop.f32.mrf.mxu0
          %v4713 = vadd.f32 0.0, %v4712
          %4714 = vdwg.mxu0
          %4715 = vst [vmem:[#allocation2 + $0xf0] sm:$0xff] %v4711
          %4716 = vst [vmem:[#allocation2 + $0xf8] sm:$0xff] %v4713
        $region52: #{tpu_custom_call.1} parent=35 // pred_fallthru
          _
        %v4717 = vld [vmem:[%s246] sm:$0xff]
        %v4718 = vld [vmem:[#allocation2] sm:$0xff]
        %v4719 = vld [vmem:[#allocation2 + $0x8] sm:$0xff]
        %v4720 = vld [vmem:[#allocation2 + $0x10] sm:$0xff]
        %v4721 = vld [vmem:[#allocation2 + $0x18] sm:$0xff]
        %v4722 = vld [vmem:[#allocation2 + $0x20] sm:$0xff]
        %v4723 = vld [vmem:[#allocation2 + $0x28] sm:$0xff]
        %v4724 = vld [vmem:[#allocation2 + $0x30] sm:$0xff]
        %v4725 = vld [vmem:[#allocation2 + $0x38] sm:$0xff]
        %v4726 = vld [vmem:[#allocation2 + $0x40] sm:$0xff]
        %v4727 = vld [vmem:[#allocation2 + $0x48] sm:$0xff]
        %v4728 = vld [vmem:[#allocation2 + $0x50] sm:$0xff]
        %v4729 = vld [vmem:[#allocation2 + $0x58] sm:$0xff]
        %v4730 = vld [vmem:[#allocation2 + $0x60] sm:$0xff]
        %v4731 = vld [vmem:[#allocation2 + $0x68] sm:$0xff]
        %v4732 = vld [vmem:[#allocation2 + $0x70] sm:$0xff]
        %v4733 = vld [vmem:[#allocation2 + $0x78] sm:$0xff]
        %v4734 = vld [vmem:[#allocation2 + $0x80] sm:$0xff]
        %v4735 = vld [vmem:[#allocation2 + $0x88] sm:$0xff]
        %v4736 = vld [vmem:[#allocation2 + $0x90] sm:$0xff]
        %v4737 = vld [vmem:[#allocation2 + $0x98] sm:$0xff]
        %v4738 = vld [vmem:[#allocation2 + $0xa0] sm:$0xff]
        %v4739 = vld [vmem:[#allocation2 + $0xa8] sm:$0xff]
        %v4740 = vld [vmem:[#allocation2 + $0xb0] sm:$0xff]
        %v4741 = vld [vmem:[#allocation2 + $0xb8] sm:$0xff]
        %v4742 = vld [vmem:[#allocation2 + $0xc0] sm:$0xff]
        %v4743 = vld [vmem:[#allocation2 + $0xc8] sm:$0xff]
        %v4744 = vld [vmem:[#allocation2 + $0xd0] sm:$0xff]
        %v4745 = vld [vmem:[#allocation2 + $0xd8] sm:$0xff]
        %v4746 = vld [vmem:[#allocation2 + $0xe0] sm:$0xff]
        %v4747 = vld [vmem:[#allocation2 + $0xe8] sm:$0xff]
        %v4748 = vld [vmem:[#allocation2 + $0xf0] sm:$0xff]
        %v4749 = vld [vmem:[#allocation2 + $0xf8] sm:$0xff]
        %v4750 = vld [vmem:[%s297] sm:$0x3]
        %v4752 = vlaneseq
        %v4753 = vshrl.u32 %v4752, 7
        %v4754 = vsub.s32 0, %v4753
        %v4755 = vrot.slane %v4750, %v4754
        %v4756 = vlaneseq
        %v4757 = vshrl.u32 %v4756, 7
        %v4758 = vsub.s32 1, %v4757
        %v4759 = vrot.slane %v4750, %v4758
        %4762 = vmatprep.subr.mxu0 %v4749
        %4763 = vmatpush1.msra.mxu0 %v4748
        %4764 = vmatprep.subr.mxu0 %v4747
        %4765 = vmatpush1.msra.mxu0 %v4746
        %4766 = vmatprep.subr.mxu0 %v4745
        %4767 = vmatpush1.msra.mxu0 %v4744
        %4768 = vmatprep.subr.mxu0 %v4743
        %4769 = vmatpush1.msra.mxu0 %v4742
        %4770 = vmatprep.subr.mxu0 %v4741
        %4771 = vmatpush1.msra.mxu0 %v4740
        %4772 = vmatprep.subr.mxu0 %v4739
        %4773 = vmatpush1.msra.mxu0 %v4738
        %4774 = vmatprep.subr.mxu0 %v4737
        %4775 = vmatpush1.msra.mxu0 %v4736
        %4776 = vmatprep.subr.mxu0 %v4735
        %4777 = vmatpush1.msra.mxu0 %v4734
        %4778 = vmatprep.subr.mxu0 %v4733
        %4779 = vmatpush1.msra.mxu0 %v4732
        %4780 = vmatprep.subr.mxu0 %v4731
        %4781 = vmatpush1.msra.mxu0 %v4730
        %4782 = vmatprep.subr.mxu0 %v4729
        %4783 = vmatpush1.msra.mxu0 %v4728
        %4784 = vmatprep.subr.mxu0 %v4727
        %4785 = vmatpush1.msra.mxu0 %v4726
        %4786 = vmatprep.subr.mxu0 %v4725
        %4787 = vmatpush1.msra.mxu0 %v4724
        %4788 = vmatprep.subr.mxu0 %v4723
        %4789 = vmatpush1.msra.mxu0 %v4722
        %4790 = vmatprep.subr.mxu0 %v4721
        %4791 = vmatpush1.msra.mxu0 %v4720
        %4792 = vmatprep.subr.mxu0 %v4719
        %4793 = vmatpush1.msra.mxu0 %v4718
        %4794 = vmatprep.subr.mxu0 0.0
        %4795 = vmatpush2.msra.mxu0 0.0
        %4796 = vmatprep.subr.mxu0 0.0
        %4797 = vmatpush2.msra.mxu0 0.0
        %4798 = vmatprep.subr.mxu0 0.0
        %4799 = vmatpush2.msra.mxu0 0.0
        %4800 = vmatprep.subr.mxu0 0.0
        %4801 = vmatpush2.msra.mxu0 0.0
        %4802 = vmatprep.subr.mxu0 0.0
        %4803 = vmatpush2.msra.mxu0 0.0
        %4804 = vmatprep.subr.mxu0 0.0
        %4805 = vmatpush2.msra.mxu0 0.0
        %4806 = vmatprep.subr.mxu0 0.0
        %4807 = vmatpush2.msra.mxu0 0.0
        %4808 = vmatprep.subr.mxu0 0.0
        %4809 = vmatpush2.msra.mxu0 0.0
        %4810 = vmatprep.subr.mxu0 0.0
        %4811 = vmatpush2.msra.mxu0 0.0
        %4812 = vmatprep.subr.mxu0 0.0
        %4813 = vmatpush2.msra.mxu0 0.0
        %4814 = vmatprep.subr.mxu0 0.0
        %4815 = vmatpush2.msra.mxu0 0.0
        %4816 = vmatprep.subr.mxu0 0.0
        %4817 = vmatpush2.msra.mxu0 0.0
        %4818 = vmatprep.subr.mxu0 0.0
        %4819 = vmatpush2.msra.mxu0 0.0
        %4820 = vmatprep.subr.mxu0 0.0
        %4821 = vmatpush2.msra.mxu0 0.0
        %4822 = vmatprep.subr.mxu0 0.0
        %4823 = vmatpush2.msra.mxu0 0.0
        %4824 = vmatprep.subr.mxu0 0.0
        %4825 = vmatpush2.msra.mxu0 0.0
        %4826 = vmatprep.mubr.f32.mxu0 0.0
        %4827 = vmatmul.mubr.f32.gmra.mxu0 %v4717
        %v4828 = vpop.f32.mrf.mxu0
        %v4829 = vadd.f32 %v4755, %v4828
        %v4830 = vpop.f32.mrf.mxu0
        %v4831 = vadd.f32 %v4759, %v4830
        %4832 = vdwg.mxu0
        %4833 = vst [vmem:[%s292] sm:$0xff] %v4829
        %4834 = vst [vmem:[%s292 + $0x8] sm:$0xff] %v4831
        %s4835 = sand.u32 %s145, 1
        %s4836 = scalar_lea.sflag [#allocation5], %s4835
        %s4837 = sand.u32 %s145, 1
        %s4838 = smul.addr %s4837, 16
        %s4839 = scalar_lea.vmem [#allocation9], %s4838
        // Predicated region
        $region53: #{tpu_custom_call.1} parent=35 // pred_check
          %p4840 = pneg %p155
        $region54: #{tpu_custom_call.1} parent=35 // pred_check_branch
          %4842 = sbr.rel (%p4840) target = $region56
        $region55: #{tpu_custom_call.1} parent=35 // pred_region
          %s4843 = smul.u32 2, %s28
          %s4845 = ssub.s32 256, 256
          %4846 = vsyncadd %s4836, %s4845
          %s4847 = smul.addr %s29, 4
          %s4848 = sadd.s32 %s4843, %s4847
          %s4849 = smul.addr %s4848, 128
          %s4850 = scalar_lea.hbm %s4, %s4849
          %s4852 = sshll.u32 %s4839, 4
          %s4853 = int_to_ptr.vmem [resolvable:$true] %s4852
          %4855 = dma.vmem_to_hbm [thread:$0]  %s4853, 256, %s4850, %s4836
        $region56: #{tpu_custom_call.1} parent=35 // pred_fallthru
          _
      $region36: #{tpu_custom_call.1} parent=5 // pred_fallthru
        _
      %p4856 = scmp.le.s32.totalorder 2, %s19
      // Predicated region
      $region57: #{tpu_custom_call.1} parent=5 // pred_check
        %p4857 = pneg %p4856
      $region58: #{tpu_custom_call.1} parent=5 // pred_check_branch
        %4859 = sbr.rel (%p4857) target = $region60
      $region59: #{tpu_custom_call.1} parent=5 // pred_region
        %s4860 = ssub.s32 %s19, 2
        // Predicated region
        $region61: #{tpu_custom_call.1} parent=59 // pred_check
          %p4861 = pneg %p161
        $region62: #{tpu_custom_call.1} parent=59 // pred_check_branch
          %4863 = sbr.rel (%p4861) target = $region64
        $region63: #{tpu_custom_call.1} parent=59 // pred_region
          %s4864 = sand.u32 %s146, 1
          %s4865 = scalar_lea.sflag [#allocation5], %s4864
          %s4866 = sand.u32 %s146, 1
          %s4867 = smul.addr %s4866, 16
          %s4868 = scalar_lea.vmem [#allocation9], %s4867
          %4869 = dma.done %s4865, 256
        $region64: #{tpu_custom_call.1} parent=59 // pred_fallthru
          _
      $region60: #{tpu_custom_call.1} parent=5 // pred_fallthru
        _
    $region6: #{tpu_custom_call.1} parent=1 // loop_footer
      %s23 = sadd.s32 1, %s19
    $region7: #{tpu_custom_call.1} parent=1 // loop_footer_branch
      %18 = sbr.rel target = $region3
    $region8: #{tpu_custom_call.1} parent=1 // loop_exit
      _
    %4870 = vsyncpa [#allocation4], 1
    %s4871 = scalar_lea.sflag [#allocation4], 1
    %4872 = vsyncpa %s4871, 1
    %4873 = vsyncpa [#allocation7], 1
    %s4874 = scalar_lea.sflag [#allocation7], 1
    %4875 = vsyncpa %s4874, 1
    %4876 = vsyncpa [#allocation5], 1
    %s4877 = scalar_lea.sflag [#allocation5], 1
    %4878 = vsyncpa %s4877, 1

</llo_original>
